<compile_context>
chip_gen: v6e
topology: v6e:2x2x1
jax: 0.10.0
libtpu: 0.0.40
codegen_flags: <defaults>
</compile_context>

<pallas_src>
import functools

import jax
import jax.numpy as jnp
from jax.experimental import pallas as pl
from jax.experimental.pallas import tpu as pltpu

EPS = 1e-8
LANE = 128
# Keep f32 at these tiny validation shapes so the check against the f32
# reference is tight.  Flip to jnp.bfloat16 on v6e/v7x at realistic sizes
# (accumulation stays f32 via preferred_element_type).
MATMUL_DTYPE = jnp.float32


# ---------------------------------------------------------------------------
# in-kernel helpers (each program sees one batch's (channels, Tp) slab)
# ---------------------------------------------------------------------------
def _gn(v, tmask, gamma, beta, n):
    """GroupNorm(1, C) over a (C, Tp) slab; only lanes with tmask==1 count."""
    vm = v * tmask
    s = jnp.sum(jnp.sum(vm, axis=1, keepdims=True), axis=0, keepdims=True)
    ss = jnp.sum(jnp.sum(vm * vm, axis=1, keepdims=True), axis=0, keepdims=True)
    inv_n = 1.0 / float(n)
    mean = s * inv_n
    var = jnp.maximum(ss * inv_n - mean * mean, 0.0)   # one-pass var can go <0 in f32
    rstd = jax.lax.rsqrt(var + EPS)
    return (v - mean) * rstd * gamma + beta


def _mm(w, v, b):
    return jnp.dot(w.astype(MATMUL_DTYPE), v.astype(MATMUL_DTYPE),
                   preferred_element_type=jnp.float32) + b


# ---------------------------------------------------------------------------
# the fused TCN kernel (one program per batch element)
# ---------------------------------------------------------------------------
def _tcn_kernel(x_ref, lngb_ref, bnw_ref, bnb_ref,
                w1a_ref, pva_ref, wrsa_ref, brsa_ref,
                outw_ref, outb_ref, alphas_ref, oalpha_ref,
                o_ref, *, T, K, dilations):
    _, C, Tp = x_ref.shape
    H = w1a_ref.shape[1]
    BN = w1a_ref.shape[2]

    t_pos = jax.lax.broadcasted_iota(jnp.int32, (1, Tp), 1)
    tmask = (t_pos < T).astype(jnp.float32)            # valid (un-padded) lanes

    # ---- front: GroupNorm(1, input_dim) -> 1x1 "BN" conv ----
    x = x_ref[0]                                       # (C, Tp)
    xn = _gn(x, tmask, lngb_ref[:, 0:1], lngb_ref[:, 1:2], C * T)
    u = _mm(bnw_ref[...], xn, bnb_ref[...])            # (BN, Tp)
    sk = jnp.zeros_like(u)

    # ---- stack*layer DepthConv1d blocks, statically unrolled ----
    for idx, d in enumerate(dilations):
        w1 = w1a_ref[idx]                              # (H, BN)
        pv = pva_ref[idx]                              # (H, 6+K) packed per-channel params
        wrs = wrsa_ref[idx]                            # (2*BN, H) fused [res; skip] weights
        brs = brsa_ref[idx]                            # (2*BN, 1)
        a1 = alphas_ref[idx, 0]                        # scalar PReLU alphas from SMEM
        a2 = alphas_ref[idx, 1]

        # 1x1 conv -> PReLU -> GroupNorm
        h = _mm(w1, u, pv[:, 0:1])
        h = jnp.where(h >= 0.0, h, a1 * h)
        h = _gn(h, tmask, pv[:, 1:2], pv[:, 2:3], H * T)

        # dilated depthwise conv ('same' length: padding == dilation); taps via
        # XLU lane rolls + in-bounds masks (no concatenate-based zero padding)
        y = jnp.zeros_like(h)
        for k in range(K):
            s_k = k * d - d
            if s_k == 0:
                tap = h
            else:
                rolled = pltpu.roll(h, shift=(-s_k) % Tp, axis=1)  # rolled[:, t] = h[:, (t+s_k) % Tp]
                valid = jnp.logical_and(t_pos + s_k >= 0, t_pos + s_k <= T - 1)
                tap = jnp.where(valid, rolled, 0.0)
            y = y + pv[:, 6 + k:7 + k] * tap
        y = y + pv[:, 5:6]                             # depthwise bias

        # PReLU -> GroupNorm -> fused [res; skip] 1x1 conv + accumulate
        y = jnp.where(y >= 0.0, y, a2 * y)
        y = _gn(y, tmask, pv[:, 3:4], pv[:, 4:5], H * T)
        rs = _mm(wrs, y, brs)                          # (2*BN, Tp): [residual; skip]
        u = u + rs[:BN, :]
        sk = sk + rs[BN:, :]

    # ---- output head: PReLU -> 1x1 conv on the accumulated skip ----
    a = oalpha_ref[0]
    s = jnp.where(sk >= 0.0, sk, a * sk)
    o_ref[0] = _mm(outw_ref[...], s, outb_ref[...]).astype(o_ref.dtype)


# ---------------------------------------------------------------------------
# pallas_call wrapper
# ---------------------------------------------------------------------------
def _full_spec(shape):
    nd = len(shape)
    return pl.BlockSpec(shape, lambda *_: (0,) * nd)   # whole array, constant block


def tcn_forward(x, params, *, layer, stack, kernel_size):
    """TCN forward (non-causal, skip=True, dilated=True) on (B, C, T) input."""
    B, C, T = x.shape
    dilations = tuple(2 ** i for _ in range(stack) for i in range(layer))
    n_blocks = len(dilations)
    for d in dilations:   # 'same'-length depthwise conv (TCN uses padding == dilation)
        assert T + 2 * d - d * (kernel_size - 1) == T

    # lane-dense time axis: pad T up to a multiple of 128 lanes (masked in-kernel)
    Tp = ((T + LANE - 1) // LANE) * LANE
    xp = jnp.pad(x, ((0, 0), (0, 0), (0, Tp - T)))

    # stacked per-block parameters (selected by static index inside the kernel)
    w1a = jnp.stack([p["w1"] for p in params["blocks"]])
    pva = jnp.stack([p["pvec"] for p in params["blocks"]])
    wrsa = jnp.stack([p["wrs"] for p in params["blocks"]])
    brsa = jnp.stack([p["brs"] for p in params["blocks"]])
    alphas = jnp.stack([p["alphas"] for p in params["blocks"]])
    H, BN = w1a.shape[1], w1a.shape[2]
    O = params["out_w"].shape[0]

    smem = pl.BlockSpec(memory_space=pltpu.MemorySpace.SMEM)
    flops = 2 * B * Tp * (BN * C + n_blocks * (3 * H * BN + H * kernel_size) + O * BN)
    nbytes = 4 * (xp.size + B * O * Tp + w1a.size + pva.size + wrsa.size + brsa.size
                  + params["bn_w"].size + params["out_w"].size)

    out = pl.pallas_call(
        functools.partial(_tcn_kernel, T=T, K=kernel_size, dilations=dilations),
        grid=(B,),
        out_shape=jax.ShapeDtypeStruct((B, O, Tp), jnp.float32),
        in_specs=[
            pl.BlockSpec((1, C, Tp), lambda b: (b, 0, 0)),     # x: one batch slab / program
            _full_spec(params["ln_gb"].shape),                 # front GN gamma|beta
            _full_spec(params["bn_w"].shape),                  # BN 1x1 conv weight
            _full_spec(params["bn_b"].shape),                  # BN 1x1 conv bias
            _full_spec(w1a.shape), _full_spec(pva.shape),      # stacked block params
            _full_spec(wrsa.shape), _full_spec(brsa.shape),
            _full_spec(params["out_w"].shape),                 # output head
            _full_spec(params["out_b"].shape),
            smem, smem,                                        # PReLU alphas (scalars)
        ],
        out_specs=pl.BlockSpec((1, O, Tp), lambda b: (b, 0, 0)),
        compiler_params=pltpu.CompilerParams(
            dimension_semantics=("parallel",),                 # shard batch over TCs (v7x)
            vmem_limit_bytes=48 * 1024 * 1024,                 # below v7x 64 MiB physical
        ),
        cost_estimate=pl.CostEstimate(flops=int(flops),
                                      transcendentals=int(B * (1 + 2 * n_blocks)),
                                      bytes_accessed=int(nbytes)),
    )(xp, params["ln_gb"], params["bn_w"], params["bn_b"],
      w1a, pva, wrsa, brsa, params["out_w"], params["out_b"],
      alphas, params["out_alpha"])
    return out[:, :, :T]


# ---------------------------------------------------------------------------
# pure-JAX reference (mirrors the PyTorch module, (B, C, T) layout)
# ---------------------------------------------------------------------------
def tcn_reference(x, params, *, layer, stack, kernel_size):
    def gn(v, gamma, beta):
        m = jnp.mean(v, axis=(1, 2), keepdims=True)
        var = jnp.mean((v - m) ** 2, axis=(1, 2), keepdims=True)
        return (v - m) / jnp.sqrt(var + EPS) * gamma[None] + beta[None]

    K = kernel_size
    u = gn(x, params["ln_gb"][:, 0:1], params["ln_gb"][:, 1:2])
    u = jnp.einsum("oc,bct->bot", params["bn_w"], u) + params["bn_b"][None]
    sk = jnp.zeros_like(u)
    idx = 0
    for _s in range(stack):
        for i in range(layer):
            d = 2 ** i
            p = params["blocks"][idx]
            idx += 1
            pv = p["pvec"]
            b1, g1, be1 = pv[:, 0:1], pv[:, 1:2], pv[:, 2:3]
            g2, be2, bd = pv[:, 3:4], pv[:, 4:5], pv[:, 5:6]
            wd = pv[:, 6:6 + K]
            a1, a2 = p["alphas"][0], p["alphas"][1]
            BN = u.shape[1]
            wr, ws = p["wrs"][:BN], p["wrs"][BN:]
            br, bs = p["brs"][:BN], p["brs"][BN:]

            h = jnp.einsum("hc,bct->bht", p["w1"], u) + b1[None]
            h = jnp.where(h >= 0.0, h, a1 * h)
            h = gn(h, g1, be1)

            T = h.shape[2]
            t_out = T + 2 * d - d * (K - 1)
            hp = jnp.pad(h, ((0, 0), (0, 0), (d, d)))
            y = jnp.broadcast_to(bd[None], (h.shape[0], h.shape[1], t_out))
            for k in range(K):
                y = y + wd[None, :, k:k + 1] * hp[:, :, k * d:k * d + t_out]

            y = jnp.where(y >= 0.0, y, a2 * y)
            y = gn(y, g2, be2)

            u = u + jnp.einsum("ch,bht->bct", wr, y) + br[None]
            sk = sk + jnp.einsum("ch,bht->bct", ws, y) + bs[None]

    a = params["out_alpha"][0]
    o = jnp.where(sk >= 0.0, sk, a * sk)
    return jnp.einsum("oc,bct->bot", params["out_w"], o) + params["out_b"][None]


# ---------------------------------------------------------------------------
# parameter construction (packed layout used by the kernel)
# ---------------------------------------------------------------------------
def init_params(key, *, input_dim, output_dim, bn_dim, hidden_dim, layer, stack,
                kernel_size):
    n_blocks = layer * stack
    keys = iter(jax.random.split(key, 6 + 10 * n_blocks))
    nxt = keys.__next__
    s = 0.1
    nrm = lambda shape: s * jax.random.normal(nxt(), shape, jnp.float32)

    params = {
        # GroupNorm(1, input_dim) affine, packed as (C, 2) = [gamma | beta]
        "ln_gb": jnp.concatenate([1.0 + nrm((input_dim, 1)), nrm((input_dim, 1))], axis=1),
        # "BN" 1x1 conv
        "bn_w": nrm((bn_dim, input_dim)),
        "bn_b": nrm((bn_dim, 1)),
        # output head: PReLU alpha + 1x1 conv
        "out_alpha": jnp.array([0.25], jnp.float32),
        "out_w": nrm((output_dim, bn_dim)),
        "out_b": nrm((output_dim, 1)),
        "blocks": [],
    }
    for _ in range(n_blocks):
        b1 = nrm((hidden_dim, 1))
        g1 = 1.0 + nrm((hidden_dim, 1))
        be1 = nrm((hidden_dim, 1))
        g2 = 1.0 + nrm((hidden_dim, 1))
        be2 = nrm((hidden_dim, 1))
        bd = nrm((hidden_dim, 1))
        wd = nrm((hidden_dim, kernel_size))
        params["blocks"].append({
            "alphas": jnp.array([0.25, 0.2], jnp.float32),   # PReLU1 / PReLU2 scalars
            "w1": nrm((hidden_dim, bn_dim)),
            # packed per-channel params: [b1 | gn1_g | gn1_b | gn2_g | gn2_b | d_bias | d_w(K)]
            "pvec": jnp.concatenate([b1, g1, be1, g2, be2, bd, wd], axis=1),
            "wrs": nrm((2 * bn_dim, hidden_dim)),            # [res_out ; skip_out] weights
            "brs": nrm((2 * bn_dim, 1)),                     # [res_out ; skip_out] biases
        })
    return params


if __name__ == "__main__":
    # TCN(input_dim=16, output_dim=8, BN_dim=16, hidden_dim=32,
    #     layer=2, stack=2, kernel=3, skip=True, causal=False, dilated=True)
    B, T = 2, 16
    INPUT_DIM, OUTPUT_DIM, BN_DIM, HIDDEN_DIM = 16, 8, 16, 32
    LAYER, STACK, KERNEL = 2, 2, 3

    key = jax.random.PRNGKey(0)
    kx, kp = jax.random.split(key)
    x = jax.random.normal(kx, (B, INPUT_DIM, T), jnp.float32)
    params = init_params(kp, input_dim=INPUT_DIM, output_dim=OUTPUT_DIM,
                         bn_dim=BN_DIM, hidden_dim=HIDDEN_DIM,
                         layer=LAYER, stack=STACK, kernel_size=KERNEL)

    out = tcn_forward(x, params, layer=LAYER, stack=STACK, kernel_size=KERNEL)
    out = jax.block_until_ready(out)

    ref = tcn_reference(x, params, layer=LAYER, stack=STACK, kernel_size=KERNEL)
    ref = jax.block_until_ready(ref)

    assert out.shape == (B, OUTPUT_DIM, T)
    assert jnp.allclose(out, ref, rtol=1e-3, atol=1e-4), float(jnp.max(jnp.abs(out - ref)))
    print("KERNEL_OK")
</pallas_src>

<mosaic_0001>
module attributes {stable_mosaic.version = 11 : i64} {
  func.func @_tcn_kernel(%arg0: i32, %arg1: memref<1x16x128xf32, #tpu.memory_space<vmem>>, %arg2: memref<16x2xf32, #tpu.memory_space<vmem>>, %arg3: memref<16x16xf32, #tpu.memory_space<vmem>>, %arg4: memref<16x1xf32, #tpu.memory_space<vmem>>, %arg5: memref<4x32x16xf32, #tpu.memory_space<vmem>>, %arg6: memref<4x32x9xf32, #tpu.memory_space<vmem>>, %arg7: memref<4x32x32xf32, #tpu.memory_space<vmem>>, %arg8: memref<4x32x1xf32, #tpu.memory_space<vmem>>, %arg9: memref<8x16xf32, #tpu.memory_space<vmem>>, %arg10: memref<8x1xf32, #tpu.memory_space<vmem>>, %arg11: memref<4x2xf32, #tpu.memory_space<smem>>, %arg12: memref<1xf32, #tpu.memory_space<smem>>, %arg13: memref<1x8x128xf32, #tpu.memory_space<vmem>>) attributes {dimension_semantics = [#tpu.dimension_semantics<parallel>], iteration_bounds = array<i64: 2>, scalar_prefetch = 0 : i64, scratch_operands = 0 : i64, tpu.core_type = #tpu.core_type<tc>, window_params = [{transform_indices = @transform_0, window_bounds = array<i64: 1, 16, 128>}, {pipeline_mode = #tpu.pipeline_mode<synchronous>, transform_indices = @transform_1, window_bounds = array<i64: 16, 2>}, {pipeline_mode = #tpu.pipeline_mode<synchronous>, transform_indices = @transform_2, window_bounds = array<i64: 16, 16>}, {pipeline_mode = #tpu.pipeline_mode<synchronous>, transform_indices = @transform_3, window_bounds = array<i64: 16, 1>}, {pipeline_mode = #tpu.pipeline_mode<synchronous>, transform_indices = @transform_4, window_bounds = array<i64: 4, 32, 16>}, {pipeline_mode = #tpu.pipeline_mode<synchronous>, transform_indices = @transform_5, window_bounds = array<i64: 4, 32, 9>}, {pipeline_mode = #tpu.pipeline_mode<synchronous>, transform_indices = @transform_6, window_bounds = array<i64: 4, 32, 32>}, {pipeline_mode = #tpu.pipeline_mode<synchronous>, transform_indices = @transform_7, window_bounds = array<i64: 4, 32, 1>}, {pipeline_mode = #tpu.pipeline_mode<synchronous>, transform_indices = @transform_8, window_bounds = array<i64: 8, 16>}, {pipeline_mode = #tpu.pipeline_mode<synchronous>, transform_indices = @transform_9, window_bounds = array<i64: 8, 1>}, {transform_indices = @transform_10, window_bounds = array<i64: 4, 2>}, {transform_indices = @transform_11, window_bounds = array<i64: 1>}, {transform_indices = @transform_12, window_bounds = array<i64: 1, 8, 128>}]} {
    %0 = tpu.iota {dimensions = array<i32: 1>} : vector<1x128xi32>
    %c16_i32 = arith.constant 16 : i32
    %1 = vector.broadcast %c16_i32 : i32 to vector<1x128xi32>
    %2 = arith.cmpi slt, %0, %1 : vector<1x128xi32>
    %3 = arith.extui %2 : vector<1x128xi1> to vector<1x128xi32>
    %4 = arith.sitofp %3 : vector<1x128xi32> to vector<1x128xf32>
    %c0 = arith.constant 0 : index
    %c0_0 = arith.constant 0 : index
    %c0_1 = arith.constant 0 : index
    %5 = vector.load %arg1[%c0, %c0_0, %c0_1] : memref<1x16x128xf32, #tpu.memory_space<vmem>>, vector<1x16x128xf32>
    %6 = vector.shape_cast %5 : vector<1x16x128xf32> to vector<16x128xf32>
    %c0_2 = arith.constant 0 : index
    %c0_3 = arith.constant 0 : index
    %7 = vector.load %arg2[%c0_2, %c0_3] : memref<16x2xf32, #tpu.memory_space<vmem>>, vector<16x1xf32>
    %c0_4 = arith.constant 0 : index
    %c1 = arith.constant 1 : index
    %8 = vector.load %arg2[%c0_4, %c1] : memref<16x2xf32, #tpu.memory_space<vmem>>, vector<16x1xf32>
    %9 = vector.broadcast %4 : vector<1x128xf32> to vector<16x128xf32>
    %10 = arith.mulf %6, %9 : vector<16x128xf32>
    %cst = arith.constant dense<0.000000e+00> : vector<16xf32>
    %11 = vector.multi_reduction <add>, %10, %cst [1] : vector<16x128xf32> to vector<16xf32>
    %12 = vector.shape_cast %11 : vector<16xf32> to vector<16x1xf32>
    %cst_5 = arith.constant dense<0.000000e+00> : vector<1xf32>
    %13 = vector.multi_reduction <add>, %12, %cst_5 [0] : vector<16x1xf32> to vector<1xf32>
    %14 = vector.shape_cast %13 : vector<1xf32> to vector<1x1xf32>
    %15 = arith.mulf %10, %10 : vector<16x128xf32>
    %cst_6 = arith.constant dense<0.000000e+00> : vector<16xf32>
    %16 = vector.multi_reduction <add>, %15, %cst_6 [1] : vector<16x128xf32> to vector<16xf32>
    %17 = vector.shape_cast %16 : vector<16xf32> to vector<16x1xf32>
    %cst_7 = arith.constant dense<0.000000e+00> : vector<1xf32>
    %18 = vector.multi_reduction <add>, %17, %cst_7 [0] : vector<16x1xf32> to vector<1xf32>
    %19 = vector.shape_cast %18 : vector<1xf32> to vector<1x1xf32>
    %cst_8 = arith.constant 3.906250e-03 : f32
    %20 = vector.broadcast %cst_8 : f32 to vector<1x1xf32>
    %21 = arith.mulf %14, %20 : vector<1x1xf32>
    %cst_9 = arith.constant 3.906250e-03 : f32
    %22 = vector.broadcast %cst_9 : f32 to vector<1x1xf32>
    %23 = arith.mulf %19, %22 : vector<1x1xf32>
    %24 = arith.mulf %21, %21 : vector<1x1xf32>
    %25 = arith.subf %23, %24 : vector<1x1xf32>
    %cst_10 = arith.constant 0.000000e+00 : f32
    %26 = vector.broadcast %cst_10 : f32 to vector<1x1xf32>
    %27 = arith.maximumf %25, %26 : vector<1x1xf32>
    %cst_11 = arith.constant 9.99999993E-9 : f32
    %28 = vector.broadcast %cst_11 : f32 to vector<1x1xf32>
    %29 = arith.addf %27, %28 : vector<1x1xf32>
    %30 = math.rsqrt %29 : vector<1x1xf32>
    %31 = vector.broadcast %21 : vector<1x1xf32> to vector<16x128xf32>
    %32 = arith.subf %6, %31 : vector<16x128xf32>
    %33 = vector.broadcast %30 : vector<1x1xf32> to vector<16x128xf32>
    %34 = arith.mulf %32, %33 : vector<16x128xf32>
    %35 = vector.broadcast %7 : vector<16x1xf32> to vector<16x128xf32>
    %36 = arith.mulf %34, %35 : vector<16x128xf32>
    %37 = vector.broadcast %8 : vector<16x1xf32> to vector<16x128xf32>
    %38 = arith.addf %36, %37 : vector<16x128xf32>
    %c0_12 = arith.constant 0 : index
    %c0_13 = arith.constant 0 : index
    %39 = vector.load %arg3[%c0_12, %c0_13] : memref<16x16xf32, #tpu.memory_space<vmem>>, vector<16x16xf32>
    %c0_14 = arith.constant 0 : index
    %c0_15 = arith.constant 0 : index
    %40 = vector.load %arg4[%c0_14, %c0_15] : memref<16x1xf32, #tpu.memory_space<vmem>>, vector<16x1xf32>
    %cst_16 = arith.constant dense<0.000000e+00> : vector<16x128xf32>
    %41 = tpu.matmul %39, %38, %cst_16 {dimension_numbers = #tpu.dot_dimension_numbers<[1], [0], [0], [1], [0, 0, 1, 1], [], []>} : vector<16x16xf32>, vector<16x128xf32>, vector<16x128xf32> -> vector<16x128xf32>
    %42 = vector.broadcast %40 : vector<16x1xf32> to vector<16x128xf32>
    %43 = arith.addf %41, %42 : vector<16x128xf32>
    %cst_17 = arith.constant 0.000000e+00 : f32
    %44 = vector.broadcast %cst_17 : f32 to vector<16x128xf32>
    %c0_18 = arith.constant 0 : index
    %c0_19 = arith.constant 0 : index
    %c0_20 = arith.constant 0 : index
    %45 = vector.load %arg5[%c0_18, %c0_19, %c0_20] : memref<4x32x16xf32, #tpu.memory_space<vmem>>, vector<1x32x16xf32>
    %46 = vector.shape_cast %45 : vector<1x32x16xf32> to vector<32x16xf32>
    %c0_21 = arith.constant 0 : index
    %c0_22 = arith.constant 0 : index
    %c0_23 = arith.constant 0 : index
    %47 = vector.load %arg6[%c0_21, %c0_22, %c0_23] : memref<4x32x9xf32, #tpu.memory_space<vmem>>, vector<1x32x9xf32>
    %48 = vector.shape_cast %47 : vector<1x32x9xf32> to vector<32x9xf32>
    %c0_24 = arith.constant 0 : index
    %c0_25 = arith.constant 0 : index
    %c0_26 = arith.constant 0 : index
    %49 = vector.load %arg7[%c0_24, %c0_25, %c0_26] : memref<4x32x32xf32, #tpu.memory_space<vmem>>, vector<1x32x32xf32>
    %50 = vector.shape_cast %49 : vector<1x32x32xf32> to vector<32x32xf32>
    %c0_27 = arith.constant 0 : index
    %c0_28 = arith.constant 0 : index
    %c0_29 = arith.constant 0 : index
    %51 = vector.load %arg8[%c0_27, %c0_28, %c0_29] : memref<4x32x1xf32, #tpu.memory_space<vmem>>, vector<1x32x1xf32>
    %52 = vector.shape_cast %51 : vector<1x32x1xf32> to vector<32x1xf32>
    %c0_30 = arith.constant 0 : index
    %c0_31 = arith.constant 0 : index
    %53 = memref.load %arg11[%c0_30, %c0_31] : memref<4x2xf32, #tpu.memory_space<smem>>
    %c0_32 = arith.constant 0 : index
    %c1_33 = arith.constant 1 : index
    %54 = memref.load %arg11[%c0_32, %c1_33] : memref<4x2xf32, #tpu.memory_space<smem>>
    %55 = vector.extract_strided_slice %48 {offsets = [0, 0], sizes = [32, 1], strides = [1, 1]} : vector<32x9xf32> to vector<32x1xf32>
    %cst_34 = arith.constant dense<0.000000e+00> : vector<32x128xf32>
    %56 = tpu.matmul %46, %43, %cst_34 {dimension_numbers = #tpu.dot_dimension_numbers<[1], [0], [0], [1], [0, 0, 1, 1], [], []>} : vector<32x16xf32>, vector<16x128xf32>, vector<32x128xf32> -> vector<32x128xf32>
    %57 = vector.broadcast %55 : vector<32x1xf32> to vector<32x128xf32>
    %58 = arith.addf %56, %57 : vector<32x128xf32>
    %cst_35 = arith.constant 0.000000e+00 : f32
    %59 = vector.broadcast %cst_35 : f32 to vector<32x128xf32>
    %60 = arith.cmpf oge, %58, %59 : vector<32x128xf32>
    %61 = vector.broadcast %53 : f32 to vector<32x128xf32>
    %62 = arith.mulf %61, %58 : vector<32x128xf32>
    %63 = arith.select %60, %58, %62 : vector<32x128xi1>, vector<32x128xf32>
    %64 = vector.extract_strided_slice %48 {offsets = [0, 1], sizes = [32, 1], strides = [1, 1]} : vector<32x9xf32> to vector<32x1xf32>
    %65 = vector.extract_strided_slice %48 {offsets = [0, 2], sizes = [32, 1], strides = [1, 1]} : vector<32x9xf32> to vector<32x1xf32>
    %66 = vector.broadcast %4 : vector<1x128xf32> to vector<32x128xf32>
    %67 = arith.mulf %63, %66 : vector<32x128xf32>
    %cst_36 = arith.constant dense<0.000000e+00> : vector<32xf32>
    %68 = vector.multi_reduction <add>, %67, %cst_36 [1] : vector<32x128xf32> to vector<32xf32>
    %69 = vector.shape_cast %68 : vector<32xf32> to vector<32x1xf32>
    %cst_37 = arith.constant dense<0.000000e+00> : vector<1xf32>
    %70 = vector.multi_reduction <add>, %69, %cst_37 [0] : vector<32x1xf32> to vector<1xf32>
    %71 = vector.shape_cast %70 : vector<1xf32> to vector<1x1xf32>
    %72 = arith.mulf %67, %67 : vector<32x128xf32>
    %cst_38 = arith.constant dense<0.000000e+00> : vector<32xf32>
    %73 = vector.multi_reduction <add>, %72, %cst_38 [1] : vector<32x128xf32> to vector<32xf32>
    %74 = vector.shape_cast %73 : vector<32xf32> to vector<32x1xf32>
    %cst_39 = arith.constant dense<0.000000e+00> : vector<1xf32>
    %75 = vector.multi_reduction <add>, %74, %cst_39 [0] : vector<32x1xf32> to vector<1xf32>
    %76 = vector.shape_cast %75 : vector<1xf32> to vector<1x1xf32>
    %cst_40 = arith.constant 0.001953125 : f32
    %77 = vector.broadcast %cst_40 : f32 to vector<1x1xf32>
    %78 = arith.mulf %71, %77 : vector<1x1xf32>
    %cst_41 = arith.constant 0.001953125 : f32
    %79 = vector.broadcast %cst_41 : f32 to vector<1x1xf32>
    %80 = arith.mulf %76, %79 : vector<1x1xf32>
    %81 = arith.mulf %78, %78 : vector<1x1xf32>
    %82 = arith.subf %80, %81 : vector<1x1xf32>
    %cst_42 = arith.constant 0.000000e+00 : f32
    %83 = vector.broadcast %cst_42 : f32 to vector<1x1xf32>
    %84 = arith.maximumf %82, %83 : vector<1x1xf32>
    %cst_43 = arith.constant 9.99999993E-9 : f32
    %85 = vector.broadcast %cst_43 : f32 to vector<1x1xf32>
    %86 = arith.addf %84, %85 : vector<1x1xf32>
    %87 = math.rsqrt %86 : vector<1x1xf32>
    %88 = vector.broadcast %78 : vector<1x1xf32> to vector<32x128xf32>
    %89 = arith.subf %63, %88 : vector<32x128xf32>
    %90 = vector.broadcast %87 : vector<1x1xf32> to vector<32x128xf32>
    %91 = arith.mulf %89, %90 : vector<32x128xf32>
    %92 = vector.broadcast %64 : vector<32x1xf32> to vector<32x128xf32>
    %93 = arith.mulf %91, %92 : vector<32x128xf32>
    %94 = vector.broadcast %65 : vector<32x1xf32> to vector<32x128xf32>
    %95 = arith.addf %93, %94 : vector<32x128xf32>
    %cst_44 = arith.constant 0.000000e+00 : f32
    %96 = vector.broadcast %cst_44 : f32 to vector<32x128xf32>
    %c1_i32 = arith.constant 1 : i32
    %97 = tpu.dynamic_rotate %95 by %c1_i32 dim 1 : vector<32x128xf32>, i32 -> vector<32x128xf32>
    %c-1_i32 = arith.constant -1 : i32
    %98 = vector.broadcast %c-1_i32 : i32 to vector<1x128xi32>
    %99 = arith.addi %0, %98 : vector<1x128xi32>
    %c0_i32 = arith.constant 0 : i32
    %100 = vector.broadcast %c0_i32 : i32 to vector<1x128xi32>
    %101 = arith.cmpi sge, %99, %100 : vector<1x128xi32>
    %c-1_i32_45 = arith.constant -1 : i32
    %102 = vector.broadcast %c-1_i32_45 : i32 to vector<1x128xi32>
    %103 = arith.addi %0, %102 : vector<1x128xi32>
    %c15_i32 = arith.constant 15 : i32
    %104 = vector.broadcast %c15_i32 : i32 to vector<1x128xi32>
    %105 = arith.cmpi sle, %103, %104 : vector<1x128xi32>
    %106 = arith.andi %101, %105 : vector<1x128xi1>
    %cst_46 = arith.constant 0.000000e+00 : f32
    %107 = vector.shape_cast %106 : vector<1x128xi1> to vector<1x128xi1>
    %108 = vector.broadcast %107 : vector<1x128xi1> to vector<32x128xi1>
    %109 = vector.broadcast %cst_46 : f32 to vector<32x128xf32>
    %110 = arith.select %108, %97, %109 : vector<32x128xi1>, vector<32x128xf32>
    %111 = vector.extract_strided_slice %48 {offsets = [0, 6], sizes = [32, 1], strides = [1, 1]} : vector<32x9xf32> to vector<32x1xf32>
    %112 = vector.broadcast %111 : vector<32x1xf32> to vector<32x128xf32>
    %113 = arith.mulf %112, %110 : vector<32x128xf32>
    %114 = arith.addf %96, %113 : vector<32x128xf32>
    %115 = vector.extract_strided_slice %48 {offsets = [0, 7], sizes = [32, 1], strides = [1, 1]} : vector<32x9xf32> to vector<32x1xf32>
    %116 = vector.broadcast %115 : vector<32x1xf32> to vector<32x128xf32>
    %117 = arith.mulf %116, %95 : vector<32x128xf32>
    %118 = arith.addf %114, %117 : vector<32x128xf32>
    %c127_i32 = arith.constant 127 : i32
    %119 = tpu.dynamic_rotate %95 by %c127_i32 dim 1 : vector<32x128xf32>, i32 -> vector<32x128xf32>
    %c1_i32_47 = arith.constant 1 : i32
    %120 = vector.broadcast %c1_i32_47 : i32 to vector<1x128xi32>
    %121 = arith.addi %0, %120 : vector<1x128xi32>
    %c0_i32_48 = arith.constant 0 : i32
    %122 = vector.broadcast %c0_i32_48 : i32 to vector<1x128xi32>
    %123 = arith.cmpi sge, %121, %122 : vector<1x128xi32>
    %c1_i32_49 = arith.constant 1 : i32
    %124 = vector.broadcast %c1_i32_49 : i32 to vector<1x128xi32>
    %125 = arith.addi %0, %124 : vector<1x128xi32>
    %c15_i32_50 = arith.constant 15 : i32
    %126 = vector.broadcast %c15_i32_50 : i32 to vector<1x128xi32>
    %127 = arith.cmpi sle, %125, %126 : vector<1x128xi32>
    %128 = arith.andi %123, %127 : vector<1x128xi1>
    %cst_51 = arith.constant 0.000000e+00 : f32
    %129 = vector.shape_cast %128 : vector<1x128xi1> to vector<1x128xi1>
    %130 = vector.broadcast %129 : vector<1x128xi1> to vector<32x128xi1>
    %131 = vector.broadcast %cst_51 : f32 to vector<32x128xf32>
    %132 = arith.select %130, %119, %131 : vector<32x128xi1>, vector<32x128xf32>
    %133 = vector.extract_strided_slice %48 {offsets = [0, 8], sizes = [32, 1], strides = [1, 1]} : vector<32x9xf32> to vector<32x1xf32>
    %134 = vector.broadcast %133 : vector<32x1xf32> to vector<32x128xf32>
    %135 = arith.mulf %134, %132 : vector<32x128xf32>
    %136 = arith.addf %118, %135 : vector<32x128xf32>
    %137 = vector.extract_strided_slice %48 {offsets = [0, 5], sizes = [32, 1], strides = [1, 1]} : vector<32x9xf32> to vector<32x1xf32>
    %138 = vector.broadcast %137 : vector<32x1xf32> to vector<32x128xf32>
    %139 = arith.addf %136, %138 : vector<32x128xf32>
    %cst_52 = arith.constant 0.000000e+00 : f32
    %140 = vector.broadcast %cst_52 : f32 to vector<32x128xf32>
    %141 = arith.cmpf oge, %139, %140 : vector<32x128xf32>
    %142 = vector.broadcast %54 : f32 to vector<32x128xf32>
    %143 = arith.mulf %142, %139 : vector<32x128xf32>
    %144 = arith.select %141, %139, %143 : vector<32x128xi1>, vector<32x128xf32>
    %145 = vector.extract_strided_slice %48 {offsets = [0, 3], sizes = [32, 1], strides = [1, 1]} : vector<32x9xf32> to vector<32x1xf32>
    %146 = vector.extract_strided_slice %48 {offsets = [0, 4], sizes = [32, 1], strides = [1, 1]} : vector<32x9xf32> to vector<32x1xf32>
    %147 = vector.broadcast %4 : vector<1x128xf32> to vector<32x128xf32>
    %148 = arith.mulf %144, %147 : vector<32x128xf32>
    %cst_53 = arith.constant dense<0.000000e+00> : vector<32xf32>
    %149 = vector.multi_reduction <add>, %148, %cst_53 [1] : vector<32x128xf32> to vector<32xf32>
    %150 = vector.shape_cast %149 : vector<32xf32> to vector<32x1xf32>
    %cst_54 = arith.constant dense<0.000000e+00> : vector<1xf32>
    %151 = vector.multi_reduction <add>, %150, %cst_54 [0] : vector<32x1xf32> to vector<1xf32>
    %152 = vector.shape_cast %151 : vector<1xf32> to vector<1x1xf32>
    %153 = arith.mulf %148, %148 : vector<32x128xf32>
    %cst_55 = arith.constant dense<0.000000e+00> : vector<32xf32>
    %154 = vector.multi_reduction <add>, %153, %cst_55 [1] : vector<32x128xf32> to vector<32xf32>
    %155 = vector.shape_cast %154 : vector<32xf32> to vector<32x1xf32>
    %cst_56 = arith.constant dense<0.000000e+00> : vector<1xf32>
    %156 = vector.multi_reduction <add>, %155, %cst_56 [0] : vector<32x1xf32> to vector<1xf32>
    %157 = vector.shape_cast %156 : vector<1xf32> to vector<1x1xf32>
    %cst_57 = arith.constant 0.001953125 : f32
    %158 = vector.broadcast %cst_57 : f32 to vector<1x1xf32>
    %159 = arith.mulf %152, %158 : vector<1x1xf32>
    %cst_58 = arith.constant 0.001953125 : f32
    %160 = vector.broadcast %cst_58 : f32 to vector<1x1xf32>
    %161 = arith.mulf %157, %160 : vector<1x1xf32>
    %162 = arith.mulf %159, %159 : vector<1x1xf32>
    %163 = arith.subf %161, %162 : vector<1x1xf32>
    %cst_59 = arith.constant 0.000000e+00 : f32
    %164 = vector.broadcast %cst_59 : f32 to vector<1x1xf32>
    %165 = arith.maximumf %163, %164 : vector<1x1xf32>
    %cst_60 = arith.constant 9.99999993E-9 : f32
    %166 = vector.broadcast %cst_60 : f32 to vector<1x1xf32>
    %167 = arith.addf %165, %166 : vector<1x1xf32>
    %168 = math.rsqrt %167 : vector<1x1xf32>
    %169 = vector.broadcast %159 : vector<1x1xf32> to vector<32x128xf32>
    %170 = arith.subf %144, %169 : vector<32x128xf32>
    %171 = vector.broadcast %168 : vector<1x1xf32> to vector<32x128xf32>
    %172 = arith.mulf %170, %171 : vector<32x128xf32>
    %173 = vector.broadcast %145 : vector<32x1xf32> to vector<32x128xf32>
    %174 = arith.mulf %172, %173 : vector<32x128xf32>
    %175 = vector.broadcast %146 : vector<32x1xf32> to vector<32x128xf32>
    %176 = arith.addf %174, %175 : vector<32x128xf32>
    %cst_61 = arith.constant dense<0.000000e+00> : vector<32x128xf32>
    %177 = tpu.matmul %50, %176, %cst_61 {dimension_numbers = #tpu.dot_dimension_numbers<[1], [0], [0], [1], [0, 0, 1, 1], [], []>} : vector<32x32xf32>, vector<32x128xf32>, vector<32x128xf32> -> vector<32x128xf32>
    %178 = vector.broadcast %52 : vector<32x1xf32> to vector<32x128xf32>
    %179 = arith.addf %177, %178 : vector<32x128xf32>
    %180 = vector.extract_strided_slice %179 {offsets = [0, 0], sizes = [16, 128], strides = [1, 1]} : vector<32x128xf32> to vector<16x128xf32>
    %181 = arith.addf %43, %180 : vector<16x128xf32>
    %182 = vector.extract_strided_slice %179 {offsets = [16, 0], sizes = [16, 128], strides = [1, 1]} : vector<32x128xf32> to vector<16x128xf32>
    %183 = arith.addf %44, %182 : vector<16x128xf32>
    %c1_62 = arith.constant 1 : index
    %c0_63 = arith.constant 0 : index
    %c0_64 = arith.constant 0 : index
    %184 = vector.load %arg5[%c1_62, %c0_63, %c0_64] : memref<4x32x16xf32, #tpu.memory_space<vmem>>, vector<1x32x16xf32>
    %185 = vector.shape_cast %184 : vector<1x32x16xf32> to vector<32x16xf32>
    %c1_65 = arith.constant 1 : index
    %c0_66 = arith.constant 0 : index
    %c0_67 = arith.constant 0 : index
    %186 = vector.load %arg6[%c1_65, %c0_66, %c0_67] : memref<4x32x9xf32, #tpu.memory_space<vmem>>, vector<1x32x9xf32>
    %187 = vector.shape_cast %186 : vector<1x32x9xf32> to vector<32x9xf32>
    %c1_68 = arith.constant 1 : index
    %c0_69 = arith.constant 0 : index
    %c0_70 = arith.constant 0 : index
    %188 = vector.load %arg7[%c1_68, %c0_69, %c0_70] : memref<4x32x32xf32, #tpu.memory_space<vmem>>, vector<1x32x32xf32>
    %189 = vector.shape_cast %188 : vector<1x32x32xf32> to vector<32x32xf32>
    %c1_71 = arith.constant 1 : index
    %c0_72 = arith.constant 0 : index
    %c0_73 = arith.constant 0 : index
    %190 = vector.load %arg8[%c1_71, %c0_72, %c0_73] : memref<4x32x1xf32, #tpu.memory_space<vmem>>, vector<1x32x1xf32>
    %191 = vector.shape_cast %190 : vector<1x32x1xf32> to vector<32x1xf32>
    %c1_74 = arith.constant 1 : index
    %c0_75 = arith.constant 0 : index
    %192 = memref.load %arg11[%c1_74, %c0_75] : memref<4x2xf32, #tpu.memory_space<smem>>
    %c1_76 = arith.constant 1 : index
    %c1_77 = arith.constant 1 : index
    %193 = memref.load %arg11[%c1_76, %c1_77] : memref<4x2xf32, #tpu.memory_space<smem>>
    %194 = vector.extract_strided_slice %187 {offsets = [0, 0], sizes = [32, 1], strides = [1, 1]} : vector<32x9xf32> to vector<32x1xf32>
    %cst_78 = arith.constant dense<0.000000e+00> : vector<32x128xf32>
    %195 = tpu.matmul %185, %181, %cst_78 {dimension_numbers = #tpu.dot_dimension_numbers<[1], [0], [0], [1], [0, 0, 1, 1], [], []>} : vector<32x16xf32>, vector<16x128xf32>, vector<32x128xf32> -> vector<32x128xf32>
    %196 = vector.broadcast %194 : vector<32x1xf32> to vector<32x128xf32>
    %197 = arith.addf %195, %196 : vector<32x128xf32>
    %cst_79 = arith.constant 0.000000e+00 : f32
    %198 = vector.broadcast %cst_79 : f32 to vector<32x128xf32>
    %199 = arith.cmpf oge, %197, %198 : vector<32x128xf32>
    %200 = vector.broadcast %192 : f32 to vector<32x128xf32>
    %201 = arith.mulf %200, %197 : vector<32x128xf32>
    %202 = arith.select %199, %197, %201 : vector<32x128xi1>, vector<32x128xf32>
    %203 = vector.extract_strided_slice %187 {offsets = [0, 1], sizes = [32, 1], strides = [1, 1]} : vector<32x9xf32> to vector<32x1xf32>
    %204 = vector.extract_strided_slice %187 {offsets = [0, 2], sizes = [32, 1], strides = [1, 1]} : vector<32x9xf32> to vector<32x1xf32>
    %205 = vector.broadcast %4 : vector<1x128xf32> to vector<32x128xf32>
    %206 = arith.mulf %202, %205 : vector<32x128xf32>
    %cst_80 = arith.constant dense<0.000000e+00> : vector<32xf32>
    %207 = vector.multi_reduction <add>, %206, %cst_80 [1] : vector<32x128xf32> to vector<32xf32>
    %208 = vector.shape_cast %207 : vector<32xf32> to vector<32x1xf32>
    %cst_81 = arith.constant dense<0.000000e+00> : vector<1xf32>
    %209 = vector.multi_reduction <add>, %208, %cst_81 [0] : vector<32x1xf32> to vector<1xf32>
    %210 = vector.shape_cast %209 : vector<1xf32> to vector<1x1xf32>
    %211 = arith.mulf %206, %206 : vector<32x128xf32>
    %cst_82 = arith.constant dense<0.000000e+00> : vector<32xf32>
    %212 = vector.multi_reduction <add>, %211, %cst_82 [1] : vector<32x128xf32> to vector<32xf32>
    %213 = vector.shape_cast %212 : vector<32xf32> to vector<32x1xf32>
    %cst_83 = arith.constant dense<0.000000e+00> : vector<1xf32>
    %214 = vector.multi_reduction <add>, %213, %cst_83 [0] : vector<32x1xf32> to vector<1xf32>
    %215 = vector.shape_cast %214 : vector<1xf32> to vector<1x1xf32>
    %cst_84 = arith.constant 0.001953125 : f32
    %216 = vector.broadcast %cst_84 : f32 to vector<1x1xf32>
    %217 = arith.mulf %210, %216 : vector<1x1xf32>
    %cst_85 = arith.constant 0.001953125 : f32
    %218 = vector.broadcast %cst_85 : f32 to vector<1x1xf32>
    %219 = arith.mulf %215, %218 : vector<1x1xf32>
    %220 = arith.mulf %217, %217 : vector<1x1xf32>
    %221 = arith.subf %219, %220 : vector<1x1xf32>
    %cst_86 = arith.constant 0.000000e+00 : f32
    %222 = vector.broadcast %cst_86 : f32 to vector<1x1xf32>
    %223 = arith.maximumf %221, %222 : vector<1x1xf32>
    %cst_87 = arith.constant 9.99999993E-9 : f32
    %224 = vector.broadcast %cst_87 : f32 to vector<1x1xf32>
    %225 = arith.addf %223, %224 : vector<1x1xf32>
    %226 = math.rsqrt %225 : vector<1x1xf32>
    %227 = vector.broadcast %217 : vector<1x1xf32> to vector<32x128xf32>
    %228 = arith.subf %202, %227 : vector<32x128xf32>
    %229 = vector.broadcast %226 : vector<1x1xf32> to vector<32x128xf32>
    %230 = arith.mulf %228, %229 : vector<32x128xf32>
    %231 = vector.broadcast %203 : vector<32x1xf32> to vector<32x128xf32>
    %232 = arith.mulf %230, %231 : vector<32x128xf32>
    %233 = vector.broadcast %204 : vector<32x1xf32> to vector<32x128xf32>
    %234 = arith.addf %232, %233 : vector<32x128xf32>
    %cst_88 = arith.constant 0.000000e+00 : f32
    %235 = vector.broadcast %cst_88 : f32 to vector<32x128xf32>
    %c2_i32 = arith.constant 2 : i32
    %236 = tpu.dynamic_rotate %234 by %c2_i32 dim 1 : vector<32x128xf32>, i32 -> vector<32x128xf32>
    %c-2_i32 = arith.constant -2 : i32
    %237 = vector.broadcast %c-2_i32 : i32 to vector<1x128xi32>
    %238 = arith.addi %0, %237 : vector<1x128xi32>
    %c0_i32_89 = arith.constant 0 : i32
    %239 = vector.broadcast %c0_i32_89 : i32 to vector<1x128xi32>
    %240 = arith.cmpi sge, %238, %239 : vector<1x128xi32>
    %c-2_i32_90 = arith.constant -2 : i32
    %241 = vector.broadcast %c-2_i32_90 : i32 to vector<1x128xi32>
    %242 = arith.addi %0, %241 : vector<1x128xi32>
    %c15_i32_91 = arith.constant 15 : i32
    %243 = vector.broadcast %c15_i32_91 : i32 to vector<1x128xi32>
    %244 = arith.cmpi sle, %242, %243 : vector<1x128xi32>
    %245 = arith.andi %240, %244 : vector<1x128xi1>
    %cst_92 = arith.constant 0.000000e+00 : f32
    %246 = vector.shape_cast %245 : vector<1x128xi1> to vector<1x128xi1>
    %247 = vector.broadcast %246 : vector<1x128xi1> to vector<32x128xi1>
    %248 = vector.broadcast %cst_92 : f32 to vector<32x128xf32>
    %249 = arith.select %247, %236, %248 : vector<32x128xi1>, vector<32x128xf32>
    %250 = vector.extract_strided_slice %187 {offsets = [0, 6], sizes = [32, 1], strides = [1, 1]} : vector<32x9xf32> to vector<32x1xf32>
    %251 = vector.broadcast %250 : vector<32x1xf32> to vector<32x128xf32>
    %252 = arith.mulf %251, %249 : vector<32x128xf32>
    %253 = arith.addf %235, %252 : vector<32x128xf32>
    %254 = vector.extract_strided_slice %187 {offsets = [0, 7], sizes = [32, 1], strides = [1, 1]} : vector<32x9xf32> to vector<32x1xf32>
    %255 = vector.broadcast %254 : vector<32x1xf32> to vector<32x128xf32>
    %256 = arith.mulf %255, %234 : vector<32x128xf32>
    %257 = arith.addf %253, %256 : vector<32x128xf32>
    %c126_i32 = arith.constant 126 : i32
    %258 = tpu.dynamic_rotate %234 by %c126_i32 dim 1 : vector<32x128xf32>, i32 -> vector<32x128xf32>
    %c2_i32_93 = arith.constant 2 : i32
    %259 = vector.broadcast %c2_i32_93 : i32 to vector<1x128xi32>
    %260 = arith.addi %0, %259 : vector<1x128xi32>
    %c0_i32_94 = arith.constant 0 : i32
    %261 = vector.broadcast %c0_i32_94 : i32 to vector<1x128xi32>
    %262 = arith.cmpi sge, %260, %261 : vector<1x128xi32>
    %c2_i32_95 = arith.constant 2 : i32
    %263 = vector.broadcast %c2_i32_95 : i32 to vector<1x128xi32>
    %264 = arith.addi %0, %263 : vector<1x128xi32>
    %c15_i32_96 = arith.constant 15 : i32
    %265 = vector.broadcast %c15_i32_96 : i32 to vector<1x128xi32>
    %266 = arith.cmpi sle, %264, %265 : vector<1x128xi32>
    %267 = arith.andi %262, %266 : vector<1x128xi1>
    %cst_97 = arith.constant 0.000000e+00 : f32
    %268 = vector.shape_cast %267 : vector<1x128xi1> to vector<1x128xi1>
    %269 = vector.broadcast %268 : vector<1x128xi1> to vector<32x128xi1>
    %270 = vector.broadcast %cst_97 : f32 to vector<32x128xf32>
    %271 = arith.select %269, %258, %270 : vector<32x128xi1>, vector<32x128xf32>
    %272 = vector.extract_strided_slice %187 {offsets = [0, 8], sizes = [32, 1], strides = [1, 1]} : vector<32x9xf32> to vector<32x1xf32>
    %273 = vector.broadcast %272 : vector<32x1xf32> to vector<32x128xf32>
    %274 = arith.mulf %273, %271 : vector<32x128xf32>
    %275 = arith.addf %257, %274 : vector<32x128xf32>
    %276 = vector.extract_strided_slice %187 {offsets = [0, 5], sizes = [32, 1], strides = [1, 1]} : vector<32x9xf32> to vector<32x1xf32>
    %277 = vector.broadcast %276 : vector<32x1xf32> to vector<32x128xf32>
    %278 = arith.addf %275, %277 : vector<32x128xf32>
    %cst_98 = arith.constant 0.000000e+00 : f32
    %279 = vector.broadcast %cst_98 : f32 to vector<32x128xf32>
    %280 = arith.cmpf oge, %278, %279 : vector<32x128xf32>
    %281 = vector.broadcast %193 : f32 to vector<32x128xf32>
    %282 = arith.mulf %281, %278 : vector<32x128xf32>
    %283 = arith.select %280, %278, %282 : vector<32x128xi1>, vector<32x128xf32>
    %284 = vector.extract_strided_slice %187 {offsets = [0, 3], sizes = [32, 1], strides = [1, 1]} : vector<32x9xf32> to vector<32x1xf32>
    %285 = vector.extract_strided_slice %187 {offsets = [0, 4], sizes = [32, 1], strides = [1, 1]} : vector<32x9xf32> to vector<32x1xf32>
    %286 = vector.broadcast %4 : vector<1x128xf32> to vector<32x128xf32>
    %287 = arith.mulf %283, %286 : vector<32x128xf32>
    %cst_99 = arith.constant dense<0.000000e+00> : vector<32xf32>
    %288 = vector.multi_reduction <add>, %287, %cst_99 [1] : vector<32x128xf32> to vector<32xf32>
    %289 = vector.shape_cast %288 : vector<32xf32> to vector<32x1xf32>
    %cst_100 = arith.constant dense<0.000000e+00> : vector<1xf32>
    %290 = vector.multi_reduction <add>, %289, %cst_100 [0] : vector<32x1xf32> to vector<1xf32>
    %291 = vector.shape_cast %290 : vector<1xf32> to vector<1x1xf32>
    %292 = arith.mulf %287, %287 : vector<32x128xf32>
    %cst_101 = arith.constant dense<0.000000e+00> : vector<32xf32>
    %293 = vector.multi_reduction <add>, %292, %cst_101 [1] : vector<32x128xf32> to vector<32xf32>
    %294 = vector.shape_cast %293 : vector<32xf32> to vector<32x1xf32>
    %cst_102 = arith.constant dense<0.000000e+00> : vector<1xf32>
    %295 = vector.multi_reduction <add>, %294, %cst_102 [0] : vector<32x1xf32> to vector<1xf32>
    %296 = vector.shape_cast %295 : vector<1xf32> to vector<1x1xf32>
    %cst_103 = arith.constant 0.001953125 : f32
    %297 = vector.broadcast %cst_103 : f32 to vector<1x1xf32>
    %298 = arith.mulf %291, %297 : vector<1x1xf32>
    %cst_104 = arith.constant 0.001953125 : f32
    %299 = vector.broadcast %cst_104 : f32 to vector<1x1xf32>
    %300 = arith.mulf %296, %299 : vector<1x1xf32>
    %301 = arith.mulf %298, %298 : vector<1x1xf32>
    %302 = arith.subf %300, %301 : vector<1x1xf32>
    %cst_105 = arith.constant 0.000000e+00 : f32
    %303 = vector.broadcast %cst_105 : f32 to vector<1x1xf32>
    %304 = arith.maximumf %302, %303 : vector<1x1xf32>
    %cst_106 = arith.constant 9.99999993E-9 : f32
    %305 = vector.broadcast %cst_106 : f32 to vector<1x1xf32>
    %306 = arith.addf %304, %305 : vector<1x1xf32>
    %307 = math.rsqrt %306 : vector<1x1xf32>
    %308 = vector.broadcast %298 : vector<1x1xf32> to vector<32x128xf32>
    %309 = arith.subf %283, %308 : vector<32x128xf32>
    %310 = vector.broadcast %307 : vector<1x1xf32> to vector<32x128xf32>
    %311 = arith.mulf %309, %310 : vector<32x128xf32>
    %312 = vector.broadcast %284 : vector<32x1xf32> to vector<32x128xf32>
    %313 = arith.mulf %311, %312 : vector<32x128xf32>
    %314 = vector.broadcast %285 : vector<32x1xf32> to vector<32x128xf32>
    %315 = arith.addf %313, %314 : vector<32x128xf32>
    %cst_107 = arith.constant dense<0.000000e+00> : vector<32x128xf32>
    %316 = tpu.matmul %189, %315, %cst_107 {dimension_numbers = #tpu.dot_dimension_numbers<[1], [0], [0], [1], [0, 0, 1, 1], [], []>} : vector<32x32xf32>, vector<32x128xf32>, vector<32x128xf32> -> vector<32x128xf32>
    %317 = vector.broadcast %191 : vector<32x1xf32> to vector<32x128xf32>
    %318 = arith.addf %316, %317 : vector<32x128xf32>
    %319 = vector.extract_strided_slice %318 {offsets = [0, 0], sizes = [16, 128], strides = [1, 1]} : vector<32x128xf32> to vector<16x128xf32>
    %320 = arith.addf %181, %319 : vector<16x128xf32>
    %321 = vector.extract_strided_slice %318 {offsets = [16, 0], sizes = [16, 128], strides = [1, 1]} : vector<32x128xf32> to vector<16x128xf32>
    %322 = arith.addf %183, %321 : vector<16x128xf32>
    %c2 = arith.constant 2 : index
    %c0_108 = arith.constant 0 : index
    %c0_109 = arith.constant 0 : index
    %323 = vector.load %arg5[%c2, %c0_108, %c0_109] : memref<4x32x16xf32, #tpu.memory_space<vmem>>, vector<1x32x16xf32>
    %324 = vector.shape_cast %323 : vector<1x32x16xf32> to vector<32x16xf32>
    %c2_110 = arith.constant 2 : index
    %c0_111 = arith.constant 0 : index
    %c0_112 = arith.constant 0 : index
    %325 = vector.load %arg6[%c2_110, %c0_111, %c0_112] : memref<4x32x9xf32, #tpu.memory_space<vmem>>, vector<1x32x9xf32>
    %326 = vector.shape_cast %325 : vector<1x32x9xf32> to vector<32x9xf32>
    %c2_113 = arith.constant 2 : index
    %c0_114 = arith.constant 0 : index
    %c0_115 = arith.constant 0 : index
    %327 = vector.load %arg7[%c2_113, %c0_114, %c0_115] : memref<4x32x32xf32, #tpu.memory_space<vmem>>, vector<1x32x32xf32>
    %328 = vector.shape_cast %327 : vector<1x32x32xf32> to vector<32x32xf32>
    %c2_116 = arith.constant 2 : index
    %c0_117 = arith.constant 0 : index
    %c0_118 = arith.constant 0 : index
    %329 = vector.load %arg8[%c2_116, %c0_117, %c0_118] : memref<4x32x1xf32, #tpu.memory_space<vmem>>, vector<1x32x1xf32>
    %330 = vector.shape_cast %329 : vector<1x32x1xf32> to vector<32x1xf32>
    %c2_119 = arith.constant 2 : index
    %c0_120 = arith.constant 0 : index
    %331 = memref.load %arg11[%c2_119, %c0_120] : memref<4x2xf32, #tpu.memory_space<smem>>
    %c2_121 = arith.constant 2 : index
    %c1_122 = arith.constant 1 : index
    %332 = memref.load %arg11[%c2_121, %c1_122] : memref<4x2xf32, #tpu.memory_space<smem>>
    %333 = vector.extract_strided_slice %326 {offsets = [0, 0], sizes = [32, 1], strides = [1, 1]} : vector<32x9xf32> to vector<32x1xf32>
    %cst_123 = arith.constant dense<0.000000e+00> : vector<32x128xf32>
    %334 = tpu.matmul %324, %320, %cst_123 {dimension_numbers = #tpu.dot_dimension_numbers<[1], [0], [0], [1], [0, 0, 1, 1], [], []>} : vector<32x16xf32>, vector<16x128xf32>, vector<32x128xf32> -> vector<32x128xf32>
    %335 = vector.broadcast %333 : vector<32x1xf32> to vector<32x128xf32>
    %336 = arith.addf %334, %335 : vector<32x128xf32>
    %cst_124 = arith.constant 0.000000e+00 : f32
    %337 = vector.broadcast %cst_124 : f32 to vector<32x128xf32>
    %338 = arith.cmpf oge, %336, %337 : vector<32x128xf32>
    %339 = vector.broadcast %331 : f32 to vector<32x128xf32>
    %340 = arith.mulf %339, %336 : vector<32x128xf32>
    %341 = arith.select %338, %336, %340 : vector<32x128xi1>, vector<32x128xf32>
    %342 = vector.extract_strided_slice %326 {offsets = [0, 1], sizes = [32, 1], strides = [1, 1]} : vector<32x9xf32> to vector<32x1xf32>
    %343 = vector.extract_strided_slice %326 {offsets = [0, 2], sizes = [32, 1], strides = [1, 1]} : vector<32x9xf32> to vector<32x1xf32>
    %344 = vector.broadcast %4 : vector<1x128xf32> to vector<32x128xf32>
    %345 = arith.mulf %341, %344 : vector<32x128xf32>
    %cst_125 = arith.constant dense<0.000000e+00> : vector<32xf32>
    %346 = vector.multi_reduction <add>, %345, %cst_125 [1] : vector<32x128xf32> to vector<32xf32>
    %347 = vector.shape_cast %346 : vector<32xf32> to vector<32x1xf32>
    %cst_126 = arith.constant dense<0.000000e+00> : vector<1xf32>
    %348 = vector.multi_reduction <add>, %347, %cst_126 [0] : vector<32x1xf32> to vector<1xf32>
    %349 = vector.shape_cast %348 : vector<1xf32> to vector<1x1xf32>
    %350 = arith.mulf %345, %345 : vector<32x128xf32>
    %cst_127 = arith.constant dense<0.000000e+00> : vector<32xf32>
    %351 = vector.multi_reduction <add>, %350, %cst_127 [1] : vector<32x128xf32> to vector<32xf32>
    %352 = vector.shape_cast %351 : vector<32xf32> to vector<32x1xf32>
    %cst_128 = arith.constant dense<0.000000e+00> : vector<1xf32>
    %353 = vector.multi_reduction <add>, %352, %cst_128 [0] : vector<32x1xf32> to vector<1xf32>
    %354 = vector.shape_cast %353 : vector<1xf32> to vector<1x1xf32>
    %cst_129 = arith.constant 0.001953125 : f32
    %355 = vector.broadcast %cst_129 : f32 to vector<1x1xf32>
    %356 = arith.mulf %349, %355 : vector<1x1xf32>
    %cst_130 = arith.constant 0.001953125 : f32
    %357 = vector.broadcast %cst_130 : f32 to vector<1x1xf32>
    %358 = arith.mulf %354, %357 : vector<1x1xf32>
    %359 = arith.mulf %356, %356 : vector<1x1xf32>
    %360 = arith.subf %358, %359 : vector<1x1xf32>
    %cst_131 = arith.constant 0.000000e+00 : f32
    %361 = vector.broadcast %cst_131 : f32 to vector<1x1xf32>
    %362 = arith.maximumf %360, %361 : vector<1x1xf32>
    %cst_132 = arith.constant 9.99999993E-9 : f32
    %363 = vector.broadcast %cst_132 : f32 to vector<1x1xf32>
    %364 = arith.addf %362, %363 : vector<1x1xf32>
    %365 = math.rsqrt %364 : vector<1x1xf32>
    %366 = vector.broadcast %356 : vector<1x1xf32> to vector<32x128xf32>
    %367 = arith.subf %341, %366 : vector<32x128xf32>
    %368 = vector.broadcast %365 : vector<1x1xf32> to vector<32x128xf32>
    %369 = arith.mulf %367, %368 : vector<32x128xf32>
    %370 = vector.broadcast %342 : vector<32x1xf32> to vector<32x128xf32>
    %371 = arith.mulf %369, %370 : vector<32x128xf32>
    %372 = vector.broadcast %343 : vector<32x1xf32> to vector<32x128xf32>
    %373 = arith.addf %371, %372 : vector<32x128xf32>
    %cst_133 = arith.constant 0.000000e+00 : f32
    %374 = vector.broadcast %cst_133 : f32 to vector<32x128xf32>
    %c1_i32_134 = arith.constant 1 : i32
    %375 = tpu.dynamic_rotate %373 by %c1_i32_134 dim 1 : vector<32x128xf32>, i32 -> vector<32x128xf32>
    %c-1_i32_135 = arith.constant -1 : i32
    %376 = vector.broadcast %c-1_i32_135 : i32 to vector<1x128xi32>
    %377 = arith.addi %0, %376 : vector<1x128xi32>
    %c0_i32_136 = arith.constant 0 : i32
    %378 = vector.broadcast %c0_i32_136 : i32 to vector<1x128xi32>
    %379 = arith.cmpi sge, %377, %378 : vector<1x128xi32>
    %c-1_i32_137 = arith.constant -1 : i32
    %380 = vector.broadcast %c-1_i32_137 : i32 to vector<1x128xi32>
    %381 = arith.addi %0, %380 : vector<1x128xi32>
    %c15_i32_138 = arith.constant 15 : i32
    %382 = vector.broadcast %c15_i32_138 : i32 to vector<1x128xi32>
    %383 = arith.cmpi sle, %381, %382 : vector<1x128xi32>
    %384 = arith.andi %379, %383 : vector<1x128xi1>
    %cst_139 = arith.constant 0.000000e+00 : f32
    %385 = vector.shape_cast %384 : vector<1x128xi1> to vector<1x128xi1>
    %386 = vector.broadcast %385 : vector<1x128xi1> to vector<32x128xi1>
    %387 = vector.broadcast %cst_139 : f32 to vector<32x128xf32>
    %388 = arith.select %386, %375, %387 : vector<32x128xi1>, vector<32x128xf32>
    %389 = vector.extract_strided_slice %326 {offsets = [0, 6], sizes = [32, 1], strides = [1, 1]} : vector<32x9xf32> to vector<32x1xf32>
    %390 = vector.broadcast %389 : vector<32x1xf32> to vector<32x128xf32>
    %391 = arith.mulf %390, %388 : vector<32x128xf32>
    %392 = arith.addf %374, %391 : vector<32x128xf32>
    %393 = vector.extract_strided_slice %326 {offsets = [0, 7], sizes = [32, 1], strides = [1, 1]} : vector<32x9xf32> to vector<32x1xf32>
    %394 = vector.broadcast %393 : vector<32x1xf32> to vector<32x128xf32>
    %395 = arith.mulf %394, %373 : vector<32x128xf32>
    %396 = arith.addf %392, %395 : vector<32x128xf32>
    %c127_i32_140 = arith.constant 127 : i32
    %397 = tpu.dynamic_rotate %373 by %c127_i32_140 dim 1 : vector<32x128xf32>, i32 -> vector<32x128xf32>
    %c1_i32_141 = arith.constant 1 : i32
    %398 = vector.broadcast %c1_i32_141 : i32 to vector<1x128xi32>
    %399 = arith.addi %0, %398 : vector<1x128xi32>
    %c0_i32_142 = arith.constant 0 : i32
    %400 = vector.broadcast %c0_i32_142 : i32 to vector<1x128xi32>
    %401 = arith.cmpi sge, %399, %400 : vector<1x128xi32>
    %c1_i32_143 = arith.constant 1 : i32
    %402 = vector.broadcast %c1_i32_143 : i32 to vector<1x128xi32>
    %403 = arith.addi %0, %402 : vector<1x128xi32>
    %c15_i32_144 = arith.constant 15 : i32
    %404 = vector.broadcast %c15_i32_144 : i32 to vector<1x128xi32>
    %405 = arith.cmpi sle, %403, %404 : vector<1x128xi32>
    %406 = arith.andi %401, %405 : vector<1x128xi1>
    %cst_145 = arith.constant 0.000000e+00 : f32
    %407 = vector.shape_cast %406 : vector<1x128xi1> to vector<1x128xi1>
    %408 = vector.broadcast %407 : vector<1x128xi1> to vector<32x128xi1>
    %409 = vector.broadcast %cst_145 : f32 to vector<32x128xf32>
    %410 = arith.select %408, %397, %409 : vector<32x128xi1>, vector<32x128xf32>
    %411 = vector.extract_strided_slice %326 {offsets = [0, 8], sizes = [32, 1], strides = [1, 1]} : vector<32x9xf32> to vector<32x1xf32>
    %412 = vector.broadcast %411 : vector<32x1xf32> to vector<32x128xf32>
    %413 = arith.mulf %412, %410 : vector<32x128xf32>
    %414 = arith.addf %396, %413 : vector<32x128xf32>
    %415 = vector.extract_strided_slice %326 {offsets = [0, 5], sizes = [32, 1], strides = [1, 1]} : vector<32x9xf32> to vector<32x1xf32>
    %416 = vector.broadcast %415 : vector<32x1xf32> to vector<32x128xf32>
    %417 = arith.addf %414, %416 : vector<32x128xf32>
    %cst_146 = arith.constant 0.000000e+00 : f32
    %418 = vector.broadcast %cst_146 : f32 to vector<32x128xf32>
    %419 = arith.cmpf oge, %417, %418 : vector<32x128xf32>
    %420 = vector.broadcast %332 : f32 to vector<32x128xf32>
    %421 = arith.mulf %420, %417 : vector<32x128xf32>
    %422 = arith.select %419, %417, %421 : vector<32x128xi1>, vector<32x128xf32>
    %423 = vector.extract_strided_slice %326 {offsets = [0, 3], sizes = [32, 1], strides = [1, 1]} : vector<32x9xf32> to vector<32x1xf32>
    %424 = vector.extract_strided_slice %326 {offsets = [0, 4], sizes = [32, 1], strides = [1, 1]} : vector<32x9xf32> to vector<32x1xf32>
    %425 = vector.broadcast %4 : vector<1x128xf32> to vector<32x128xf32>
    %426 = arith.mulf %422, %425 : vector<32x128xf32>
    %cst_147 = arith.constant dense<0.000000e+00> : vector<32xf32>
    %427 = vector.multi_reduction <add>, %426, %cst_147 [1] : vector<32x128xf32> to vector<32xf32>
    %428 = vector.shape_cast %427 : vector<32xf32> to vector<32x1xf32>
    %cst_148 = arith.constant dense<0.000000e+00> : vector<1xf32>
    %429 = vector.multi_reduction <add>, %428, %cst_148 [0] : vector<32x1xf32> to vector<1xf32>
    %430 = vector.shape_cast %429 : vector<1xf32> to vector<1x1xf32>
    %431 = arith.mulf %426, %426 : vector<32x128xf32>
    %cst_149 = arith.constant dense<0.000000e+00> : vector<32xf32>
    %432 = vector.multi_reduction <add>, %431, %cst_149 [1] : vector<32x128xf32> to vector<32xf32>
    %433 = vector.shape_cast %432 : vector<32xf32> to vector<32x1xf32>
    %cst_150 = arith.constant dense<0.000000e+00> : vector<1xf32>
    %434 = vector.multi_reduction <add>, %433, %cst_150 [0] : vector<32x1xf32> to vector<1xf32>
    %435 = vector.shape_cast %434 : vector<1xf32> to vector<1x1xf32>
    %cst_151 = arith.constant 0.001953125 : f32
    %436 = vector.broadcast %cst_151 : f32 to vector<1x1xf32>
    %437 = arith.mulf %430, %436 : vector<1x1xf32>
    %cst_152 = arith.constant 0.001953125 : f32
    %438 = vector.broadcast %cst_152 : f32 to vector<1x1xf32>
    %439 = arith.mulf %435, %438 : vector<1x1xf32>
    %440 = arith.mulf %437, %437 : vector<1x1xf32>
    %441 = arith.subf %439, %440 : vector<1x1xf32>
    %cst_153 = arith.constant 0.000000e+00 : f32
    %442 = vector.broadcast %cst_153 : f32 to vector<1x1xf32>
    %443 = arith.maximumf %441, %442 : vector<1x1xf32>
    %cst_154 = arith.constant 9.99999993E-9 : f32
    %444 = vector.broadcast %cst_154 : f32 to vector<1x1xf32>
    %445 = arith.addf %443, %444 : vector<1x1xf32>
    %446 = math.rsqrt %445 : vector<1x1xf32>
    %447 = vector.broadcast %437 : vector<1x1xf32> to vector<32x128xf32>
    %448 = arith.subf %422, %447 : vector<32x128xf32>
    %449 = vector.broadcast %446 : vector<1x1xf32> to vector<32x128xf32>
    %450 = arith.mulf %448, %449 : vector<32x128xf32>
    %451 = vector.broadcast %423 : vector<32x1xf32> to vector<32x128xf32>
    %452 = arith.mulf %450, %451 : vector<32x128xf32>
    %453 = vector.broadcast %424 : vector<32x1xf32> to vector<32x128xf32>
    %454 = arith.addf %452, %453 : vector<32x128xf32>
    %cst_155 = arith.constant dense<0.000000e+00> : vector<32x128xf32>
    %455 = tpu.matmul %328, %454, %cst_155 {dimension_numbers = #tpu.dot_dimension_numbers<[1], [0], [0], [1], [0, 0, 1, 1], [], []>} : vector<32x32xf32>, vector<32x128xf32>, vector<32x128xf32> -> vector<32x128xf32>
    %456 = vector.broadcast %330 : vector<32x1xf32> to vector<32x128xf32>
    %457 = arith.addf %455, %456 : vector<32x128xf32>
    %458 = vector.extract_strided_slice %457 {offsets = [0, 0], sizes = [16, 128], strides = [1, 1]} : vector<32x128xf32> to vector<16x128xf32>
    %459 = arith.addf %320, %458 : vector<16x128xf32>
    %460 = vector.extract_strided_slice %457 {offsets = [16, 0], sizes = [16, 128], strides = [1, 1]} : vector<32x128xf32> to vector<16x128xf32>
    %461 = arith.addf %322, %460 : vector<16x128xf32>
    %c3 = arith.constant 3 : index
    %c0_156 = arith.constant 0 : index
    %c0_157 = arith.constant 0 : index
    %462 = vector.load %arg5[%c3, %c0_156, %c0_157] : memref<4x32x16xf32, #tpu.memory_space<vmem>>, vector<1x32x16xf32>
    %463 = vector.shape_cast %462 : vector<1x32x16xf32> to vector<32x16xf32>
    %c3_158 = arith.constant 3 : index
    %c0_159 = arith.constant 0 : index
    %c0_160 = arith.constant 0 : index
    %464 = vector.load %arg6[%c3_158, %c0_159, %c0_160] : memref<4x32x9xf32, #tpu.memory_space<vmem>>, vector<1x32x9xf32>
    %465 = vector.shape_cast %464 : vector<1x32x9xf32> to vector<32x9xf32>
    %c3_161 = arith.constant 3 : index
    %c0_162 = arith.constant 0 : index
    %c0_163 = arith.constant 0 : index
    %466 = vector.load %arg7[%c3_161, %c0_162, %c0_163] : memref<4x32x32xf32, #tpu.memory_space<vmem>>, vector<1x32x32xf32>
    %467 = vector.shape_cast %466 : vector<1x32x32xf32> to vector<32x32xf32>
    %c3_164 = arith.constant 3 : index
    %c0_165 = arith.constant 0 : index
    %c0_166 = arith.constant 0 : index
    %468 = vector.load %arg8[%c3_164, %c0_165, %c0_166] : memref<4x32x1xf32, #tpu.memory_space<vmem>>, vector<1x32x1xf32>
    %469 = vector.shape_cast %468 : vector<1x32x1xf32> to vector<32x1xf32>
    %c3_167 = arith.constant 3 : index
    %c0_168 = arith.constant 0 : index
    %470 = memref.load %arg11[%c3_167, %c0_168] : memref<4x2xf32, #tpu.memory_space<smem>>
    %c3_169 = arith.constant 3 : index
    %c1_170 = arith.constant 1 : index
    %471 = memref.load %arg11[%c3_169, %c1_170] : memref<4x2xf32, #tpu.memory_space<smem>>
    %472 = vector.extract_strided_slice %465 {offsets = [0, 0], sizes = [32, 1], strides = [1, 1]} : vector<32x9xf32> to vector<32x1xf32>
    %cst_171 = arith.constant dense<0.000000e+00> : vector<32x128xf32>
    %473 = tpu.matmul %463, %459, %cst_171 {dimension_numbers = #tpu.dot_dimension_numbers<[1], [0], [0], [1], [0, 0, 1, 1], [], []>} : vector<32x16xf32>, vector<16x128xf32>, vector<32x128xf32> -> vector<32x128xf32>
    %474 = vector.broadcast %472 : vector<32x1xf32> to vector<32x128xf32>
    %475 = arith.addf %473, %474 : vector<32x128xf32>
    %cst_172 = arith.constant 0.000000e+00 : f32
    %476 = vector.broadcast %cst_172 : f32 to vector<32x128xf32>
    %477 = arith.cmpf oge, %475, %476 : vector<32x128xf32>
    %478 = vector.broadcast %470 : f32 to vector<32x128xf32>
    %479 = arith.mulf %478, %475 : vector<32x128xf32>
    %480 = arith.select %477, %475, %479 : vector<32x128xi1>, vector<32x128xf32>
    %481 = vector.extract_strided_slice %465 {offsets = [0, 1], sizes = [32, 1], strides = [1, 1]} : vector<32x9xf32> to vector<32x1xf32>
    %482 = vector.extract_strided_slice %465 {offsets = [0, 2], sizes = [32, 1], strides = [1, 1]} : vector<32x9xf32> to vector<32x1xf32>
    %483 = vector.broadcast %4 : vector<1x128xf32> to vector<32x128xf32>
    %484 = arith.mulf %480, %483 : vector<32x128xf32>
    %cst_173 = arith.constant dense<0.000000e+00> : vector<32xf32>
    %485 = vector.multi_reduction <add>, %484, %cst_173 [1] : vector<32x128xf32> to vector<32xf32>
    %486 = vector.shape_cast %485 : vector<32xf32> to vector<32x1xf32>
    %cst_174 = arith.constant dense<0.000000e+00> : vector<1xf32>
    %487 = vector.multi_reduction <add>, %486, %cst_174 [0] : vector<32x1xf32> to vector<1xf32>
    %488 = vector.shape_cast %487 : vector<1xf32> to vector<1x1xf32>
    %489 = arith.mulf %484, %484 : vector<32x128xf32>
    %cst_175 = arith.constant dense<0.000000e+00> : vector<32xf32>
    %490 = vector.multi_reduction <add>, %489, %cst_175 [1] : vector<32x128xf32> to vector<32xf32>
    %491 = vector.shape_cast %490 : vector<32xf32> to vector<32x1xf32>
    %cst_176 = arith.constant dense<0.000000e+00> : vector<1xf32>
    %492 = vector.multi_reduction <add>, %491, %cst_176 [0] : vector<32x1xf32> to vector<1xf32>
    %493 = vector.shape_cast %492 : vector<1xf32> to vector<1x1xf32>
    %cst_177 = arith.constant 0.001953125 : f32
    %494 = vector.broadcast %cst_177 : f32 to vector<1x1xf32>
    %495 = arith.mulf %488, %494 : vector<1x1xf32>
    %cst_178 = arith.constant 0.001953125 : f32
    %496 = vector.broadcast %cst_178 : f32 to vector<1x1xf32>
    %497 = arith.mulf %493, %496 : vector<1x1xf32>
    %498 = arith.mulf %495, %495 : vector<1x1xf32>
    %499 = arith.subf %497, %498 : vector<1x1xf32>
    %cst_179 = arith.constant 0.000000e+00 : f32
    %500 = vector.broadcast %cst_179 : f32 to vector<1x1xf32>
    %501 = arith.maximumf %499, %500 : vector<1x1xf32>
    %cst_180 = arith.constant 9.99999993E-9 : f32
    %502 = vector.broadcast %cst_180 : f32 to vector<1x1xf32>
    %503 = arith.addf %501, %502 : vector<1x1xf32>
    %504 = math.rsqrt %503 : vector<1x1xf32>
    %505 = vector.broadcast %495 : vector<1x1xf32> to vector<32x128xf32>
    %506 = arith.subf %480, %505 : vector<32x128xf32>
    %507 = vector.broadcast %504 : vector<1x1xf32> to vector<32x128xf32>
    %508 = arith.mulf %506, %507 : vector<32x128xf32>
    %509 = vector.broadcast %481 : vector<32x1xf32> to vector<32x128xf32>
    %510 = arith.mulf %508, %509 : vector<32x128xf32>
    %511 = vector.broadcast %482 : vector<32x1xf32> to vector<32x128xf32>
    %512 = arith.addf %510, %511 : vector<32x128xf32>
    %cst_181 = arith.constant 0.000000e+00 : f32
    %513 = vector.broadcast %cst_181 : f32 to vector<32x128xf32>
    %c2_i32_182 = arith.constant 2 : i32
    %514 = tpu.dynamic_rotate %512 by %c2_i32_182 dim 1 : vector<32x128xf32>, i32 -> vector<32x128xf32>
    %c-2_i32_183 = arith.constant -2 : i32
    %515 = vector.broadcast %c-2_i32_183 : i32 to vector<1x128xi32>
    %516 = arith.addi %0, %515 : vector<1x128xi32>
    %c0_i32_184 = arith.constant 0 : i32
    %517 = vector.broadcast %c0_i32_184 : i32 to vector<1x128xi32>
    %518 = arith.cmpi sge, %516, %517 : vector<1x128xi32>
    %c-2_i32_185 = arith.constant -2 : i32
    %519 = vector.broadcast %c-2_i32_185 : i32 to vector<1x128xi32>
    %520 = arith.addi %0, %519 : vector<1x128xi32>
    %c15_i32_186 = arith.constant 15 : i32
    %521 = vector.broadcast %c15_i32_186 : i32 to vector<1x128xi32>
    %522 = arith.cmpi sle, %520, %521 : vector<1x128xi32>
    %523 = arith.andi %518, %522 : vector<1x128xi1>
    %cst_187 = arith.constant 0.000000e+00 : f32
    %524 = vector.shape_cast %523 : vector<1x128xi1> to vector<1x128xi1>
    %525 = vector.broadcast %524 : vector<1x128xi1> to vector<32x128xi1>
    %526 = vector.broadcast %cst_187 : f32 to vector<32x128xf32>
    %527 = arith.select %525, %514, %526 : vector<32x128xi1>, vector<32x128xf32>
    %528 = vector.extract_strided_slice %465 {offsets = [0, 6], sizes = [32, 1], strides = [1, 1]} : vector<32x9xf32> to vector<32x1xf32>
    %529 = vector.broadcast %528 : vector<32x1xf32> to vector<32x128xf32>
    %530 = arith.mulf %529, %527 : vector<32x128xf32>
    %531 = arith.addf %513, %530 : vector<32x128xf32>
    %532 = vector.extract_strided_slice %465 {offsets = [0, 7], sizes = [32, 1], strides = [1, 1]} : vector<32x9xf32> to vector<32x1xf32>
    %533 = vector.broadcast %532 : vector<32x1xf32> to vector<32x128xf32>
    %534 = arith.mulf %533, %512 : vector<32x128xf32>
    %535 = arith.addf %531, %534 : vector<32x128xf32>
    %c126_i32_188 = arith.constant 126 : i32
    %536 = tpu.dynamic_rotate %512 by %c126_i32_188 dim 1 : vector<32x128xf32>, i32 -> vector<32x128xf32>
    %c2_i32_189 = arith.constant 2 : i32
    %537 = vector.broadcast %c2_i32_189 : i32 to vector<1x128xi32>
    %538 = arith.addi %0, %537 : vector<1x128xi32>
    %c0_i32_190 = arith.constant 0 : i32
    %539 = vector.broadcast %c0_i32_190 : i32 to vector<1x128xi32>
    %540 = arith.cmpi sge, %538, %539 : vector<1x128xi32>
    %c2_i32_191 = arith.constant 2 : i32
    %541 = vector.broadcast %c2_i32_191 : i32 to vector<1x128xi32>
    %542 = arith.addi %0, %541 : vector<1x128xi32>
    %c15_i32_192 = arith.constant 15 : i32
    %543 = vector.broadcast %c15_i32_192 : i32 to vector<1x128xi32>
    %544 = arith.cmpi sle, %542, %543 : vector<1x128xi32>
    %545 = arith.andi %540, %544 : vector<1x128xi1>
    %cst_193 = arith.constant 0.000000e+00 : f32
    %546 = vector.shape_cast %545 : vector<1x128xi1> to vector<1x128xi1>
    %547 = vector.broadcast %546 : vector<1x128xi1> to vector<32x128xi1>
    %548 = vector.broadcast %cst_193 : f32 to vector<32x128xf32>
    %549 = arith.select %547, %536, %548 : vector<32x128xi1>, vector<32x128xf32>
    %550 = vector.extract_strided_slice %465 {offsets = [0, 8], sizes = [32, 1], strides = [1, 1]} : vector<32x9xf32> to vector<32x1xf32>
    %551 = vector.broadcast %550 : vector<32x1xf32> to vector<32x128xf32>
    %552 = arith.mulf %551, %549 : vector<32x128xf32>
    %553 = arith.addf %535, %552 : vector<32x128xf32>
    %554 = vector.extract_strided_slice %465 {offsets = [0, 5], sizes = [32, 1], strides = [1, 1]} : vector<32x9xf32> to vector<32x1xf32>
    %555 = vector.broadcast %554 : vector<32x1xf32> to vector<32x128xf32>
    %556 = arith.addf %553, %555 : vector<32x128xf32>
    %cst_194 = arith.constant 0.000000e+00 : f32
    %557 = vector.broadcast %cst_194 : f32 to vector<32x128xf32>
    %558 = arith.cmpf oge, %556, %557 : vector<32x128xf32>
    %559 = vector.broadcast %471 : f32 to vector<32x128xf32>
    %560 = arith.mulf %559, %556 : vector<32x128xf32>
    %561 = arith.select %558, %556, %560 : vector<32x128xi1>, vector<32x128xf32>
    %562 = vector.extract_strided_slice %465 {offsets = [0, 3], sizes = [32, 1], strides = [1, 1]} : vector<32x9xf32> to vector<32x1xf32>
    %563 = vector.extract_strided_slice %465 {offsets = [0, 4], sizes = [32, 1], strides = [1, 1]} : vector<32x9xf32> to vector<32x1xf32>
    %564 = vector.broadcast %4 : vector<1x128xf32> to vector<32x128xf32>
    %565 = arith.mulf %561, %564 : vector<32x128xf32>
    %cst_195 = arith.constant dense<0.000000e+00> : vector<32xf32>
    %566 = vector.multi_reduction <add>, %565, %cst_195 [1] : vector<32x128xf32> to vector<32xf32>
    %567 = vector.shape_cast %566 : vector<32xf32> to vector<32x1xf32>
    %cst_196 = arith.constant dense<0.000000e+00> : vector<1xf32>
    %568 = vector.multi_reduction <add>, %567, %cst_196 [0] : vector<32x1xf32> to vector<1xf32>
    %569 = vector.shape_cast %568 : vector<1xf32> to vector<1x1xf32>
    %570 = arith.mulf %565, %565 : vector<32x128xf32>
    %cst_197 = arith.constant dense<0.000000e+00> : vector<32xf32>
    %571 = vector.multi_reduction <add>, %570, %cst_197 [1] : vector<32x128xf32> to vector<32xf32>
    %572 = vector.shape_cast %571 : vector<32xf32> to vector<32x1xf32>
    %cst_198 = arith.constant dense<0.000000e+00> : vector<1xf32>
    %573 = vector.multi_reduction <add>, %572, %cst_198 [0] : vector<32x1xf32> to vector<1xf32>
    %574 = vector.shape_cast %573 : vector<1xf32> to vector<1x1xf32>
    %cst_199 = arith.constant 0.001953125 : f32
    %575 = vector.broadcast %cst_199 : f32 to vector<1x1xf32>
    %576 = arith.mulf %569, %575 : vector<1x1xf32>
    %cst_200 = arith.constant 0.001953125 : f32
    %577 = vector.broadcast %cst_200 : f32 to vector<1x1xf32>
    %578 = arith.mulf %574, %577 : vector<1x1xf32>
    %579 = arith.mulf %576, %576 : vector<1x1xf32>
    %580 = arith.subf %578, %579 : vector<1x1xf32>
    %cst_201 = arith.constant 0.000000e+00 : f32
    %581 = vector.broadcast %cst_201 : f32 to vector<1x1xf32>
    %582 = arith.maximumf %580, %581 : vector<1x1xf32>
    %cst_202 = arith.constant 9.99999993E-9 : f32
    %583 = vector.broadcast %cst_202 : f32 to vector<1x1xf32>
    %584 = arith.addf %582, %583 : vector<1x1xf32>
    %585 = math.rsqrt %584 : vector<1x1xf32>
    %586 = vector.broadcast %576 : vector<1x1xf32> to vector<32x128xf32>
    %587 = arith.subf %561, %586 : vector<32x128xf32>
    %588 = vector.broadcast %585 : vector<1x1xf32> to vector<32x128xf32>
    %589 = arith.mulf %587, %588 : vector<32x128xf32>
    %590 = vector.broadcast %562 : vector<32x1xf32> to vector<32x128xf32>
    %591 = arith.mulf %589, %590 : vector<32x128xf32>
    %592 = vector.broadcast %563 : vector<32x1xf32> to vector<32x128xf32>
    %593 = arith.addf %591, %592 : vector<32x128xf32>
    %cst_203 = arith.constant dense<0.000000e+00> : vector<32x128xf32>
    %594 = tpu.matmul %467, %593, %cst_203 {dimension_numbers = #tpu.dot_dimension_numbers<[1], [0], [0], [1], [0, 0, 1, 1], [], []>} : vector<32x32xf32>, vector<32x128xf32>, vector<32x128xf32> -> vector<32x128xf32>
    %595 = vector.broadcast %469 : vector<32x1xf32> to vector<32x128xf32>
    %596 = arith.addf %594, %595 : vector<32x128xf32>
    %597 = vector.extract_strided_slice %596 {offsets = [16, 0], sizes = [16, 128], strides = [1, 1]} : vector<32x128xf32> to vector<16x128xf32>
    %598 = arith.addf %461, %597 : vector<16x128xf32>
    %c0_204 = arith.constant 0 : index
    %599 = memref.load %arg12[%c0_204] : memref<1xf32, #tpu.memory_space<smem>>
    %cst_205 = arith.constant 0.000000e+00 : f32
    %600 = vector.broadcast %cst_205 : f32 to vector<16x128xf32>
    %601 = arith.cmpf oge, %598, %600 : vector<16x128xf32>
    %602 = vector.broadcast %599 : f32 to vector<16x128xf32>
    %603 = arith.mulf %602, %598 : vector<16x128xf32>
    %604 = arith.select %601, %598, %603 : vector<16x128xi1>, vector<16x128xf32>
    %c0_206 = arith.constant 0 : index
    %c0_207 = arith.constant 0 : index
    %605 = vector.load %arg9[%c0_206, %c0_207] : memref<8x16xf32, #tpu.memory_space<vmem>>, vector<8x16xf32>
    %c0_208 = arith.constant 0 : index
    %c0_209 = arith.constant 0 : index
    %606 = vector.load %arg10[%c0_208, %c0_209] : memref<8x1xf32, #tpu.memory_space<vmem>>, vector<8x1xf32>
    %cst_210 = arith.constant dense<0.000000e+00> : vector<8x128xf32>
    %607 = tpu.matmul %605, %604, %cst_210 {dimension_numbers = #tpu.dot_dimension_numbers<[1], [0], [0], [1], [0, 0, 1, 1], [], []>} : vector<8x16xf32>, vector<16x128xf32>, vector<8x128xf32> -> vector<8x128xf32>
    %608 = vector.broadcast %606 : vector<8x1xf32> to vector<8x128xf32>
    %609 = arith.addf %607, %608 : vector<8x128xf32>
    %c0_211 = arith.constant 0 : index
    %c0_212 = arith.constant 0 : index
    %c0_213 = arith.constant 0 : index
    %610 = vector.load %arg13[%c0_211, %c0_212, %c0_213] : memref<1x8x128xf32, #tpu.memory_space<vmem>>, vector<1x8x128xf32>
    %611 = vector.shape_cast %610 : vector<1x8x128xf32> to vector<8x128xf32>
    %612 = vector.shape_cast %609 : vector<8x128xf32> to vector<1x8x128xf32>
    tpu.vector_store %arg13[%c0_211, %c0_212, %c0_213], %612 {strides = array<i32>} : memref<1x8x128xf32, #tpu.memory_space<vmem>>, vector<1x8x128xf32>,
    return
  }
  func.func @transform_0(%arg0: i32) -> (i32, i32, i32) {
    %c0_i32 = arith.constant 0 : i32
    %c0_i32_0 = arith.constant 0 : i32
    %c0_i32_1 = arith.constant 0 : i32
    return %arg0, %c0_i32, %c0_i32_0 : i32, i32, i32
  }
  func.func @transform_1(%arg0: i32) -> (i32, i32) {
    %c0_i32 = arith.constant 0 : i32
    %c0_i32_0 = arith.constant 0 : i32
    %c0_i32_1 = arith.constant 0 : i32
    return %c0_i32, %c0_i32_0 : i32, i32
  }
  func.func @transform_2(%arg0: i32) -> (i32, i32) {
    %c0_i32 = arith.constant 0 : i32
    %c0_i32_0 = arith.constant 0 : i32
    %c0_i32_1 = arith.constant 0 : i32
    return %c0_i32, %c0_i32_0 : i32, i32
  }
  func.func @transform_3(%arg0: i32) -> (i32, i32) {
    %c0_i32 = arith.constant 0 : i32
    %c0_i32_0 = arith.constant 0 : i32
    %c0_i32_1 = arith.constant 0 : i32
    return %c0_i32, %c0_i32_0 : i32, i32
  }
  func.func @transform_4(%arg0: i32) -> (i32, i32, i32) {
    %c0_i32 = arith.constant 0 : i32
    %c0_i32_0 = arith.constant 0 : i32
    %c0_i32_1 = arith.constant 0 : i32
    %c0_i32_2 = arith.constant 0 : i32
    return %c0_i32, %c0_i32_0, %c0_i32_1 : i32, i32, i32
  }
  func.func @transform_5(%arg0: i32) -> (i32, i32, i32) {
    %c0_i32 = arith.constant 0 : i32
    %c0_i32_0 = arith.constant 0 : i32
    %c0_i32_1 = arith.constant 0 : i32
    %c0_i32_2 = arith.constant 0 : i32
    return %c0_i32, %c0_i32_0, %c0_i32_1 : i32, i32, i32
  }
  func.func @transform_6(%arg0: i32) -> (i32, i32, i32) {
    %c0_i32 = arith.constant 0 : i32
    %c0_i32_0 = arith.constant 0 : i32
    %c0_i32_1 = arith.constant 0 : i32
    %c0_i32_2 = arith.constant 0 : i32
    return %c0_i32, %c0_i32_0, %c0_i32_1 : i32, i32, i32
  }
  func.func @transform_7(%arg0: i32) -> (i32, i32, i32) {
    %c0_i32 = arith.constant 0 : i32
    %c0_i32_0 = arith.constant 0 : i32
    %c0_i32_1 = arith.constant 0 : i32
    %c0_i32_2 = arith.constant 0 : i32
    return %c0_i32, %c0_i32_0, %c0_i32_1 : i32, i32, i32
  }
  func.func @transform_8(%arg0: i32) -> (i32, i32) {
    %c0_i32 = arith.constant 0 : i32
    %c0_i32_0 = arith.constant 0 : i32
    %c0_i32_1 = arith.constant 0 : i32
    return %c0_i32, %c0_i32_0 : i32, i32
  }
  func.func @transform_9(%arg0: i32) -> (i32, i32) {
    %c0_i32 = arith.constant 0 : i32
    %c0_i32_0 = arith.constant 0 : i32
    %c0_i32_1 = arith.constant 0 : i32
    return %c0_i32, %c0_i32_0 : i32, i32
  }
  func.func @transform_10(%arg0: i32) -> (i32, i32) {
    %c0_i32 = arith.constant 0 : i32
    %c0_i32_0 = arith.constant 0 : i32
    %c0_i32_1 = arith.constant 0 : i32
    return %c0_i32, %c0_i32_0 : i32, i32
  }
  func.func @transform_11(%arg0: i32) -> i32 {
    %c0_i32 = arith.constant 0 : i32
    %c0_i32_0 = arith.constant 0 : i32
    return %c0_i32 : i32
  }
  func.func @transform_12(%arg0: i32) -> (i32, i32, i32) {
    %c0_i32 = arith.constant 0 : i32
    %c0_i32_0 = arith.constant 0 : i32
    %c0_i32_1 = arith.constant 0 : i32
    return %arg0, %c0_i32, %c0_i32_0 : i32, i32, i32
  }
}

</mosaic_0001>

<llo_original>
// kernel: tpu_custom_call.1
$region0: #{tpu_custom_call.1}
  #allocation0 [shape = 'u32[]', space=smem, size = 0x4, offset = 0x4, fixed_abs, tag = 'smem constant byte address 0x4 - core index']
  #allocation1 [shape = 'u32[144,128]{1,0:T(1,128)}', space=vmem, size = 0x12000, scoped, tag = 'internal scratch']
  #allocation2 [shape = 'f32[1]{0:T(128)S(6)}', space=smem, size = 0x200, scoped, tag = 'scoped memory for tpu_custom_call.1']
  %s0 = inlined_call_operand.vmem [shape: f32[2,16,128], index: 0, kind: input, shape index: {}]
  %s1 = inlined_call_operand.vmem [shape: f32[16,2], index: 1, kind: input, shape index: {}]
  %s2 = inlined_call_operand.vmem [shape: f32[16,16], index: 2, kind: input, shape index: {}]
  %s3 = inlined_call_operand.vmem [shape: f32[16,1], index: 3, kind: input, shape index: {}]
  %s4 = inlined_call_operand.vmem [shape: f32[4,32,16], index: 4, kind: input, shape index: {}]
  %s5 = inlined_call_operand.vmem [shape: f32[4,32,9], index: 5, kind: input, shape index: {}]
  %s6 = inlined_call_operand.vmem [shape: f32[4,32,32], index: 6, kind: input, shape index: {}]
  %s7 = inlined_call_operand.vmem [shape: f32[4,32,1], index: 7, kind: input, shape index: {}]
  %s8 = inlined_call_operand.vmem [shape: f32[8,16], index: 8, kind: input, shape index: {}]
  %s9 = inlined_call_operand.vmem [shape: f32[8,1], index: 9, kind: input, shape index: {}]
  %s10 = inlined_call_operand.vmem [shape: f32[4,2], index: 10, kind: input, shape index: {}]
  %s11 = inlined_call_operand.<no memory space> [shape: f32[1], index: 11, kind: input, shape index: {}]
  %s12 = inlined_call_operand.hbm [shape: f32[2,8,128], index: 12, kind: output, shape index: {}]
  %s13 = sld [smem:[#allocation0]]
  $region85: #{tpu_custom_call.1} parent=0
    _
  %s15 = ssub.s32 1, %s13
  %s16 = scalar_select 0, %s15, %s13
  %17 = sst [smem:[#allocation2]] %s11
  $region1: #{tpu_custom_call.1} parent=0
    #allocation3 [shape = 'u8[2048]{0}', space=smem, size = 0x800, scoped, tag = 'input window, operand 10, single buffered']
    #allocation4 [shape = 's32[2]{0}', space=sflag, size = 0x8, scoped, tag = 'scoped memory for tpu_custom_call.1']
    #allocation5 [shape = 's32[2]{0}', space=sflag, size = 0x8, scoped, tag = 'scoped memory for tpu_custom_call.1']
    #allocation6 [shape = 'u8[8192]{0}', space=vmem, size = 0x2000, scoped, tag = 'output window, operand 0']
    %18 = vsyncpa [#allocation5], 0
    %19 = vsyncpa [#allocation4], 0
    %s20 = scalar_lea.sflag [#allocation4], 1
    %21 = vsyncpa %s20, 0
    loop: start=0, step=1, limit=4
    $region2: #{tpu_custom_call.1} parent=1 // loop_pre_header
      _
    $region3: #{tpu_custom_call.1} parent=1 // loop_header
      %s23 = sphi 0, %s27
      %p24 = scmp.ge.s32.totalorder %s23, 4
      %s33 = sphi 0, %s35
      %s36 = sphi 0, %s33
      %s37 = sphi 0, %s36
      %s53 = sphi 0, %s37
      %s57 = sphi 0, %s57
      %s59 = sphi 0, %s57
      %s60 = sphi 0, %s59
      %s74 = sphi 0, %s60
      %s78 = sphi 0, %s78
      %s80 = sphi 0, %s78
      %s81 = sphi 0, %s80
      %s95 = sphi 0, %s81
      %s99 = sphi 0, %s99
      %s101 = sphi 0, %s99
      %s102 = sphi 0, %s101
      %s116 = sphi 0, %s102
      %s120 = sphi 0, %s120
      %s122 = sphi 0, %s120
      %s123 = sphi 0, %s122
      %s137 = sphi 0, %s123
      %s141 = sphi 0, %s141
      %s143 = sphi 0, %s141
      %s144 = sphi 0, %s143
      %s158 = sphi 0, %s144
      %s162 = sphi 0, %s162
      %s164 = sphi 0, %s162
      %s165 = sphi 0, %s164
      %s179 = sphi 0, %s165
      %s183 = sphi 0, %s183
      %s185 = sphi 0, %s183
      %s186 = sphi 0, %s185
      %s200 = sphi 0, %s186
      %s204 = sphi 0, %s204
      %s206 = sphi 0, %s204
      %s207 = sphi 0, %s206
      %s221 = sphi 0, %s207
      %s225 = sphi 0, %s225
      %s227 = sphi 0, %s225
      %s228 = sphi 0, %s227
      %s242 = sphi 0, %s228
      %s246 = sphi 0, %s246
      %s248 = sphi 0, %s246
      %s249 = sphi 0, %s248
      %s263 = sphi 0, %s249
      %s267 = sphi 0, %s267
      %s269 = sphi 0, %s267
      %s270 = sphi 0, %s269
      %s284 = sphi 0, %s270
      %s290 = sphi 0, %s292
      %s293 = sphi 0, %s290
      %s294 = sphi 0, %s293
      %s310 = sphi 0, %s294
    $region4: #{tpu_custom_call.1} parent=1 // loop_header_branch
      %26 = sbr.rel (%p24) target = $region8
    $region5: #{tpu_custom_call.1} parent=1 // loop_body
      %s28 = ssub.s32 %s23, 1
      %s29 = ssub.s32 %s23, 2
      %s30 = sadd.s32 %s23, 1
      %s31 = ssub.s32 %s23, %s30
      %p32 = scmp.eq.s32.totalorder %s31, 0
      %s34 = sadd.s32 %s33, 1
      %s35 = scalar_select %p32, %s33, %s34
      %p38 = pneg %p32
      %p39 = scmp.eq.s32.totalorder %s23, 1
      %p40 = por %p38, %p39
      %p41 = scmp.ne.s32.totalorder %s33, %s36
      %p42 = scmp.eq.s32.totalorder %s23, 0
      %p43 = por %p41, %p42
      %p44 = scmp.ne.s32.totalorder %s33, %s36
      %p45 = scmp.eq.s32.totalorder %s28, 1
      %p46 = por %p44, %p45
      %p47 = scmp.ne.s32.totalorder %s36, %s37
      %p48 = scmp.eq.s32.totalorder %s28, 0
      %p49 = por %p47, %p48
      %p50 = scmp.ne.s32.totalorder %s36, %s37
      %p51 = scmp.eq.s32.totalorder %s29, 1
      %p52 = por %p50, %p51
      %p54 = scmp.ne.s32.totalorder %s37, %s53
      %p55 = scmp.eq.s32.totalorder %s29, 0
      %p56 = por %p54, %p55
      %s58 = sadd.s32 %s57, 1
      %p61 = scmp.eq.s32.totalorder %s23, 1
      %p62 = scmp.ne.s32.totalorder %s57, %s59
      %p63 = scmp.eq.s32.totalorder %s23, 0
      %p64 = por %p62, %p63
      %p65 = scmp.ne.s32.totalorder %s57, %s59
      %p66 = scmp.eq.s32.totalorder %s28, 1
      %p67 = por %p65, %p66
      %p68 = scmp.ne.s32.totalorder %s59, %s60
      %p69 = scmp.eq.s32.totalorder %s28, 0
      %p70 = por %p68, %p69
      %p71 = scmp.ne.s32.totalorder %s59, %s60
      %p72 = scmp.eq.s32.totalorder %s29, 1
      %p73 = por %p71, %p72
      %p75 = scmp.ne.s32.totalorder %s60, %s74
      %p76 = scmp.eq.s32.totalorder %s29, 0
      %p77 = por %p75, %p76
      %s79 = sadd.s32 %s78, 1
      %p82 = scmp.eq.s32.totalorder %s23, 1
      %p83 = scmp.ne.s32.totalorder %s78, %s80
      %p84 = scmp.eq.s32.totalorder %s23, 0
      %p85 = por %p83, %p84
      %p86 = scmp.ne.s32.totalorder %s78, %s80
      %p87 = scmp.eq.s32.totalorder %s28, 1
      %p88 = por %p86, %p87
      %p89 = scmp.ne.s32.totalorder %s80, %s81
      %p90 = scmp.eq.s32.totalorder %s28, 0
      %p91 = por %p89, %p90
      %p92 = scmp.ne.s32.totalorder %s80, %s81
      %p93 = scmp.eq.s32.totalorder %s29, 1
      %p94 = por %p92, %p93
      %p96 = scmp.ne.s32.totalorder %s81, %s95
      %p97 = scmp.eq.s32.totalorder %s29, 0
      %p98 = por %p96, %p97
      %s100 = sadd.s32 %s99, 1
      %p103 = scmp.eq.s32.totalorder %s23, 1
      %p104 = scmp.ne.s32.totalorder %s99, %s101
      %p105 = scmp.eq.s32.totalorder %s23, 0
      %p106 = por %p104, %p105
      %p107 = scmp.ne.s32.totalorder %s99, %s101
      %p108 = scmp.eq.s32.totalorder %s28, 1
      %p109 = por %p107, %p108
      %p110 = scmp.ne.s32.totalorder %s101, %s102
      %p111 = scmp.eq.s32.totalorder %s28, 0
      %p112 = por %p110, %p111
      %p113 = scmp.ne.s32.totalorder %s101, %s102
      %p114 = scmp.eq.s32.totalorder %s29, 1
      %p115 = por %p113, %p114
      %p117 = scmp.ne.s32.totalorder %s102, %s116
      %p118 = scmp.eq.s32.totalorder %s29, 0
      %p119 = por %p117, %p118
      %s121 = sadd.s32 %s120, 1
      %p124 = scmp.eq.s32.totalorder %s23, 1
      %p125 = scmp.ne.s32.totalorder %s120, %s122
      %p126 = scmp.eq.s32.totalorder %s23, 0
      %p127 = por %p125, %p126
      %p128 = scmp.ne.s32.totalorder %s120, %s122
      %p129 = scmp.eq.s32.totalorder %s28, 1
      %p130 = por %p128, %p129
      %p131 = scmp.ne.s32.totalorder %s122, %s123
      %p132 = scmp.eq.s32.totalorder %s28, 0
      %p133 = por %p131, %p132
      %p134 = scmp.ne.s32.totalorder %s122, %s123
      %p135 = scmp.eq.s32.totalorder %s29, 1
      %p136 = por %p134, %p135
      %p138 = scmp.ne.s32.totalorder %s123, %s137
      %p139 = scmp.eq.s32.totalorder %s29, 0
      %p140 = por %p138, %p139
      %s142 = sadd.s32 %s141, 1
      %p145 = scmp.eq.s32.totalorder %s23, 1
      %p146 = scmp.ne.s32.totalorder %s141, %s143
      %p147 = scmp.eq.s32.totalorder %s23, 0
      %p148 = por %p146, %p147
      %p149 = scmp.ne.s32.totalorder %s141, %s143
      %p150 = scmp.eq.s32.totalorder %s28, 1
      %p151 = por %p149, %p150
      %p152 = scmp.ne.s32.totalorder %s143, %s144
      %p153 = scmp.eq.s32.totalorder %s28, 0
      %p154 = por %p152, %p153
      %p155 = scmp.ne.s32.totalorder %s143, %s144
      %p156 = scmp.eq.s32.totalorder %s29, 1
      %p157 = por %p155, %p156
      %p159 = scmp.ne.s32.totalorder %s144, %s158
      %p160 = scmp.eq.s32.totalorder %s29, 0
      %p161 = por %p159, %p160
      %s163 = sadd.s32 %s162, 1
      %p166 = scmp.eq.s32.totalorder %s23, 1
      %p167 = scmp.ne.s32.totalorder %s162, %s164
      %p168 = scmp.eq.s32.totalorder %s23, 0
      %p169 = por %p167, %p168
      %p170 = scmp.ne.s32.totalorder %s162, %s164
      %p171 = scmp.eq.s32.totalorder %s28, 1
      %p172 = por %p170, %p171
      %p173 = scmp.ne.s32.totalorder %s164, %s165
      %p174 = scmp.eq.s32.totalorder %s28, 0
      %p175 = por %p173, %p174
      %p176 = scmp.ne.s32.totalorder %s164, %s165
      %p177 = scmp.eq.s32.totalorder %s29, 1
      %p178 = por %p176, %p177
      %p180 = scmp.ne.s32.totalorder %s165, %s179
      %p181 = scmp.eq.s32.totalorder %s29, 0
      %p182 = por %p180, %p181
      %s184 = sadd.s32 %s183, 1
      %p187 = scmp.eq.s32.totalorder %s23, 1
      %p188 = scmp.ne.s32.totalorder %s183, %s185
      %p189 = scmp.eq.s32.totalorder %s23, 0
      %p190 = por %p188, %p189
      %p191 = scmp.ne.s32.totalorder %s183, %s185
      %p192 = scmp.eq.s32.totalorder %s28, 1
      %p193 = por %p191, %p192
      %p194 = scmp.ne.s32.totalorder %s185, %s186
      %p195 = scmp.eq.s32.totalorder %s28, 0
      %p196 = por %p194, %p195
      %p197 = scmp.ne.s32.totalorder %s185, %s186
      %p198 = scmp.eq.s32.totalorder %s29, 1
      %p199 = por %p197, %p198
      %p201 = scmp.ne.s32.totalorder %s186, %s200
      %p202 = scmp.eq.s32.totalorder %s29, 0
      %p203 = por %p201, %p202
      %s205 = sadd.s32 %s204, 1
      %p208 = scmp.eq.s32.totalorder %s23, 1
      %p209 = scmp.ne.s32.totalorder %s204, %s206
      %p210 = scmp.eq.s32.totalorder %s23, 0
      %p211 = por %p209, %p210
      %p212 = scmp.ne.s32.totalorder %s204, %s206
      %p213 = scmp.eq.s32.totalorder %s28, 1
      %p214 = por %p212, %p213
      %p215 = scmp.ne.s32.totalorder %s206, %s207
      %p216 = scmp.eq.s32.totalorder %s28, 0
      %p217 = por %p215, %p216
      %p218 = scmp.ne.s32.totalorder %s206, %s207
      %p219 = scmp.eq.s32.totalorder %s29, 1
      %p220 = por %p218, %p219
      %p222 = scmp.ne.s32.totalorder %s207, %s221
      %p223 = scmp.eq.s32.totalorder %s29, 0
      %p224 = por %p222, %p223
      %s226 = sadd.s32 %s225, 1
      %p229 = scmp.eq.s32.totalorder %s23, 1
      %p230 = scmp.ne.s32.totalorder %s225, %s227
      %p231 = scmp.eq.s32.totalorder %s23, 0
      %p232 = por %p230, %p231
      %p233 = scmp.ne.s32.totalorder %s225, %s227
      %p234 = scmp.eq.s32.totalorder %s28, 1
      %p235 = por %p233, %p234
      %p236 = scmp.ne.s32.totalorder %s227, %s228
      %p237 = scmp.eq.s32.totalorder %s28, 0
      %p238 = por %p236, %p237
      %p239 = scmp.ne.s32.totalorder %s227, %s228
      %p240 = scmp.eq.s32.totalorder %s29, 1
      %p241 = por %p239, %p240
      %p243 = scmp.ne.s32.totalorder %s228, %s242
      %p244 = scmp.eq.s32.totalorder %s29, 0
      %p245 = por %p243, %p244
      %s247 = sadd.s32 %s246, 1
      %p250 = scmp.eq.s32.totalorder %s23, 1
      %p251 = scmp.ne.s32.totalorder %s246, %s248
      %p252 = scmp.eq.s32.totalorder %s23, 0
      %p253 = por %p251, %p252
      %p254 = scmp.ne.s32.totalorder %s246, %s248
      %p255 = scmp.eq.s32.totalorder %s28, 1
      %p256 = por %p254, %p255
      %p257 = scmp.ne.s32.totalorder %s248, %s249
      %p258 = scmp.eq.s32.totalorder %s28, 0
      %p259 = por %p257, %p258
      %p260 = scmp.ne.s32.totalorder %s248, %s249
      %p261 = scmp.eq.s32.totalorder %s29, 1
      %p262 = por %p260, %p261
      %p264 = scmp.ne.s32.totalorder %s249, %s263
      %p265 = scmp.eq.s32.totalorder %s29, 0
      %p266 = por %p264, %p265
      %s268 = sadd.s32 %s267, 1
      %p271 = scmp.eq.s32.totalorder %s23, 1
      %p272 = scmp.ne.s32.totalorder %s267, %s269
      %p273 = scmp.eq.s32.totalorder %s23, 0
      %p274 = por %p272, %p273
      %p275 = scmp.ne.s32.totalorder %s267, %s269
      %p276 = scmp.eq.s32.totalorder %s28, 1
      %p277 = por %p275, %p276
      %p278 = scmp.ne.s32.totalorder %s269, %s270
      %p279 = scmp.eq.s32.totalorder %s28, 0
      %p280 = por %p278, %p279
      %p281 = scmp.ne.s32.totalorder %s269, %s270
      %p282 = scmp.eq.s32.totalorder %s29, 1
      %p283 = por %p281, %p282
      %p285 = scmp.ne.s32.totalorder %s270, %s284
      %p286 = scmp.eq.s32.totalorder %s29, 0
      %p287 = por %p285, %p286
      %s288 = ssub.s32 %s23, %s30
      %p289 = scmp.eq.s32.totalorder %s288, 0
      %s291 = sadd.s32 %s290, 1
      %s292 = scalar_select %p289, %s290, %s291
      %p295 = pneg %p289
      %p296 = scmp.eq.s32.totalorder %s23, 1
      %p297 = por %p295, %p296
      %p298 = scmp.ne.s32.totalorder %s290, %s293
      %p299 = scmp.eq.s32.totalorder %s23, 0
      %p300 = por %p298, %p299
      %p301 = scmp.ne.s32.totalorder %s290, %s293
      %p302 = scmp.eq.s32.totalorder %s28, 1
      %p303 = por %p301, %p302
      %p304 = scmp.ne.s32.totalorder %s293, %s294
      %p305 = scmp.eq.s32.totalorder %s28, 0
      %p306 = por %p304, %p305
      %p307 = scmp.ne.s32.totalorder %s293, %s294
      %p308 = scmp.eq.s32.totalorder %s29, 1
      %p309 = por %p307, %p308
      %p311 = scmp.ne.s32.totalorder %s294, %s310
      %p312 = scmp.eq.s32.totalorder %s29, 0
      %p313 = por %p311, %p312
      %p314 = scmp.le.s32.totalorder 1, %s23
      %p315 = scmp.lt.s32.totalorder %s23, 3
      %p316 = pnand %p314, %p315
      %p317 = pneg %p316
      // Predicated region
      $region9: #{tpu_custom_call.1} parent=5 // pred_check
        _
      $region10: #{tpu_custom_call.1} parent=5 // pred_check_branch
        %319 = sbr.rel (%p316) target = $region12
      $region11: #{tpu_custom_call.1} parent=5 // pred_region
        %s320 = ssub.s32 %s23, 1
        // Predicated region
        $region13: #{tpu_custom_call.1} parent=11 // pred_check
          %p321 = pneg %p70
        $region14: #{tpu_custom_call.1} parent=11 // pred_check_branch
          %323 = sbr.rel (%p321) target = $region16
        $region15: #{tpu_custom_call.1} parent=11 // pred_region
          _
        $region16: #{tpu_custom_call.1} parent=11 // pred_fallthru
          _
        // Predicated region
        $region17: #{tpu_custom_call.1} parent=11 // pred_check
          %p324 = pneg %p91
        $region18: #{tpu_custom_call.1} parent=11 // pred_check_branch
          %326 = sbr.rel (%p324) target = $region20
        $region19: #{tpu_custom_call.1} parent=11 // pred_region
          _
        $region20: #{tpu_custom_call.1} parent=11 // pred_fallthru
          _
        // Predicated region
        $region21: #{tpu_custom_call.1} parent=11 // pred_check
          %p327 = pneg %p112
        $region22: #{tpu_custom_call.1} parent=11 // pred_check_branch
          %329 = sbr.rel (%p327) target = $region24
        $region23: #{tpu_custom_call.1} parent=11 // pred_region
          _
        $region24: #{tpu_custom_call.1} parent=11 // pred_fallthru
          _
        // Predicated region
        $region25: #{tpu_custom_call.1} parent=11 // pred_check
          %p330 = pneg %p133
        $region26: #{tpu_custom_call.1} parent=11 // pred_check_branch
          %332 = sbr.rel (%p330) target = $region28
        $region27: #{tpu_custom_call.1} parent=11 // pred_region
          _
        $region28: #{tpu_custom_call.1} parent=11 // pred_fallthru
          _
        // Predicated region
        $region29: #{tpu_custom_call.1} parent=11 // pred_check
          %p333 = pneg %p154
        $region30: #{tpu_custom_call.1} parent=11 // pred_check_branch
          %335 = sbr.rel (%p333) target = $region32
        $region31: #{tpu_custom_call.1} parent=11 // pred_region
          _
        $region32: #{tpu_custom_call.1} parent=11 // pred_fallthru
          _
        // Predicated region
        $region33: #{tpu_custom_call.1} parent=11 // pred_check
          %p336 = pneg %p175
        $region34: #{tpu_custom_call.1} parent=11 // pred_check_branch
          %338 = sbr.rel (%p336) target = $region36
        $region35: #{tpu_custom_call.1} parent=11 // pred_region
          _
        $region36: #{tpu_custom_call.1} parent=11 // pred_fallthru
          _
        // Predicated region
        $region37: #{tpu_custom_call.1} parent=11 // pred_check
          %p339 = pneg %p196
        $region38: #{tpu_custom_call.1} parent=11 // pred_check_branch
          %341 = sbr.rel (%p339) target = $region40
        $region39: #{tpu_custom_call.1} parent=11 // pred_region
          _
        $region40: #{tpu_custom_call.1} parent=11 // pred_fallthru
          _
        // Predicated region
        $region41: #{tpu_custom_call.1} parent=11 // pred_check
          %p342 = pneg %p217
        $region42: #{tpu_custom_call.1} parent=11 // pred_check_branch
          %344 = sbr.rel (%p342) target = $region44
        $region43: #{tpu_custom_call.1} parent=11 // pred_region
          _
        $region44: #{tpu_custom_call.1} parent=11 // pred_fallthru
          _
        // Predicated region
        $region45: #{tpu_custom_call.1} parent=11 // pred_check
          %p345 = pneg %p238
        $region46: #{tpu_custom_call.1} parent=11 // pred_check_branch
          %347 = sbr.rel (%p345) target = $region48
        $region47: #{tpu_custom_call.1} parent=11 // pred_region
          _
        $region48: #{tpu_custom_call.1} parent=11 // pred_fallthru
          _
        // Predicated region
        $region49: #{tpu_custom_call.1} parent=11 // pred_check
          %p348 = pneg %p259
        $region50: #{tpu_custom_call.1} parent=11 // pred_check_branch
          %350 = sbr.rel (%p348) target = $region52
        $region51: #{tpu_custom_call.1} parent=11 // pred_region
          %s352 = ssub.s32 64, 64
          %353 = vsyncadd [#allocation5], %s352
          %s355 = sshll.u32 %s10, 4
          %s356 = int_to_ptr.vmem [resolvable:$true] %s355
          %358 = dma.vmem_to_smem %s356, 64, [#allocation3], [#allocation5]
        $region52: #{tpu_custom_call.1} parent=11 // pred_fallthru
          _
        // Predicated region
        $region53: #{tpu_custom_call.1} parent=11 // pred_check
          %p359 = pneg %p280
        $region54: #{tpu_custom_call.1} parent=11 // pred_check_branch
          %361 = sbr.rel (%p359) target = $region56
        $region55: #{tpu_custom_call.1} parent=11 // pred_region
          _
        $region56: #{tpu_custom_call.1} parent=11 // pred_fallthru
          _
      $region12: #{tpu_custom_call.1} parent=5 // pred_fallthru
        _
      %p362 = scmp.lt.s32.totalorder %s23, 2
      // Predicated region
      $region57: #{tpu_custom_call.1} parent=5 // pred_check
        %p363 = pneg %p362
      $region58: #{tpu_custom_call.1} parent=5 // pred_check_branch
        %365 = sbr.rel (%p363) target = $region60
      $region59: #{tpu_custom_call.1} parent=5 // pred_region
        // Predicated region
        $region61: #{tpu_custom_call.1} parent=59 // pred_check
          %p366 = pneg %p43
        $region62: #{tpu_custom_call.1} parent=59 // pred_check_branch
          %368 = sbr.rel (%p366) target = $region64
        $region63: #{tpu_custom_call.1} parent=59 // pred_region
          %p369 = scmp.lt.s32.totalorder %s23, 1
          %s370 = scalar_select %p369, %s23, 1
          %s371 = smul.addr %s370, 2
          %s372 = smul.addr %s371, 8
          %s373 = scalar_lea.vmem %s0, %s372
        $region64: #{tpu_custom_call.1} parent=59 // pred_fallthru
          _
      $region60: #{tpu_custom_call.1} parent=5 // pred_fallthru
        _
      %p374 = scmp.le.s32.totalorder 1, %s23
      %p375 = scmp.lt.s32.totalorder %s23, 3
      %p376 = pnand %p374, %p375
      %p377 = pneg %p376
      // Predicated region
      $region65: #{tpu_custom_call.1} parent=5 // pred_check
        _
      $region66: #{tpu_custom_call.1} parent=5 // pred_check_branch
        %379 = sbr.rel (%p376) target = $region68
      $region67: #{tpu_custom_call.1} parent=5 // pred_region
        %s380 = ssub.s32 %s23, 1
        // Predicated region
        $region69: #{tpu_custom_call.1} parent=67 // pred_check
          %p381 = pneg %p259
        $region70: #{tpu_custom_call.1} parent=67 // pred_check_branch
          %383 = sbr.rel (%p381) target = $region72
        $region71: #{tpu_custom_call.1} parent=67 // pred_region
          %384 = dma.done [#allocation5], 64
        $region72: #{tpu_custom_call.1} parent=67 // pred_fallthru
          _
        %385 = sfence
        %p386 = scmp.lt.s32.totalorder %s28, 1
        %s387 = scalar_select %p386, %s28, 1
        %s388 = smul.addr %s387, 2
        %s389 = smul.addr %s388, 8
        %s390 = scalar_lea.vmem %s0, %s389
        %p391 = pneg %p49
        %p392 = pneg %p46
        %p393 = pneg %p70
        %p394 = pneg %p67
        %p395 = pneg %p91
        %p396 = pneg %p88
        %p397 = pneg %p112
        %p398 = pneg %p109
        %p399 = pneg %p133
        %p400 = pneg %p130
        %p401 = pneg %p154
        %p402 = pneg %p151
        %p403 = pneg %p175
        %p404 = pneg %p172
        %p405 = pneg %p196
        %p406 = pneg %p193
        %p407 = pneg %p217
        %p408 = pneg %p214
        %p409 = pneg %p238
        %p410 = pneg %p235
        %p411 = pneg %p259
        %p412 = pneg %p256
        %p413 = pneg %p280
        %p414 = pneg %p277
        %p415 = pneg %p306
        %p416 = pneg %p303
        %s417 = sand.u32 %s293, 1
        %s418 = scalar_lea.sflag [#allocation4], %s417
        %s419 = sand.u32 %s293, 1
        %s420 = smul.addr %s419, 8
        %s421 = scalar_lea.vmem [#allocation6], %s420
        %p422 = scmp.lt.s32.totalorder %s28, 1
        %s423 = scalar_select %p422, %s28, 1
        %s424 = smul.addr %s423, 2
        %s425 = smul.addr %s424, 8
        %s426 = scalar_lea.vmem %s0, %s425
        %v427 = vlaneseq
        %v428 = vand.u32 %v427, 127
        %vm429 = vcmp.lt.s32.totalorder %v428, 16
        %v430 = vsel %vm429, 1, 0
        %v431 = vcvt.s32.f32 %v430
        %v432 = vld [vmem:[%s426] sm:$0xff]
        %v433 = vld [vmem:[%s426 + $0x8] sm:$0xff]
        %v434 = vld [vmem:[%s1] sm:$0xff]
        %v435 = vld [vmem:[%s1 + $0x8] sm:$0xff]
        %v436 = vmul.f32 %v432, %v431
        %v437 = vmul.f32 %v433, %v431
        %438 = vadd.xlane.f32.xlu0 %v436
        %v439 = vpop.xlane.xlu0 %438
        %440 = vadd.xlane.f32.xlu0 %v437
        %v441 = vpop.xlane.xlu0 %440
        %v442 = vadd.f32 %v439, %v441
        %v443 = vrot.slane %v442, 4
        %v444 = vadd.f32 %v442, %v443
        %v445 = vrot.slane %v444, 2
        %v446 = vadd.f32 %v444, %v445
        %v447 = vrot.slane %v446, 1
        %v448 = vadd.f32 %v446, %v447
        %v449 = vmul.f32 %v436, %v436
        %v450 = vmul.f32 %v437, %v437
        %451 = vadd.xlane.f32.xlu0 %v449
        %v452 = vpop.xlane.xlu0 %451
        %453 = vadd.xlane.f32.xlu0 %v450
        %v454 = vpop.xlane.xlu0 %453
        %v455 = vadd.f32 %v452, %v454
        %v456 = vrot.slane %v455, 4
        %v457 = vadd.f32 %v455, %v456
        %v458 = vrot.slane %v457, 2
        %v459 = vadd.f32 %v457, %v458
        %v460 = vrot.slane %v459, 1
        %v461 = vadd.f32 %v459, %v460
        %v462 = vmul.f32 %v448, 0.00390625
        %v463 = vmul.f32 %v461, 0.00390625
        %v464 = vmul.f32 %v462, %v462
        %v465 = vsub.f32 %v463, %v464
        %v466 = vmax.f32 %v465, 0.0
        %v467 = vadd.f32 %v466, 1e-08
        %v468 = vrsqrt.pop %v467
        %v469 = vsub.f32 %v432, %v462
        %v470 = vsub.f32 %v433, %v462
        %v471 = vmul.f32 %v469, %v468
        %v472 = vmul.f32 %v470, %v468
        %474 = vset.pattern.permute.xlu0 0
        %475 = vperm.xlu0 %474, %v434
        %v476 = vpop.permute.xlu0 %475
        %479 = vset.pattern.permute.xlu0 0
        %480 = vperm.xlu0 %479, %v435
        %v481 = vpop.permute.xlu0 %480
        %v483 = vmul.f32 %v471, %v476
        %v484 = vmul.f32 %v472, %v481
        %485 = vset.pattern.permute.xlu0 1
        %486 = vperm.xlu0 %485, %v434
        %v487 = vpop.permute.xlu0 %486
        %489 = vset.pattern.permute.xlu0 1
        %490 = vperm.xlu0 %489, %v435
        %v491 = vpop.permute.xlu0 %490
        %v493 = vadd.f32 %v483, %v487
        %v494 = vadd.f32 %v484, %v491
        %v495 = vld [vmem:[%s2] sm:$0xff]
        %v496 = vld [vmem:[%s2 + $0x8] sm:$0xff]
        %v497 = vld [vmem:[%s3] sm:$0xff]
        %v498 = vld [vmem:[%s3 + $0x8] sm:$0xff]
        %500 = vset.pattern.permute.xlu0 0
        %501 = vperm.xlu0 %500, %v497
        %v502 = vpop.permute.xlu0 %501
        %505 = vset.pattern.permute.xlu0 0
        %506 = vperm.xlu0 %505, %v498
        %v507 = vpop.permute.xlu0 %506
        %vm509 = vcmask 130048
        %v511 = vsel %vm509, %v495, 0
        %v514 = vsel %vm509, %v496, 0
        %516 = vmatprep.subr.mxu0 0.0
        %517 = vmatpush1.msra.mxu0 0.0
        %518 = vmatprep.subr.mxu0 0.0
        %519 = vmatpush1.msra.mxu0 0.0
        %520 = vmatprep.subr.mxu0 0.0
        %521 = vmatpush1.msra.mxu0 0.0
        %522 = vmatprep.subr.mxu0 0.0
        %523 = vmatpush1.msra.mxu0 0.0
        %524 = vmatprep.subr.mxu0 0.0
        %525 = vmatpush1.msra.mxu0 0.0
        %526 = vmatprep.subr.mxu0 0.0
        %527 = vmatpush1.msra.mxu0 0.0
        %528 = vmatprep.subr.mxu0 0.0
        %529 = vmatpush1.msra.mxu0 0.0
        %530 = vmatprep.subr.mxu0 0.0
        %531 = vmatpush1.msra.mxu0 0.0
        %532 = vmatprep.subr.mxu0 0.0
        %533 = vmatpush1.msra.mxu0 0.0
        %534 = vmatprep.subr.mxu0 0.0
        %535 = vmatpush1.msra.mxu0 0.0
        %536 = vmatprep.subr.mxu0 0.0
        %537 = vmatpush1.msra.mxu0 0.0
        %538 = vmatprep.subr.mxu0 0.0
        %539 = vmatpush1.msra.mxu0 0.0
        %540 = vmatprep.subr.mxu0 0.0
        %541 = vmatpush1.msra.mxu0 0.0
        %542 = vmatprep.subr.mxu0 0.0
        %543 = vmatpush1.msra.mxu0 0.0
        %544 = vmatprep.subr.mxu0 0.0
        %545 = vmatpush1.msra.mxu0 %v494
        %546 = vmatprep.subr.mxu0 0.0
        %547 = vmatpush1.msra.mxu0 %v493
        %548 = vmatprep.subr.mxu0 0.0
        %549 = vmatpush2.msra.mxu0 0.0
        %550 = vmatprep.subr.mxu0 0.0
        %551 = vmatpush2.msra.mxu0 0.0
        %552 = vmatprep.subr.mxu0 0.0
        %553 = vmatpush2.msra.mxu0 0.0
        %554 = vmatprep.subr.mxu0 0.0
        %555 = vmatpush2.msra.mxu0 0.0
        %556 = vmatprep.subr.mxu0 0.0
        %557 = vmatpush2.msra.mxu0 0.0
        %558 = vmatprep.subr.mxu0 0.0
        %559 = vmatpush2.msra.mxu0 0.0
        %560 = vmatprep.subr.mxu0 0.0
        %561 = vmatpush2.msra.mxu0 0.0
        %562 = vmatprep.subr.mxu0 0.0
        %563 = vmatpush2.msra.mxu0 0.0
        %564 = vmatprep.subr.mxu0 0.0
        %565 = vmatpush2.msra.mxu0 0.0
        %566 = vmatprep.subr.mxu0 0.0
        %567 = vmatpush2.msra.mxu0 0.0
        %568 = vmatprep.subr.mxu0 0.0
        %569 = vmatpush2.msra.mxu0 0.0
        %570 = vmatprep.subr.mxu0 0.0
        %571 = vmatpush2.msra.mxu0 0.0
        %572 = vmatprep.subr.mxu0 0.0
        %573 = vmatpush2.msra.mxu0 0.0
        %574 = vmatprep.subr.mxu0 0.0
        %575 = vmatpush2.msra.mxu0 0.0
        %576 = vmatprep.subr.mxu0 0.0
        %577 = vmatpush2.msra.mxu0 0.0
        %578 = vmatprep.subr.mxu0 0.0
        %579 = vmatpush2.msra.mxu0 0.0
        %580 = vmatprep.mubr.f32.mxu0 0.0
        %581 = vmatmul.mubr.f32.gmra.mxu0 %v511
        %v582 = vpop.f32.mrf.mxu0
        %v583 = vadd.f32 %v502, %v582
        %v584 = vpop.f32.mrf.mxu0
        %585 = vmatprep.mubr.f32.mxu0 0.0
        %586 = vmatmul.mubr.f32.gmra.mxu0 %v514
        %v587 = vpop.f32.mrf.mxu0
        %v588 = vadd.f32 %v507, %v587
        %v589 = vpop.f32.mrf.mxu0
        %590 = vdwg.mxu0
        %v591 = vld [vmem:[%s4] sm:$0xff]
        %v592 = vld [vmem:[%s4 + $0x8] sm:$0xff]
        %v593 = vld [vmem:[%s4 + $0x10] sm:$0xff]
        %v594 = vld [vmem:[%s4 + $0x18] sm:$0xff]
        %v595 = vld [vmem:[%s5] sm:$0xff]
        %v596 = vld [vmem:[%s5 + $0x8] sm:$0xff]
        %v597 = vld [vmem:[%s5 + $0x10] sm:$0xff]
        %v598 = vld [vmem:[%s5 + $0x18] sm:$0xff]
        %v599 = vld [vmem:[%s6] sm:$0xff]
        %v600 = vld [vmem:[%s6 + $0x8] sm:$0xff]
        %v601 = vld [vmem:[%s6 + $0x10] sm:$0xff]
        %v602 = vld [vmem:[%s6 + $0x18] sm:$0xff]
        %v603 = vld [vmem:[%s7] sm:$0xff]
        %v604 = vld [vmem:[%s7 + $0x8] sm:$0xff]
        %v605 = vld [vmem:[%s7 + $0x10] sm:$0xff]
        %v606 = vld [vmem:[%s7 + $0x18] sm:$0xff]
        %s607 = sld [smem:[#allocation3]]
        %s608 = sld [smem:[#allocation3 + $0x1]]
        %610 = vset.pattern.permute.xlu0 0
        %611 = vperm.xlu0 %610, %v595
        %v612 = vpop.permute.xlu0 %611
        %615 = vset.pattern.permute.xlu0 0
        %616 = vperm.xlu0 %615, %v596
        %v617 = vpop.permute.xlu0 %616
        %620 = vset.pattern.permute.xlu0 0
        %621 = vperm.xlu0 %620, %v597
        %v622 = vpop.permute.xlu0 %621
        %625 = vset.pattern.permute.xlu0 0
        %626 = vperm.xlu0 %625, %v598
        %v627 = vpop.permute.xlu0 %626
        %v630 = vsel %vm509, %v591, 0
        %v633 = vsel %vm509, %v592, 0
        %v636 = vsel %vm509, %v593, 0
        %v639 = vsel %vm509, %v594, 0
        %641 = vmatprep.subr.mxu0 0.0
        %642 = vmatpush1.msra.mxu0 0.0
        %643 = vmatprep.subr.mxu0 0.0
        %644 = vmatpush1.msra.mxu0 0.0
        %645 = vmatprep.subr.mxu0 0.0
        %646 = vmatpush1.msra.mxu0 0.0
        %647 = vmatprep.subr.mxu0 0.0
        %648 = vmatpush1.msra.mxu0 0.0
        %649 = vmatprep.subr.mxu0 0.0
        %650 = vmatpush1.msra.mxu0 0.0
        %651 = vmatprep.subr.mxu0 0.0
        %652 = vmatpush1.msra.mxu0 0.0
        %653 = vmatprep.subr.mxu0 0.0
        %654 = vmatpush1.msra.mxu0 0.0
        %655 = vmatprep.subr.mxu0 0.0
        %656 = vmatpush1.msra.mxu0 0.0
        %657 = vmatprep.subr.mxu0 0.0
        %658 = vmatpush1.msra.mxu0 0.0
        %659 = vmatprep.subr.mxu0 0.0
        %660 = vmatpush1.msra.mxu0 0.0
        %661 = vmatprep.subr.mxu0 0.0
        %662 = vmatpush1.msra.mxu0 0.0
        %663 = vmatprep.subr.mxu0 0.0
        %664 = vmatpush1.msra.mxu0 0.0
        %665 = vmatprep.subr.mxu0 0.0
        %666 = vmatpush1.msra.mxu0 0.0
        %667 = vmatprep.subr.mxu0 0.0
        %668 = vmatpush1.msra.mxu0 0.0
        %669 = vmatprep.subr.mxu0 0.0
        %670 = vmatpush1.msra.mxu0 %v588
        %671 = vmatprep.subr.mxu0 0.0
        %672 = vmatpush1.msra.mxu0 %v583
        %673 = vmatprep.subr.mxu0 0.0
        %674 = vmatpush2.msra.mxu0 0.0
        %675 = vmatprep.subr.mxu0 0.0
        %676 = vmatpush2.msra.mxu0 0.0
        %677 = vmatprep.subr.mxu0 0.0
        %678 = vmatpush2.msra.mxu0 0.0
        %679 = vmatprep.subr.mxu0 0.0
        %680 = vmatpush2.msra.mxu0 0.0
        %681 = vmatprep.subr.mxu0 0.0
        %682 = vmatpush2.msra.mxu0 0.0
        %683 = vmatprep.subr.mxu0 0.0
        %684 = vmatpush2.msra.mxu0 0.0
        %685 = vmatprep.subr.mxu0 0.0
        %686 = vmatpush2.msra.mxu0 0.0
        %687 = vmatprep.subr.mxu0 0.0
        %688 = vmatpush2.msra.mxu0 0.0
        %689 = vmatprep.subr.mxu0 0.0
        %690 = vmatpush2.msra.mxu0 0.0
        %691 = vmatprep.subr.mxu0 0.0
        %692 = vmatpush2.msra.mxu0 0.0
        %693 = vmatprep.subr.mxu0 0.0
        %694 = vmatpush2.msra.mxu0 0.0
        %695 = vmatprep.subr.mxu0 0.0
        %696 = vmatpush2.msra.mxu0 0.0
        %697 = vmatprep.subr.mxu0 0.0
        %698 = vmatpush2.msra.mxu0 0.0
        %699 = vmatprep.subr.mxu0 0.0
        %700 = vmatpush2.msra.mxu0 0.0
        %701 = vmatprep.subr.mxu0 0.0
        %702 = vmatpush2.msra.mxu0 0.0
        %703 = vmatprep.subr.mxu0 0.0
        %704 = vmatpush2.msra.mxu0 0.0
        %705 = vmatprep.mubr.f32.mxu0 0.0
        %706 = vmatmul.mubr.f32.gmra.mxu0 %v630
        %v707 = vpop.f32.mrf.mxu0
        %v708 = vadd.f32 %v612, %v707
        %v709 = vpop.f32.mrf.mxu0
        %710 = vmatprep.mubr.f32.mxu0 0.0
        %711 = vmatmul.mubr.f32.gmra.mxu0 %v633
        %v712 = vpop.f32.mrf.mxu0
        %v713 = vadd.f32 %v617, %v712
        %v714 = vpop.f32.mrf.mxu0
        %715 = vmatprep.mubr.f32.mxu0 0.0
        %716 = vmatmul.mubr.f32.gmra.mxu0 %v636
        %v717 = vpop.f32.mrf.mxu0
        %v718 = vadd.f32 %v622, %v717
        %v719 = vpop.f32.mrf.mxu0
        %720 = vmatprep.mubr.f32.mxu0 0.0
        %721 = vmatmul.mubr.f32.gmra.mxu0 %v639
        %v722 = vpop.f32.mrf.mxu0
        %v723 = vadd.f32 %v627, %v722
        %v724 = vpop.f32.mrf.mxu0
        %725 = vdwg.mxu0
        %vm726 = vcmp.ge.f32.partialorder %v708, 0.0
        %vm727 = vcmp.ge.f32.partialorder %v713, 0.0
        %vm728 = vcmp.ge.f32.partialorder %v718, 0.0
        %vm729 = vcmp.ge.f32.partialorder %v723, 0.0
        %v730 = vstv %s607
        %v731 = vmul.f32 %v730, %v708
        %v732 = vmul.f32 %v730, %v713
        %v733 = vmul.f32 %v730, %v718
        %v734 = vmul.f32 %v730, %v723
        %v735 = vsel %vm726, %v708, %v731
        %v736 = vsel %vm727, %v713, %v732
        %v737 = vsel %vm728, %v718, %v733
        %v738 = vsel %vm729, %v723, %v734
        %v739 = vmul.f32 %v735, %v431
        %v740 = vmul.f32 %v736, %v431
        %v741 = vmul.f32 %v737, %v431
        %v742 = vmul.f32 %v738, %v431
        %743 = vadd.xlane.f32.xlu0 %v739
        %v744 = vpop.xlane.xlu0 %743
        %745 = vadd.xlane.f32.xlu0 %v740
        %v746 = vpop.xlane.xlu0 %745
        %747 = vadd.xlane.f32.xlu0 %v741
        %v748 = vpop.xlane.xlu0 %747
        %749 = vadd.xlane.f32.xlu0 %v742
        %v750 = vpop.xlane.xlu0 %749
        %v751 = vadd.f32 %v744, %v746
        %v752 = vadd.f32 %v751, %v748
        %v753 = vadd.f32 %v752, %v750
        %v754 = vrot.slane %v753, 4
        %v755 = vadd.f32 %v753, %v754
        %v756 = vrot.slane %v755, 2
        %v757 = vadd.f32 %v755, %v756
        %v758 = vrot.slane %v757, 1
        %v759 = vadd.f32 %v757, %v758
        %v760 = vmul.f32 %v739, %v739
        %v761 = vmul.f32 %v740, %v740
        %v762 = vmul.f32 %v741, %v741
        %v763 = vmul.f32 %v742, %v742
        %764 = vadd.xlane.f32.xlu0 %v760
        %v765 = vpop.xlane.xlu0 %764
        %766 = vadd.xlane.f32.xlu0 %v761
        %v767 = vpop.xlane.xlu0 %766
        %768 = vadd.xlane.f32.xlu0 %v762
        %v769 = vpop.xlane.xlu0 %768
        %770 = vadd.xlane.f32.xlu0 %v763
        %v771 = vpop.xlane.xlu0 %770
        %v772 = vadd.f32 %v765, %v767
        %v773 = vadd.f32 %v772, %v769
        %v774 = vadd.f32 %v773, %v771
        %v775 = vrot.slane %v774, 4
        %v776 = vadd.f32 %v774, %v775
        %v777 = vrot.slane %v776, 2
        %v778 = vadd.f32 %v776, %v777
        %v779 = vrot.slane %v778, 1
        %v780 = vadd.f32 %v778, %v779
        %v781 = vmul.f32 %v759, 0.001953125
        %v782 = vmul.f32 %v780, 0.001953125
        %v783 = vmul.f32 %v781, %v781
        %v784 = vsub.f32 %v782, %v783
        %v785 = vmax.f32 %v784, 0.0
        %v786 = vadd.f32 %v785, 1e-08
        %v787 = vrsqrt.pop %v786
        %v788 = vsub.f32 %v735, %v781
        %v789 = vsub.f32 %v736, %v781
        %v790 = vsub.f32 %v737, %v781
        %v791 = vsub.f32 %v738, %v781
        %v792 = vmul.f32 %v788, %v787
        %v793 = vmul.f32 %v789, %v787
        %v794 = vmul.f32 %v790, %v787
        %v795 = vmul.f32 %v791, %v787
        %796 = vset.pattern.permute.xlu0 1
        %797 = vperm.xlu0 %796, %v595
        %v798 = vpop.permute.xlu0 %797
        %800 = vset.pattern.permute.xlu0 1
        %801 = vperm.xlu0 %800, %v596
        %v802 = vpop.permute.xlu0 %801
        %804 = vset.pattern.permute.xlu0 1
        %805 = vperm.xlu0 %804, %v597
        %v806 = vpop.permute.xlu0 %805
        %808 = vset.pattern.permute.xlu0 1
        %809 = vperm.xlu0 %808, %v598
        %v810 = vpop.permute.xlu0 %809
        %v812 = vmul.f32 %v792, %v798
        %v813 = vmul.f32 %v793, %v802
        %v814 = vmul.f32 %v794, %v806
        %v815 = vmul.f32 %v795, %v810
        %816 = vset.pattern.permute.xlu0 2
        %817 = vperm.xlu0 %816, %v595
        %v818 = vpop.permute.xlu0 %817
        %820 = vset.pattern.permute.xlu0 2
        %821 = vperm.xlu0 %820, %v596
        %v822 = vpop.permute.xlu0 %821
        %824 = vset.pattern.permute.xlu0 2
        %825 = vperm.xlu0 %824, %v597
        %v826 = vpop.permute.xlu0 %825
        %828 = vset.pattern.permute.xlu0 2
        %829 = vperm.xlu0 %828, %v598
        %v830 = vpop.permute.xlu0 %829
        %v832 = vadd.f32 %v812, %v818
        %v833 = vadd.f32 %v813, %v822
        %v834 = vadd.f32 %v814, %v826
        %v835 = vadd.f32 %v815, %v830
        %836 = vrot.lane.b32.xlu0 %v832, 1
        %v837 = vpop.permute.xlu0 %836
        %838 = vrot.lane.b32.xlu0 %v833, 1
        %v839 = vpop.permute.xlu0 %838
        %840 = vrot.lane.b32.xlu0 %v834, 1
        %v841 = vpop.permute.xlu0 %840
        %842 = vrot.lane.b32.xlu0 %v835, 1
        %v843 = vpop.permute.xlu0 %842
        %v844 = vadd.s32 %v428, 4294967295
        %vm845 = vcmp.ge.s32.totalorder %v844, 0
        %vm846 = vcmp.le.s32.totalorder %v844, 15
        %vm847 = vmand %vm845, %vm846
        %v848 = vsel %vm847, 1, 0
        %vm849 = vcmp.eq.s32.totalorder %v848, 1
        %v850 = vsel %vm849, %v837, 0.0
        %v851 = vsel %vm849, %v839, 0.0
        %v852 = vsel %vm849, %v841, 0.0
        %v853 = vsel %vm849, %v843, 0.0
        %854 = vset.pattern.permute.xlu0 6
        %855 = vperm.xlu0 %854, %v595
        %v856 = vpop.permute.xlu0 %855
        %858 = vset.pattern.permute.xlu0 6
        %859 = vperm.xlu0 %858, %v596
        %v860 = vpop.permute.xlu0 %859
        %862 = vset.pattern.permute.xlu0 6
        %863 = vperm.xlu0 %862, %v597
        %v864 = vpop.permute.xlu0 %863
        %866 = vset.pattern.permute.xlu0 6
        %867 = vperm.xlu0 %866, %v598
        %v868 = vpop.permute.xlu0 %867
        %v870 = vmul.f32 %v856, %v850
        %v871 = vmul.f32 %v860, %v851
        %v872 = vmul.f32 %v864, %v852
        %v873 = vmul.f32 %v868, %v853
        %v874 = vadd.f32 %v870, 0.0
        %v875 = vadd.f32 %v871, 0.0
        %v876 = vadd.f32 %v872, 0.0
        %v877 = vadd.f32 %v873, 0.0
        %878 = vset.pattern.permute.xlu0 7
        %879 = vperm.xlu0 %878, %v595
        %v880 = vpop.permute.xlu0 %879
        %882 = vset.pattern.permute.xlu0 7
        %883 = vperm.xlu0 %882, %v596
        %v884 = vpop.permute.xlu0 %883
        %886 = vset.pattern.permute.xlu0 7
        %887 = vperm.xlu0 %886, %v597
        %v888 = vpop.permute.xlu0 %887
        %890 = vset.pattern.permute.xlu0 7
        %891 = vperm.xlu0 %890, %v598
        %v892 = vpop.permute.xlu0 %891
        %v894 = vmul.f32 %v880, %v832
        %v895 = vmul.f32 %v884, %v833
        %v896 = vmul.f32 %v888, %v834
        %v897 = vmul.f32 %v892, %v835
        %v898 = vadd.f32 %v874, %v894
        %v899 = vadd.f32 %v875, %v895
        %v900 = vadd.f32 %v876, %v896
        %v901 = vadd.f32 %v877, %v897
        %902 = vrot.lane.b32.xlu0 %v832, 127
        %v903 = vpop.permute.xlu0 %902
        %904 = vrot.lane.b32.xlu0 %v833, 127
        %v905 = vpop.permute.xlu0 %904
        %906 = vrot.lane.b32.xlu0 %v834, 127
        %v907 = vpop.permute.xlu0 %906
        %908 = vrot.lane.b32.xlu0 %v835, 127
        %v909 = vpop.permute.xlu0 %908
        %v910 = vadd.s32 %v428, 1
        %vm911 = vcmp.ge.s32.totalorder %v910, 0
        %vm912 = vcmp.le.s32.totalorder %v910, 15
        %vm913 = vmand %vm911, %vm912
        %v914 = vsel %vm913, 1, 0
        %vm915 = vcmp.eq.s32.totalorder %v914, 1
        %v916 = vsel %vm915, %v903, 0.0
        %v917 = vsel %vm915, %v905, 0.0
        %v918 = vsel %vm915, %v907, 0.0
        %v919 = vsel %vm915, %v909, 0.0
        %920 = vset.pattern.permute.xlu0 8
        %921 = vperm.xlu0 %920, %v595
        %v922 = vpop.permute.xlu0 %921
        %924 = vset.pattern.permute.xlu0 8
        %925 = vperm.xlu0 %924, %v596
        %v926 = vpop.permute.xlu0 %925
        %928 = vset.pattern.permute.xlu0 8
        %929 = vperm.xlu0 %928, %v597
        %v930 = vpop.permute.xlu0 %929
        %932 = vset.pattern.permute.xlu0 8
        %933 = vperm.xlu0 %932, %v598
        %v934 = vpop.permute.xlu0 %933
        %v936 = vmul.f32 %v922, %v916
        %v937 = vmul.f32 %v926, %v917
        %v938 = vmul.f32 %v930, %v918
        %v939 = vmul.f32 %v934, %v919
        %v940 = vadd.f32 %v898, %v936
        %v941 = vadd.f32 %v899, %v937
        %v942 = vadd.f32 %v900, %v938
        %v943 = vadd.f32 %v901, %v939
        %944 = vset.pattern.permute.xlu0 5
        %945 = vperm.xlu0 %944, %v595
        %v946 = vpop.permute.xlu0 %945
        %948 = vset.pattern.permute.xlu0 5
        %949 = vperm.xlu0 %948, %v596
        %v950 = vpop.permute.xlu0 %949
        %952 = vset.pattern.permute.xlu0 5
        %953 = vperm.xlu0 %952, %v597
        %v954 = vpop.permute.xlu0 %953
        %956 = vset.pattern.permute.xlu0 5
        %957 = vperm.xlu0 %956, %v598
        %v958 = vpop.permute.xlu0 %957
        %v960 = vadd.f32 %v940, %v946
        %v961 = vadd.f32 %v941, %v950
        %v962 = vadd.f32 %v942, %v954
        %v963 = vadd.f32 %v943, %v958
        %vm964 = vcmp.ge.f32.partialorder %v960, 0.0
        %vm965 = vcmp.ge.f32.partialorder %v961, 0.0
        %vm966 = vcmp.ge.f32.partialorder %v962, 0.0
        %vm967 = vcmp.ge.f32.partialorder %v963, 0.0
        %v968 = vstv %s608
        %v969 = vmul.f32 %v968, %v960
        %v970 = vmul.f32 %v968, %v961
        %v971 = vmul.f32 %v968, %v962
        %v972 = vmul.f32 %v968, %v963
        %v973 = vsel %vm964, %v960, %v969
        %v974 = vsel %vm965, %v961, %v970
        %v975 = vsel %vm966, %v962, %v971
        %v976 = vsel %vm967, %v963, %v972
        %v977 = vmul.f32 %v973, %v431
        %v978 = vmul.f32 %v974, %v431
        %v979 = vmul.f32 %v975, %v431
        %v980 = vmul.f32 %v976, %v431
        %981 = vadd.xlane.f32.xlu0 %v977
        %v982 = vpop.xlane.xlu0 %981
        %983 = vadd.xlane.f32.xlu0 %v978
        %v984 = vpop.xlane.xlu0 %983
        %985 = vadd.xlane.f32.xlu0 %v979
        %v986 = vpop.xlane.xlu0 %985
        %987 = vadd.xlane.f32.xlu0 %v980
        %v988 = vpop.xlane.xlu0 %987
        %v989 = vadd.f32 %v982, %v984
        %v990 = vadd.f32 %v989, %v986
        %v991 = vadd.f32 %v990, %v988
        %v992 = vrot.slane %v991, 4
        %v993 = vadd.f32 %v991, %v992
        %v994 = vrot.slane %v993, 2
        %v995 = vadd.f32 %v993, %v994
        %v996 = vrot.slane %v995, 1
        %v997 = vadd.f32 %v995, %v996
        %v998 = vmul.f32 %v977, %v977
        %v999 = vmul.f32 %v978, %v978
        %v1000 = vmul.f32 %v979, %v979
        %v1001 = vmul.f32 %v980, %v980
        %1002 = vadd.xlane.f32.xlu0 %v998
        %v1003 = vpop.xlane.xlu0 %1002
        %1004 = vadd.xlane.f32.xlu0 %v999
        %v1005 = vpop.xlane.xlu0 %1004
        %1006 = vadd.xlane.f32.xlu0 %v1000
        %v1007 = vpop.xlane.xlu0 %1006
        %1008 = vadd.xlane.f32.xlu0 %v1001
        %v1009 = vpop.xlane.xlu0 %1008
        %v1010 = vadd.f32 %v1003, %v1005
        %v1011 = vadd.f32 %v1010, %v1007
        %v1012 = vadd.f32 %v1011, %v1009
        %v1013 = vrot.slane %v1012, 4
        %v1014 = vadd.f32 %v1012, %v1013
        %v1015 = vrot.slane %v1014, 2
        %v1016 = vadd.f32 %v1014, %v1015
        %v1017 = vrot.slane %v1016, 1
        %v1018 = vadd.f32 %v1016, %v1017
        %v1019 = vmul.f32 %v997, 0.001953125
        %v1020 = vmul.f32 %v1018, 0.001953125
        %v1021 = vmul.f32 %v1019, %v1019
        %v1022 = vsub.f32 %v1020, %v1021
        %v1023 = vmax.f32 %v1022, 0.0
        %v1024 = vadd.f32 %v1023, 1e-08
        %v1025 = vrsqrt.pop %v1024
        %v1026 = vsub.f32 %v973, %v1019
        %v1027 = vsub.f32 %v974, %v1019
        %v1028 = vsub.f32 %v975, %v1019
        %v1029 = vsub.f32 %v976, %v1019
        %v1030 = vmul.f32 %v1026, %v1025
        %v1031 = vmul.f32 %v1027, %v1025
        %v1032 = vmul.f32 %v1028, %v1025
        %v1033 = vmul.f32 %v1029, %v1025
        %1034 = vset.pattern.permute.xlu0 3
        %1035 = vperm.xlu0 %1034, %v595
        %v1036 = vpop.permute.xlu0 %1035
        %1038 = vset.pattern.permute.xlu0 3
        %1039 = vperm.xlu0 %1038, %v596
        %v1040 = vpop.permute.xlu0 %1039
        %1042 = vset.pattern.permute.xlu0 3
        %1043 = vperm.xlu0 %1042, %v597
        %v1044 = vpop.permute.xlu0 %1043
        %1046 = vset.pattern.permute.xlu0 3
        %1047 = vperm.xlu0 %1046, %v598
        %v1048 = vpop.permute.xlu0 %1047
        %v1050 = vmul.f32 %v1030, %v1036
        %v1051 = vmul.f32 %v1031, %v1040
        %v1052 = vmul.f32 %v1032, %v1044
        %v1053 = vmul.f32 %v1033, %v1048
        %1054 = vset.pattern.permute.xlu0 4
        %1055 = vperm.xlu0 %1054, %v595
        %v1056 = vpop.permute.xlu0 %1055
        %1058 = vset.pattern.permute.xlu0 4
        %1059 = vperm.xlu0 %1058, %v596
        %v1060 = vpop.permute.xlu0 %1059
        %1062 = vset.pattern.permute.xlu0 4
        %1063 = vperm.xlu0 %1062, %v597
        %v1064 = vpop.permute.xlu0 %1063
        %1066 = vset.pattern.permute.xlu0 4
        %1067 = vperm.xlu0 %1066, %v598
        %v1068 = vpop.permute.xlu0 %1067
        %v1070 = vadd.f32 %v1050, %v1056
        %v1071 = vadd.f32 %v1051, %v1060
        %v1072 = vadd.f32 %v1052, %v1064
        %v1073 = vadd.f32 %v1053, %v1068
        %1075 = vset.pattern.permute.xlu0 0
        %1076 = vperm.xlu0 %1075, %v603
        %v1077 = vpop.permute.xlu0 %1076
        %1080 = vset.pattern.permute.xlu0 0
        %1081 = vperm.xlu0 %1080, %v604
        %v1082 = vpop.permute.xlu0 %1081
        %1085 = vset.pattern.permute.xlu0 0
        %1086 = vperm.xlu0 %1085, %v605
        %v1087 = vpop.permute.xlu0 %1086
        %1090 = vset.pattern.permute.xlu0 0
        %1091 = vperm.xlu0 %1090, %v606
        %v1092 = vpop.permute.xlu0 %1091
        %vm1094 = vcmask 261120
        %v1096 = vsel %vm1094, %v599, 0
        %v1099 = vsel %vm1094, %v600, 0
        %v1102 = vsel %vm1094, %v601, 0
        %v1105 = vsel %vm1094, %v602, 0
        %1107 = vmatprep.subr.mxu0 0.0
        %1108 = vmatpush1.msra.mxu0 0.0
        %1109 = vmatprep.subr.mxu0 0.0
        %1110 = vmatpush1.msra.mxu0 0.0
        %1111 = vmatprep.subr.mxu0 0.0
        %1112 = vmatpush1.msra.mxu0 0.0
        %1113 = vmatprep.subr.mxu0 0.0
        %1114 = vmatpush1.msra.mxu0 0.0
        %1115 = vmatprep.subr.mxu0 0.0
        %1116 = vmatpush1.msra.mxu0 0.0
        %1117 = vmatprep.subr.mxu0 0.0
        %1118 = vmatpush1.msra.mxu0 0.0
        %1119 = vmatprep.subr.mxu0 0.0
        %1120 = vmatpush1.msra.mxu0 0.0
        %1121 = vmatprep.subr.mxu0 0.0
        %1122 = vmatpush1.msra.mxu0 0.0
        %1123 = vmatprep.subr.mxu0 0.0
        %1124 = vmatpush1.msra.mxu0 0.0
        %1125 = vmatprep.subr.mxu0 0.0
        %1126 = vmatpush1.msra.mxu0 0.0
        %1127 = vmatprep.subr.mxu0 0.0
        %1128 = vmatpush1.msra.mxu0 0.0
        %1129 = vmatprep.subr.mxu0 0.0
        %1130 = vmatpush1.msra.mxu0 0.0
        %1131 = vmatprep.subr.mxu0 0.0
        %1132 = vmatpush1.msra.mxu0 %v1073
        %1133 = vmatprep.subr.mxu0 0.0
        %1134 = vmatpush1.msra.mxu0 %v1072
        %1135 = vmatprep.subr.mxu0 0.0
        %1136 = vmatpush1.msra.mxu0 %v1071
        %1137 = vmatprep.subr.mxu0 0.0
        %1138 = vmatpush1.msra.mxu0 %v1070
        %1139 = vmatprep.subr.mxu0 0.0
        %1140 = vmatpush2.msra.mxu0 0.0
        %1141 = vmatprep.subr.mxu0 0.0
        %1142 = vmatpush2.msra.mxu0 0.0
        %1143 = vmatprep.subr.mxu0 0.0
        %1144 = vmatpush2.msra.mxu0 0.0
        %1145 = vmatprep.subr.mxu0 0.0
        %1146 = vmatpush2.msra.mxu0 0.0
        %1147 = vmatprep.subr.mxu0 0.0
        %1148 = vmatpush2.msra.mxu0 0.0
        %1149 = vmatprep.subr.mxu0 0.0
        %1150 = vmatpush2.msra.mxu0 0.0
        %1151 = vmatprep.subr.mxu0 0.0
        %1152 = vmatpush2.msra.mxu0 0.0
        %1153 = vmatprep.subr.mxu0 0.0
        %1154 = vmatpush2.msra.mxu0 0.0
        %1155 = vmatprep.subr.mxu0 0.0
        %1156 = vmatpush2.msra.mxu0 0.0
        %1157 = vmatprep.subr.mxu0 0.0
        %1158 = vmatpush2.msra.mxu0 0.0
        %1159 = vmatprep.subr.mxu0 0.0
        %1160 = vmatpush2.msra.mxu0 0.0
        %1161 = vmatprep.subr.mxu0 0.0
        %1162 = vmatpush2.msra.mxu0 0.0
        %1163 = vmatprep.subr.mxu0 0.0
        %1164 = vmatpush2.msra.mxu0 0.0
        %1165 = vmatprep.subr.mxu0 0.0
        %1166 = vmatpush2.msra.mxu0 0.0
        %1167 = vmatprep.subr.mxu0 0.0
        %1168 = vmatpush2.msra.mxu0 0.0
        %1169 = vmatprep.subr.mxu0 0.0
        %1170 = vmatpush2.msra.mxu0 0.0
        %1171 = vmatprep.mubr.f32.mxu0 0.0
        %1172 = vmatmul.mubr.f32.gmra.mxu0 %v1096
        %v1173 = vpop.f32.mrf.mxu0
        %v1174 = vadd.f32 %v1077, %v1173
        %v1175 = vpop.f32.mrf.mxu0
        %1176 = vmatprep.mubr.f32.mxu0 0.0
        %1177 = vmatmul.mubr.f32.gmra.mxu0 %v1099
        %v1178 = vpop.f32.mrf.mxu0
        %v1179 = vadd.f32 %v1082, %v1178
        %v1180 = vpop.f32.mrf.mxu0
        %1181 = vmatprep.mubr.f32.mxu0 0.0
        %1182 = vmatmul.mubr.f32.gmra.mxu0 %v1102
        %v1183 = vpop.f32.mrf.mxu0
        %v1184 = vadd.f32 %v1087, %v1183
        %v1185 = vpop.f32.mrf.mxu0
        %1186 = vmatprep.mubr.f32.mxu0 0.0
        %1187 = vmatmul.mubr.f32.gmra.mxu0 %v1105
        %v1188 = vpop.f32.mrf.mxu0
        %v1189 = vadd.f32 %v1092, %v1188
        %v1190 = vpop.f32.mrf.mxu0
        %1191 = vdwg.mxu0
        %v1192 = vadd.f32 %v583, %v1174
        %v1193 = vadd.f32 %v588, %v1179
        %v1194 = vadd.f32 %v1184, 0.0
        %v1195 = vadd.f32 %v1189, 0.0
        %s1196 = scalar_lea.vmem %s4, 32
        %v1197 = vld [vmem:[%s1196] sm:$0xff]
        %v1198 = vld [vmem:[%s1196 + $0x8] sm:$0xff]
        %v1199 = vld [vmem:[%s1196 + $0x10] sm:$0xff]
        %v1200 = vld [vmem:[%s1196 + $0x18] sm:$0xff]
        %s1201 = scalar_lea.vmem %s5, 32
        %v1202 = vld [vmem:[%s1201] sm:$0xff]
        %v1203 = vld [vmem:[%s1201 + $0x8] sm:$0xff]
        %v1204 = vld [vmem:[%s1201 + $0x10] sm:$0xff]
        %v1205 = vld [vmem:[%s1201 + $0x18] sm:$0xff]
        %s1206 = scalar_lea.vmem %s6, 32
        %v1207 = vld [vmem:[%s1206] sm:$0xff]
        %v1208 = vld [vmem:[%s1206 + $0x8] sm:$0xff]
        %v1209 = vld [vmem:[%s1206 + $0x10] sm:$0xff]
        %v1210 = vld [vmem:[%s1206 + $0x18] sm:$0xff]
        %s1211 = scalar_lea.vmem %s7, 32
        %v1212 = vld [vmem:[%s1211] sm:$0xff]
        %v1213 = vld [vmem:[%s1211 + $0x8] sm:$0xff]
        %v1214 = vld [vmem:[%s1211 + $0x10] sm:$0xff]
        %v1215 = vld [vmem:[%s1211 + $0x18] sm:$0xff]
        %s1216 = sld [smem:[#allocation3 + $0x80]]
        %s1217 = sld [smem:[#allocation3 + $0x81]]
        %1219 = vset.pattern.permute.xlu0 0
        %1220 = vperm.xlu0 %1219, %v1202
        %v1221 = vpop.permute.xlu0 %1220
        %1224 = vset.pattern.permute.xlu0 0
        %1225 = vperm.xlu0 %1224, %v1203
        %v1226 = vpop.permute.xlu0 %1225
        %1229 = vset.pattern.permute.xlu0 0
        %1230 = vperm.xlu0 %1229, %v1204
        %v1231 = vpop.permute.xlu0 %1230
        %1234 = vset.pattern.permute.xlu0 0
        %1235 = vperm.xlu0 %1234, %v1205
        %v1236 = vpop.permute.xlu0 %1235
        %v1239 = vsel %vm509, %v1197, 0
        %v1242 = vsel %vm509, %v1198, 0
        %v1245 = vsel %vm509, %v1199, 0
        %v1248 = vsel %vm509, %v1200, 0
        %1250 = vmatprep.subr.mxu0 0.0
        %1251 = vmatpush1.msra.mxu0 0.0
        %1252 = vmatprep.subr.mxu0 0.0
        %1253 = vmatpush1.msra.mxu0 0.0
        %1254 = vmatprep.subr.mxu0 0.0
        %1255 = vmatpush1.msra.mxu0 0.0
        %1256 = vmatprep.subr.mxu0 0.0
        %1257 = vmatpush1.msra.mxu0 0.0
        %1258 = vmatprep.subr.mxu0 0.0
        %1259 = vmatpush1.msra.mxu0 0.0
        %1260 = vmatprep.subr.mxu0 0.0
        %1261 = vmatpush1.msra.mxu0 0.0
        %1262 = vmatprep.subr.mxu0 0.0
        %1263 = vmatpush1.msra.mxu0 0.0
        %1264 = vmatprep.subr.mxu0 0.0
        %1265 = vmatpush1.msra.mxu0 0.0
        %1266 = vmatprep.subr.mxu0 0.0
        %1267 = vmatpush1.msra.mxu0 0.0
        %1268 = vmatprep.subr.mxu0 0.0
        %1269 = vmatpush1.msra.mxu0 0.0
        %1270 = vmatprep.subr.mxu0 0.0
        %1271 = vmatpush1.msra.mxu0 0.0
        %1272 = vmatprep.subr.mxu0 0.0
        %1273 = vmatpush1.msra.mxu0 0.0
        %1274 = vmatprep.subr.mxu0 0.0
        %1275 = vmatpush1.msra.mxu0 0.0
        %1276 = vmatprep.subr.mxu0 0.0
        %1277 = vmatpush1.msra.mxu0 0.0
        %1278 = vmatprep.subr.mxu0 0.0
        %1279 = vmatpush1.msra.mxu0 %v1193
        %1280 = vmatprep.subr.mxu0 0.0
        %1281 = vmatpush1.msra.mxu0 %v1192
        %1282 = vmatprep.subr.mxu0 0.0
        %1283 = vmatpush2.msra.mxu0 0.0
        %1284 = vmatprep.subr.mxu0 0.0
        %1285 = vmatpush2.msra.mxu0 0.0
        %1286 = vmatprep.subr.mxu0 0.0
        %1287 = vmatpush2.msra.mxu0 0.0
        %1288 = vmatprep.subr.mxu0 0.0
        %1289 = vmatpush2.msra.mxu0 0.0
        %1290 = vmatprep.subr.mxu0 0.0
        %1291 = vmatpush2.msra.mxu0 0.0
        %1292 = vmatprep.subr.mxu0 0.0
        %1293 = vmatpush2.msra.mxu0 0.0
        %1294 = vmatprep.subr.mxu0 0.0
        %1295 = vmatpush2.msra.mxu0 0.0
        %1296 = vmatprep.subr.mxu0 0.0
        %1297 = vmatpush2.msra.mxu0 0.0
        %1298 = vmatprep.subr.mxu0 0.0
        %1299 = vmatpush2.msra.mxu0 0.0
        %1300 = vmatprep.subr.mxu0 0.0
        %1301 = vmatpush2.msra.mxu0 0.0
        %1302 = vmatprep.subr.mxu0 0.0
        %1303 = vmatpush2.msra.mxu0 0.0
        %1304 = vmatprep.subr.mxu0 0.0
        %1305 = vmatpush2.msra.mxu0 0.0
        %1306 = vmatprep.subr.mxu0 0.0
        %1307 = vmatpush2.msra.mxu0 0.0
        %1308 = vmatprep.subr.mxu0 0.0
        %1309 = vmatpush2.msra.mxu0 0.0
        %1310 = vmatprep.subr.mxu0 0.0
        %1311 = vmatpush2.msra.mxu0 0.0
        %1312 = vmatprep.subr.mxu0 0.0
        %1313 = vmatpush2.msra.mxu0 0.0
        %1314 = vmatprep.mubr.f32.mxu0 0.0
        %1315 = vmatmul.mubr.f32.gmra.mxu0 %v1239
        %v1316 = vpop.f32.mrf.mxu0
        %v1317 = vadd.f32 %v1221, %v1316
        %v1318 = vpop.f32.mrf.mxu0
        %1319 = vmatprep.mubr.f32.mxu0 0.0
        %1320 = vmatmul.mubr.f32.gmra.mxu0 %v1242
        %v1321 = vpop.f32.mrf.mxu0
        %v1322 = vadd.f32 %v1226, %v1321
        %v1323 = vpop.f32.mrf.mxu0
        %1324 = vmatprep.mubr.f32.mxu0 0.0
        %1325 = vmatmul.mubr.f32.gmra.mxu0 %v1245
        %v1326 = vpop.f32.mrf.mxu0
        %v1327 = vadd.f32 %v1231, %v1326
        %v1328 = vpop.f32.mrf.mxu0
        %1329 = vmatprep.mubr.f32.mxu0 0.0
        %1330 = vmatmul.mubr.f32.gmra.mxu0 %v1248
        %v1331 = vpop.f32.mrf.mxu0
        %v1332 = vadd.f32 %v1236, %v1331
        %v1333 = vpop.f32.mrf.mxu0
        %1334 = vdwg.mxu0
        %vm1335 = vcmp.ge.f32.partialorder %v1317, 0.0
        %vm1336 = vcmp.ge.f32.partialorder %v1322, 0.0
        %vm1337 = vcmp.ge.f32.partialorder %v1327, 0.0
        %vm1338 = vcmp.ge.f32.partialorder %v1332, 0.0
        %v1339 = vstv %s1216
        %v1340 = vmul.f32 %v1339, %v1317
        %v1341 = vmul.f32 %v1339, %v1322
        %v1342 = vmul.f32 %v1339, %v1327
        %v1343 = vmul.f32 %v1339, %v1332
        %v1344 = vsel %vm1335, %v1317, %v1340
        %v1345 = vsel %vm1336, %v1322, %v1341
        %v1346 = vsel %vm1337, %v1327, %v1342
        %v1347 = vsel %vm1338, %v1332, %v1343
        %v1348 = vmul.f32 %v1344, %v431
        %v1349 = vmul.f32 %v1345, %v431
        %v1350 = vmul.f32 %v1346, %v431
        %v1351 = vmul.f32 %v1347, %v431
        %1352 = vadd.xlane.f32.xlu0 %v1348
        %v1353 = vpop.xlane.xlu0 %1352
        %1354 = vadd.xlane.f32.xlu0 %v1349
        %v1355 = vpop.xlane.xlu0 %1354
        %1356 = vadd.xlane.f32.xlu0 %v1350
        %v1357 = vpop.xlane.xlu0 %1356
        %1358 = vadd.xlane.f32.xlu0 %v1351
        %v1359 = vpop.xlane.xlu0 %1358
        %v1360 = vadd.f32 %v1353, %v1355
        %v1361 = vadd.f32 %v1360, %v1357
        %v1362 = vadd.f32 %v1361, %v1359
        %v1363 = vrot.slane %v1362, 4
        %v1364 = vadd.f32 %v1362, %v1363
        %v1365 = vrot.slane %v1364, 2
        %v1366 = vadd.f32 %v1364, %v1365
        %v1367 = vrot.slane %v1366, 1
        %v1368 = vadd.f32 %v1366, %v1367
        %v1369 = vmul.f32 %v1348, %v1348
        %v1370 = vmul.f32 %v1349, %v1349
        %v1371 = vmul.f32 %v1350, %v1350
        %v1372 = vmul.f32 %v1351, %v1351
        %1373 = vadd.xlane.f32.xlu0 %v1369
        %v1374 = vpop.xlane.xlu0 %1373
        %1375 = vadd.xlane.f32.xlu0 %v1370
        %v1376 = vpop.xlane.xlu0 %1375
        %1377 = vadd.xlane.f32.xlu0 %v1371
        %v1378 = vpop.xlane.xlu0 %1377
        %1379 = vadd.xlane.f32.xlu0 %v1372
        %v1380 = vpop.xlane.xlu0 %1379
        %v1381 = vadd.f32 %v1374, %v1376
        %v1382 = vadd.f32 %v1381, %v1378
        %v1383 = vadd.f32 %v1382, %v1380
        %v1384 = vrot.slane %v1383, 4
        %v1385 = vadd.f32 %v1383, %v1384
        %v1386 = vrot.slane %v1385, 2
        %v1387 = vadd.f32 %v1385, %v1386
        %v1388 = vrot.slane %v1387, 1
        %v1389 = vadd.f32 %v1387, %v1388
        %v1390 = vmul.f32 %v1368, 0.001953125
        %v1391 = vmul.f32 %v1389, 0.001953125
        %v1392 = vmul.f32 %v1390, %v1390
        %v1393 = vsub.f32 %v1391, %v1392
        %v1394 = vmax.f32 %v1393, 0.0
        %v1395 = vadd.f32 %v1394, 1e-08
        %v1396 = vrsqrt.pop %v1395
        %v1397 = vsub.f32 %v1344, %v1390
        %v1398 = vsub.f32 %v1345, %v1390
        %v1399 = vsub.f32 %v1346, %v1390
        %v1400 = vsub.f32 %v1347, %v1390
        %v1401 = vmul.f32 %v1397, %v1396
        %v1402 = vmul.f32 %v1398, %v1396
        %v1403 = vmul.f32 %v1399, %v1396
        %v1404 = vmul.f32 %v1400, %v1396
        %1405 = vset.pattern.permute.xlu0 1
        %1406 = vperm.xlu0 %1405, %v1202
        %v1407 = vpop.permute.xlu0 %1406
        %1409 = vset.pattern.permute.xlu0 1
        %1410 = vperm.xlu0 %1409, %v1203
        %v1411 = vpop.permute.xlu0 %1410
        %1413 = vset.pattern.permute.xlu0 1
        %1414 = vperm.xlu0 %1413, %v1204
        %v1415 = vpop.permute.xlu0 %1414
        %1417 = vset.pattern.permute.xlu0 1
        %1418 = vperm.xlu0 %1417, %v1205
        %v1419 = vpop.permute.xlu0 %1418
        %v1421 = vmul.f32 %v1401, %v1407
        %v1422 = vmul.f32 %v1402, %v1411
        %v1423 = vmul.f32 %v1403, %v1415
        %v1424 = vmul.f32 %v1404, %v1419
        %1425 = vset.pattern.permute.xlu0 2
        %1426 = vperm.xlu0 %1425, %v1202
        %v1427 = vpop.permute.xlu0 %1426
        %1429 = vset.pattern.permute.xlu0 2
        %1430 = vperm.xlu0 %1429, %v1203
        %v1431 = vpop.permute.xlu0 %1430
        %1433 = vset.pattern.permute.xlu0 2
        %1434 = vperm.xlu0 %1433, %v1204
        %v1435 = vpop.permute.xlu0 %1434
        %1437 = vset.pattern.permute.xlu0 2
        %1438 = vperm.xlu0 %1437, %v1205
        %v1439 = vpop.permute.xlu0 %1438
        %v1441 = vadd.f32 %v1421, %v1427
        %v1442 = vadd.f32 %v1422, %v1431
        %v1443 = vadd.f32 %v1423, %v1435
        %v1444 = vadd.f32 %v1424, %v1439
        %1445 = vrot.lane.b32.xlu0 %v1441, 2
        %v1446 = vpop.permute.xlu0 %1445
        %1447 = vrot.lane.b32.xlu0 %v1442, 2
        %v1448 = vpop.permute.xlu0 %1447
        %1449 = vrot.lane.b32.xlu0 %v1443, 2
        %v1450 = vpop.permute.xlu0 %1449
        %1451 = vrot.lane.b32.xlu0 %v1444, 2
        %v1452 = vpop.permute.xlu0 %1451
        %v1453 = vadd.s32 %v428, 4294967294
        %vm1454 = vcmp.ge.s32.totalorder %v1453, 0
        %vm1455 = vcmp.le.s32.totalorder %v1453, 15
        %vm1456 = vmand %vm1454, %vm1455
        %v1457 = vsel %vm1456, 1, 0
        %vm1458 = vcmp.eq.s32.totalorder %v1457, 1
        %v1459 = vsel %vm1458, %v1446, 0.0
        %v1460 = vsel %vm1458, %v1448, 0.0
        %v1461 = vsel %vm1458, %v1450, 0.0
        %v1462 = vsel %vm1458, %v1452, 0.0
        %1463 = vset.pattern.permute.xlu0 6
        %1464 = vperm.xlu0 %1463, %v1202
        %v1465 = vpop.permute.xlu0 %1464
        %1467 = vset.pattern.permute.xlu0 6
        %1468 = vperm.xlu0 %1467, %v1203
        %v1469 = vpop.permute.xlu0 %1468
        %1471 = vset.pattern.permute.xlu0 6
        %1472 = vperm.xlu0 %1471, %v1204
        %v1473 = vpop.permute.xlu0 %1472
        %1475 = vset.pattern.permute.xlu0 6
        %1476 = vperm.xlu0 %1475, %v1205
        %v1477 = vpop.permute.xlu0 %1476
        %v1479 = vmul.f32 %v1465, %v1459
        %v1480 = vmul.f32 %v1469, %v1460
        %v1481 = vmul.f32 %v1473, %v1461
        %v1482 = vmul.f32 %v1477, %v1462
        %v1483 = vadd.f32 %v1479, 0.0
        %v1484 = vadd.f32 %v1480, 0.0
        %v1485 = vadd.f32 %v1481, 0.0
        %v1486 = vadd.f32 %v1482, 0.0
        %1487 = vset.pattern.permute.xlu0 7
        %1488 = vperm.xlu0 %1487, %v1202
        %v1489 = vpop.permute.xlu0 %1488
        %1491 = vset.pattern.permute.xlu0 7
        %1492 = vperm.xlu0 %1491, %v1203
        %v1493 = vpop.permute.xlu0 %1492
        %1495 = vset.pattern.permute.xlu0 7
        %1496 = vperm.xlu0 %1495, %v1204
        %v1497 = vpop.permute.xlu0 %1496
        %1499 = vset.pattern.permute.xlu0 7
        %1500 = vperm.xlu0 %1499, %v1205
        %v1501 = vpop.permute.xlu0 %1500
        %v1503 = vmul.f32 %v1489, %v1441
        %v1504 = vmul.f32 %v1493, %v1442
        %v1505 = vmul.f32 %v1497, %v1443
        %v1506 = vmul.f32 %v1501, %v1444
        %v1507 = vadd.f32 %v1483, %v1503
        %v1508 = vadd.f32 %v1484, %v1504
        %v1509 = vadd.f32 %v1485, %v1505
        %v1510 = vadd.f32 %v1486, %v1506
        %1511 = vrot.lane.b32.xlu0 %v1441, 126
        %v1512 = vpop.permute.xlu0 %1511
        %1513 = vrot.lane.b32.xlu0 %v1442, 126
        %v1514 = vpop.permute.xlu0 %1513
        %1515 = vrot.lane.b32.xlu0 %v1443, 126
        %v1516 = vpop.permute.xlu0 %1515
        %1517 = vrot.lane.b32.xlu0 %v1444, 126
        %v1518 = vpop.permute.xlu0 %1517
        %v1519 = vadd.s32 %v428, 2
        %vm1520 = vcmp.ge.s32.totalorder %v1519, 0
        %vm1521 = vcmp.le.s32.totalorder %v1519, 15
        %vm1522 = vmand %vm1520, %vm1521
        %v1523 = vsel %vm1522, 1, 0
        %vm1524 = vcmp.eq.s32.totalorder %v1523, 1
        %v1525 = vsel %vm1524, %v1512, 0.0
        %v1526 = vsel %vm1524, %v1514, 0.0
        %v1527 = vsel %vm1524, %v1516, 0.0
        %v1528 = vsel %vm1524, %v1518, 0.0
        %1529 = vset.pattern.permute.xlu0 8
        %1530 = vperm.xlu0 %1529, %v1202
        %v1531 = vpop.permute.xlu0 %1530
        %1533 = vset.pattern.permute.xlu0 8
        %1534 = vperm.xlu0 %1533, %v1203
        %v1535 = vpop.permute.xlu0 %1534
        %1537 = vset.pattern.permute.xlu0 8
        %1538 = vperm.xlu0 %1537, %v1204
        %v1539 = vpop.permute.xlu0 %1538
        %1541 = vset.pattern.permute.xlu0 8
        %1542 = vperm.xlu0 %1541, %v1205
        %v1543 = vpop.permute.xlu0 %1542
        %v1545 = vmul.f32 %v1531, %v1525
        %v1546 = vmul.f32 %v1535, %v1526
        %v1547 = vmul.f32 %v1539, %v1527
        %v1548 = vmul.f32 %v1543, %v1528
        %v1549 = vadd.f32 %v1507, %v1545
        %v1550 = vadd.f32 %v1508, %v1546
        %v1551 = vadd.f32 %v1509, %v1547
        %v1552 = vadd.f32 %v1510, %v1548
        %1553 = vset.pattern.permute.xlu0 5
        %1554 = vperm.xlu0 %1553, %v1202
        %v1555 = vpop.permute.xlu0 %1554
        %1557 = vset.pattern.permute.xlu0 5
        %1558 = vperm.xlu0 %1557, %v1203
        %v1559 = vpop.permute.xlu0 %1558
        %1561 = vset.pattern.permute.xlu0 5
        %1562 = vperm.xlu0 %1561, %v1204
        %v1563 = vpop.permute.xlu0 %1562
        %1565 = vset.pattern.permute.xlu0 5
        %1566 = vperm.xlu0 %1565, %v1205
        %v1567 = vpop.permute.xlu0 %1566
        %v1569 = vadd.f32 %v1549, %v1555
        %v1570 = vadd.f32 %v1550, %v1559
        %v1571 = vadd.f32 %v1551, %v1563
        %v1572 = vadd.f32 %v1552, %v1567
        %vm1573 = vcmp.ge.f32.partialorder %v1569, 0.0
        %vm1574 = vcmp.ge.f32.partialorder %v1570, 0.0
        %vm1575 = vcmp.ge.f32.partialorder %v1571, 0.0
        %vm1576 = vcmp.ge.f32.partialorder %v1572, 0.0
        %v1577 = vstv %s1217
        %v1578 = vmul.f32 %v1577, %v1569
        %v1579 = vmul.f32 %v1577, %v1570
        %v1580 = vmul.f32 %v1577, %v1571
        %v1581 = vmul.f32 %v1577, %v1572
        %v1582 = vsel %vm1573, %v1569, %v1578
        %v1583 = vsel %vm1574, %v1570, %v1579
        %v1584 = vsel %vm1575, %v1571, %v1580
        %v1585 = vsel %vm1576, %v1572, %v1581
        %v1586 = vmul.f32 %v1582, %v431
        %v1587 = vmul.f32 %v1583, %v431
        %v1588 = vmul.f32 %v1584, %v431
        %v1589 = vmul.f32 %v1585, %v431
        %1590 = vadd.xlane.f32.xlu0 %v1586
        %v1591 = vpop.xlane.xlu0 %1590
        %1592 = vadd.xlane.f32.xlu0 %v1587
        %v1593 = vpop.xlane.xlu0 %1592
        %1594 = vadd.xlane.f32.xlu0 %v1588
        %v1595 = vpop.xlane.xlu0 %1594
        %1596 = vadd.xlane.f32.xlu0 %v1589
        %v1597 = vpop.xlane.xlu0 %1596
        %v1598 = vadd.f32 %v1591, %v1593
        %v1599 = vadd.f32 %v1598, %v1595
        %v1600 = vadd.f32 %v1599, %v1597
        %v1601 = vrot.slane %v1600, 4
        %v1602 = vadd.f32 %v1600, %v1601
        %v1603 = vrot.slane %v1602, 2
        %v1604 = vadd.f32 %v1602, %v1603
        %v1605 = vrot.slane %v1604, 1
        %v1606 = vadd.f32 %v1604, %v1605
        %v1607 = vmul.f32 %v1586, %v1586
        %v1608 = vmul.f32 %v1587, %v1587
        %v1609 = vmul.f32 %v1588, %v1588
        %v1610 = vmul.f32 %v1589, %v1589
        %1611 = vadd.xlane.f32.xlu0 %v1607
        %v1612 = vpop.xlane.xlu0 %1611
        %1613 = vadd.xlane.f32.xlu0 %v1608
        %v1614 = vpop.xlane.xlu0 %1613
        %1615 = vadd.xlane.f32.xlu0 %v1609
        %v1616 = vpop.xlane.xlu0 %1615
        %1617 = vadd.xlane.f32.xlu0 %v1610
        %v1618 = vpop.xlane.xlu0 %1617
        %v1619 = vadd.f32 %v1612, %v1614
        %v1620 = vadd.f32 %v1619, %v1616
        %v1621 = vadd.f32 %v1620, %v1618
        %v1622 = vrot.slane %v1621, 4
        %v1623 = vadd.f32 %v1621, %v1622
        %v1624 = vrot.slane %v1623, 2
        %v1625 = vadd.f32 %v1623, %v1624
        %v1626 = vrot.slane %v1625, 1
        %v1627 = vadd.f32 %v1625, %v1626
        %v1628 = vmul.f32 %v1606, 0.001953125
        %v1629 = vmul.f32 %v1627, 0.001953125
        %v1630 = vmul.f32 %v1628, %v1628
        %v1631 = vsub.f32 %v1629, %v1630
        %v1632 = vmax.f32 %v1631, 0.0
        %v1633 = vadd.f32 %v1632, 1e-08
        %v1634 = vrsqrt.pop %v1633
        %v1635 = vsub.f32 %v1582, %v1628
        %v1636 = vsub.f32 %v1583, %v1628
        %v1637 = vsub.f32 %v1584, %v1628
        %v1638 = vsub.f32 %v1585, %v1628
        %v1639 = vmul.f32 %v1635, %v1634
        %v1640 = vmul.f32 %v1636, %v1634
        %v1641 = vmul.f32 %v1637, %v1634
        %v1642 = vmul.f32 %v1638, %v1634
        %1643 = vset.pattern.permute.xlu0 3
        %1644 = vperm.xlu0 %1643, %v1202
        %v1645 = vpop.permute.xlu0 %1644
        %1647 = vset.pattern.permute.xlu0 3
        %1648 = vperm.xlu0 %1647, %v1203
        %v1649 = vpop.permute.xlu0 %1648
        %1651 = vset.pattern.permute.xlu0 3
        %1652 = vperm.xlu0 %1651, %v1204
        %v1653 = vpop.permute.xlu0 %1652
        %1655 = vset.pattern.permute.xlu0 3
        %1656 = vperm.xlu0 %1655, %v1205
        %v1657 = vpop.permute.xlu0 %1656
        %v1659 = vmul.f32 %v1639, %v1645
        %v1660 = vmul.f32 %v1640, %v1649
        %v1661 = vmul.f32 %v1641, %v1653
        %v1662 = vmul.f32 %v1642, %v1657
        %1663 = vset.pattern.permute.xlu0 4
        %1664 = vperm.xlu0 %1663, %v1202
        %v1665 = vpop.permute.xlu0 %1664
        %1667 = vset.pattern.permute.xlu0 4
        %1668 = vperm.xlu0 %1667, %v1203
        %v1669 = vpop.permute.xlu0 %1668
        %1671 = vset.pattern.permute.xlu0 4
        %1672 = vperm.xlu0 %1671, %v1204
        %v1673 = vpop.permute.xlu0 %1672
        %1675 = vset.pattern.permute.xlu0 4
        %1676 = vperm.xlu0 %1675, %v1205
        %v1677 = vpop.permute.xlu0 %1676
        %v1679 = vadd.f32 %v1659, %v1665
        %v1680 = vadd.f32 %v1660, %v1669
        %v1681 = vadd.f32 %v1661, %v1673
        %v1682 = vadd.f32 %v1662, %v1677
        %1684 = vset.pattern.permute.xlu0 0
        %1685 = vperm.xlu0 %1684, %v1212
        %v1686 = vpop.permute.xlu0 %1685
        %1689 = vset.pattern.permute.xlu0 0
        %1690 = vperm.xlu0 %1689, %v1213
        %v1691 = vpop.permute.xlu0 %1690
        %1694 = vset.pattern.permute.xlu0 0
        %1695 = vperm.xlu0 %1694, %v1214
        %v1696 = vpop.permute.xlu0 %1695
        %1699 = vset.pattern.permute.xlu0 0
        %1700 = vperm.xlu0 %1699, %v1215
        %v1701 = vpop.permute.xlu0 %1700
        %v1704 = vsel %vm1094, %v1207, 0
        %v1707 = vsel %vm1094, %v1208, 0
        %v1710 = vsel %vm1094, %v1209, 0
        %v1713 = vsel %vm1094, %v1210, 0
        %1715 = vmatprep.subr.mxu0 0.0
        %1716 = vmatpush1.msra.mxu0 0.0
        %1717 = vmatprep.subr.mxu0 0.0
        %1718 = vmatpush1.msra.mxu0 0.0
        %1719 = vmatprep.subr.mxu0 0.0
        %1720 = vmatpush1.msra.mxu0 0.0
        %1721 = vmatprep.subr.mxu0 0.0
        %1722 = vmatpush1.msra.mxu0 0.0
        %1723 = vmatprep.subr.mxu0 0.0
        %1724 = vmatpush1.msra.mxu0 0.0
        %1725 = vmatprep.subr.mxu0 0.0
        %1726 = vmatpush1.msra.mxu0 0.0
        %1727 = vmatprep.subr.mxu0 0.0
        %1728 = vmatpush1.msra.mxu0 0.0
        %1729 = vmatprep.subr.mxu0 0.0
        %1730 = vmatpush1.msra.mxu0 0.0
        %1731 = vmatprep.subr.mxu0 0.0
        %1732 = vmatpush1.msra.mxu0 0.0
        %1733 = vmatprep.subr.mxu0 0.0
        %1734 = vmatpush1.msra.mxu0 0.0
        %1735 = vmatprep.subr.mxu0 0.0
        %1736 = vmatpush1.msra.mxu0 0.0
        %1737 = vmatprep.subr.mxu0 0.0
        %1738 = vmatpush1.msra.mxu0 0.0
        %1739 = vmatprep.subr.mxu0 0.0
        %1740 = vmatpush1.msra.mxu0 %v1682
        %1741 = vmatprep.subr.mxu0 0.0
        %1742 = vmatpush1.msra.mxu0 %v1681
        %1743 = vmatprep.subr.mxu0 0.0
        %1744 = vmatpush1.msra.mxu0 %v1680
        %1745 = vmatprep.subr.mxu0 0.0
        %1746 = vmatpush1.msra.mxu0 %v1679
        %1747 = vmatprep.subr.mxu0 0.0
        %1748 = vmatpush2.msra.mxu0 0.0
        %1749 = vmatprep.subr.mxu0 0.0
        %1750 = vmatpush2.msra.mxu0 0.0
        %1751 = vmatprep.subr.mxu0 0.0
        %1752 = vmatpush2.msra.mxu0 0.0
        %1753 = vmatprep.subr.mxu0 0.0
        %1754 = vmatpush2.msra.mxu0 0.0
        %1755 = vmatprep.subr.mxu0 0.0
        %1756 = vmatpush2.msra.mxu0 0.0
        %1757 = vmatprep.subr.mxu0 0.0
        %1758 = vmatpush2.msra.mxu0 0.0
        %1759 = vmatprep.subr.mxu0 0.0
        %1760 = vmatpush2.msra.mxu0 0.0
        %1761 = vmatprep.subr.mxu0 0.0
        %1762 = vmatpush2.msra.mxu0 0.0
        %1763 = vmatprep.subr.mxu0 0.0
        %1764 = vmatpush2.msra.mxu0 0.0
        %1765 = vmatprep.subr.mxu0 0.0
        %1766 = vmatpush2.msra.mxu0 0.0
        %1767 = vmatprep.subr.mxu0 0.0
        %1768 = vmatpush2.msra.mxu0 0.0
        %1769 = vmatprep.subr.mxu0 0.0
        %1770 = vmatpush2.msra.mxu0 0.0
        %1771 = vmatprep.subr.mxu0 0.0
        %1772 = vmatpush2.msra.mxu0 0.0
        %1773 = vmatprep.subr.mxu0 0.0
        %1774 = vmatpush2.msra.mxu0 0.0
        %1775 = vmatprep.subr.mxu0 0.0
        %1776 = vmatpush2.msra.mxu0 0.0
        %1777 = vmatprep.subr.mxu0 0.0
        %1778 = vmatpush2.msra.mxu0 0.0
        %1779 = vmatprep.mubr.f32.mxu0 0.0
        %1780 = vmatmul.mubr.f32.gmra.mxu0 %v1704
        %v1781 = vpop.f32.mrf.mxu0
        %v1782 = vadd.f32 %v1686, %v1781
        %v1783 = vpop.f32.mrf.mxu0
        %1784 = vmatprep.mubr.f32.mxu0 0.0
        %1785 = vmatmul.mubr.f32.gmra.mxu0 %v1707
        %v1786 = vpop.f32.mrf.mxu0
        %v1787 = vadd.f32 %v1691, %v1786
        %v1788 = vpop.f32.mrf.mxu0
        %1789 = vmatprep.mubr.f32.mxu0 0.0
        %1790 = vmatmul.mubr.f32.gmra.mxu0 %v1710
        %v1791 = vpop.f32.mrf.mxu0
        %v1792 = vadd.f32 %v1696, %v1791
        %v1793 = vpop.f32.mrf.mxu0
        %1794 = vmatprep.mubr.f32.mxu0 0.0
        %1795 = vmatmul.mubr.f32.gmra.mxu0 %v1713
        %v1796 = vpop.f32.mrf.mxu0
        %v1797 = vadd.f32 %v1701, %v1796
        %v1798 = vpop.f32.mrf.mxu0
        %1799 = vdwg.mxu0
        %v1800 = vadd.f32 %v1192, %v1782
        %v1801 = vadd.f32 %v1193, %v1787
        %v1802 = vadd.f32 %v1194, %v1792
        %v1803 = vadd.f32 %v1195, %v1797
        %s1804 = scalar_lea.vmem %s4, 64
        %v1805 = vld [vmem:[%s1804] sm:$0xff]
        %v1806 = vld [vmem:[%s1804 + $0x8] sm:$0xff]
        %v1807 = vld [vmem:[%s1804 + $0x10] sm:$0xff]
        %v1808 = vld [vmem:[%s1804 + $0x18] sm:$0xff]
        %s1809 = scalar_lea.vmem %s5, 64
        %v1810 = vld [vmem:[%s1809] sm:$0xff]
        %v1811 = vld [vmem:[%s1809 + $0x8] sm:$0xff]
        %v1812 = vld [vmem:[%s1809 + $0x10] sm:$0xff]
        %v1813 = vld [vmem:[%s1809 + $0x18] sm:$0xff]
        %s1814 = scalar_lea.vmem %s6, 64
        %v1815 = vld [vmem:[%s1814] sm:$0xff]
        %v1816 = vld [vmem:[%s1814 + $0x8] sm:$0xff]
        %v1817 = vld [vmem:[%s1814 + $0x10] sm:$0xff]
        %v1818 = vld [vmem:[%s1814 + $0x18] sm:$0xff]
        %s1819 = scalar_lea.vmem %s7, 64
        %v1820 = vld [vmem:[%s1819] sm:$0xff]
        %v1821 = vld [vmem:[%s1819 + $0x8] sm:$0xff]
        %v1822 = vld [vmem:[%s1819 + $0x10] sm:$0xff]
        %v1823 = vld [vmem:[%s1819 + $0x18] sm:$0xff]
        %s1824 = sld [smem:[#allocation3 + $0x100]]
        %s1825 = sld [smem:[#allocation3 + $0x101]]
        %1827 = vset.pattern.permute.xlu0 0
        %1828 = vperm.xlu0 %1827, %v1810
        %v1829 = vpop.permute.xlu0 %1828
        %1832 = vset.pattern.permute.xlu0 0
        %1833 = vperm.xlu0 %1832, %v1811
        %v1834 = vpop.permute.xlu0 %1833
        %1837 = vset.pattern.permute.xlu0 0
        %1838 = vperm.xlu0 %1837, %v1812
        %v1839 = vpop.permute.xlu0 %1838
        %1842 = vset.pattern.permute.xlu0 0
        %1843 = vperm.xlu0 %1842, %v1813
        %v1844 = vpop.permute.xlu0 %1843
        %v1847 = vsel %vm509, %v1805, 0
        %v1850 = vsel %vm509, %v1806, 0
        %v1853 = vsel %vm509, %v1807, 0
        %v1856 = vsel %vm509, %v1808, 0
        %1858 = vmatprep.subr.mxu0 0.0
        %1859 = vmatpush1.msra.mxu0 0.0
        %1860 = vmatprep.subr.mxu0 0.0
        %1861 = vmatpush1.msra.mxu0 0.0
        %1862 = vmatprep.subr.mxu0 0.0
        %1863 = vmatpush1.msra.mxu0 0.0
        %1864 = vmatprep.subr.mxu0 0.0
        %1865 = vmatpush1.msra.mxu0 0.0
        %1866 = vmatprep.subr.mxu0 0.0
        %1867 = vmatpush1.msra.mxu0 0.0
        %1868 = vmatprep.subr.mxu0 0.0
        %1869 = vmatpush1.msra.mxu0 0.0
        %1870 = vmatprep.subr.mxu0 0.0
        %1871 = vmatpush1.msra.mxu0 0.0
        %1872 = vmatprep.subr.mxu0 0.0
        %1873 = vmatpush1.msra.mxu0 0.0
        %1874 = vmatprep.subr.mxu0 0.0
        %1875 = vmatpush1.msra.mxu0 0.0
        %1876 = vmatprep.subr.mxu0 0.0
        %1877 = vmatpush1.msra.mxu0 0.0
        %1878 = vmatprep.subr.mxu0 0.0
        %1879 = vmatpush1.msra.mxu0 0.0
        %1880 = vmatprep.subr.mxu0 0.0
        %1881 = vmatpush1.msra.mxu0 0.0
        %1882 = vmatprep.subr.mxu0 0.0
        %1883 = vmatpush1.msra.mxu0 0.0
        %1884 = vmatprep.subr.mxu0 0.0
        %1885 = vmatpush1.msra.mxu0 0.0
        %1886 = vmatprep.subr.mxu0 0.0
        %1887 = vmatpush1.msra.mxu0 %v1801
        %1888 = vmatprep.subr.mxu0 0.0
        %1889 = vmatpush1.msra.mxu0 %v1800
        %1890 = vmatprep.subr.mxu0 0.0
        %1891 = vmatpush2.msra.mxu0 0.0
        %1892 = vmatprep.subr.mxu0 0.0
        %1893 = vmatpush2.msra.mxu0 0.0
        %1894 = vmatprep.subr.mxu0 0.0
        %1895 = vmatpush2.msra.mxu0 0.0
        %1896 = vmatprep.subr.mxu0 0.0
        %1897 = vmatpush2.msra.mxu0 0.0
        %1898 = vmatprep.subr.mxu0 0.0
        %1899 = vmatpush2.msra.mxu0 0.0
        %1900 = vmatprep.subr.mxu0 0.0
        %1901 = vmatpush2.msra.mxu0 0.0
        %1902 = vmatprep.subr.mxu0 0.0
        %1903 = vmatpush2.msra.mxu0 0.0
        %1904 = vmatprep.subr.mxu0 0.0
        %1905 = vmatpush2.msra.mxu0 0.0
        %1906 = vmatprep.subr.mxu0 0.0
        %1907 = vmatpush2.msra.mxu0 0.0
        %1908 = vmatprep.subr.mxu0 0.0
        %1909 = vmatpush2.msra.mxu0 0.0
        %1910 = vmatprep.subr.mxu0 0.0
        %1911 = vmatpush2.msra.mxu0 0.0
        %1912 = vmatprep.subr.mxu0 0.0
        %1913 = vmatpush2.msra.mxu0 0.0
        %1914 = vmatprep.subr.mxu0 0.0
        %1915 = vmatpush2.msra.mxu0 0.0
        %1916 = vmatprep.subr.mxu0 0.0
        %1917 = vmatpush2.msra.mxu0 0.0
        %1918 = vmatprep.subr.mxu0 0.0
        %1919 = vmatpush2.msra.mxu0 0.0
        %1920 = vmatprep.subr.mxu0 0.0
        %1921 = vmatpush2.msra.mxu0 0.0
        %1922 = vmatprep.mubr.f32.mxu0 0.0
        %1923 = vmatmul.mubr.f32.gmra.mxu0 %v1847
        %v1924 = vpop.f32.mrf.mxu0
        %v1925 = vadd.f32 %v1829, %v1924
        %v1926 = vpop.f32.mrf.mxu0
        %1927 = vmatprep.mubr.f32.mxu0 0.0
        %1928 = vmatmul.mubr.f32.gmra.mxu0 %v1850
        %v1929 = vpop.f32.mrf.mxu0
        %v1930 = vadd.f32 %v1834, %v1929
        %v1931 = vpop.f32.mrf.mxu0
        %1932 = vmatprep.mubr.f32.mxu0 0.0
        %1933 = vmatmul.mubr.f32.gmra.mxu0 %v1853
        %v1934 = vpop.f32.mrf.mxu0
        %v1935 = vadd.f32 %v1839, %v1934
        %v1936 = vpop.f32.mrf.mxu0
        %1937 = vmatprep.mubr.f32.mxu0 0.0
        %1938 = vmatmul.mubr.f32.gmra.mxu0 %v1856
        %v1939 = vpop.f32.mrf.mxu0
        %v1940 = vadd.f32 %v1844, %v1939
        %v1941 = vpop.f32.mrf.mxu0
        %1942 = vdwg.mxu0
        %vm1943 = vcmp.ge.f32.partialorder %v1925, 0.0
        %vm1944 = vcmp.ge.f32.partialorder %v1930, 0.0
        %vm1945 = vcmp.ge.f32.partialorder %v1935, 0.0
        %vm1946 = vcmp.ge.f32.partialorder %v1940, 0.0
        %v1947 = vstv %s1824
        %v1948 = vmul.f32 %v1947, %v1925
        %v1949 = vmul.f32 %v1947, %v1930
        %v1950 = vmul.f32 %v1947, %v1935
        %v1951 = vmul.f32 %v1947, %v1940
        %v1952 = vsel %vm1943, %v1925, %v1948
        %v1953 = vsel %vm1944, %v1930, %v1949
        %v1954 = vsel %vm1945, %v1935, %v1950
        %v1955 = vsel %vm1946, %v1940, %v1951
        %v1956 = vmul.f32 %v1952, %v431
        %v1957 = vmul.f32 %v1953, %v431
        %v1958 = vmul.f32 %v1954, %v431
        %v1959 = vmul.f32 %v1955, %v431
        %1960 = vadd.xlane.f32.xlu0 %v1956
        %v1961 = vpop.xlane.xlu0 %1960
        %1962 = vadd.xlane.f32.xlu0 %v1957
        %v1963 = vpop.xlane.xlu0 %1962
        %1964 = vadd.xlane.f32.xlu0 %v1958
        %v1965 = vpop.xlane.xlu0 %1964
        %1966 = vadd.xlane.f32.xlu0 %v1959
        %v1967 = vpop.xlane.xlu0 %1966
        %v1968 = vadd.f32 %v1961, %v1963
        %v1969 = vadd.f32 %v1968, %v1965
        %v1970 = vadd.f32 %v1969, %v1967
        %v1971 = vrot.slane %v1970, 4
        %v1972 = vadd.f32 %v1970, %v1971
        %v1973 = vrot.slane %v1972, 2
        %v1974 = vadd.f32 %v1972, %v1973
        %v1975 = vrot.slane %v1974, 1
        %v1976 = vadd.f32 %v1974, %v1975
        %v1977 = vmul.f32 %v1956, %v1956
        %v1978 = vmul.f32 %v1957, %v1957
        %v1979 = vmul.f32 %v1958, %v1958
        %v1980 = vmul.f32 %v1959, %v1959
        %1981 = vadd.xlane.f32.xlu0 %v1977
        %v1982 = vpop.xlane.xlu0 %1981
        %1983 = vadd.xlane.f32.xlu0 %v1978
        %v1984 = vpop.xlane.xlu0 %1983
        %1985 = vadd.xlane.f32.xlu0 %v1979
        %v1986 = vpop.xlane.xlu0 %1985
        %1987 = vadd.xlane.f32.xlu0 %v1980
        %v1988 = vpop.xlane.xlu0 %1987
        %v1989 = vadd.f32 %v1982, %v1984
        %v1990 = vadd.f32 %v1989, %v1986
        %v1991 = vadd.f32 %v1990, %v1988
        %v1992 = vrot.slane %v1991, 4
        %v1993 = vadd.f32 %v1991, %v1992
        %v1994 = vrot.slane %v1993, 2
        %v1995 = vadd.f32 %v1993, %v1994
        %v1996 = vrot.slane %v1995, 1
        %v1997 = vadd.f32 %v1995, %v1996
        %v1998 = vmul.f32 %v1976, 0.001953125
        %v1999 = vmul.f32 %v1997, 0.001953125
        %v2000 = vmul.f32 %v1998, %v1998
        %v2001 = vsub.f32 %v1999, %v2000
        %v2002 = vmax.f32 %v2001, 0.0
        %v2003 = vadd.f32 %v2002, 1e-08
        %v2004 = vrsqrt.pop %v2003
        %v2005 = vsub.f32 %v1952, %v1998
        %v2006 = vsub.f32 %v1953, %v1998
        %v2007 = vsub.f32 %v1954, %v1998
        %v2008 = vsub.f32 %v1955, %v1998
        %v2009 = vmul.f32 %v2005, %v2004
        %v2010 = vmul.f32 %v2006, %v2004
        %v2011 = vmul.f32 %v2007, %v2004
        %v2012 = vmul.f32 %v2008, %v2004
        %2013 = vset.pattern.permute.xlu0 1
        %2014 = vperm.xlu0 %2013, %v1810
        %v2015 = vpop.permute.xlu0 %2014
        %2017 = vset.pattern.permute.xlu0 1
        %2018 = vperm.xlu0 %2017, %v1811
        %v2019 = vpop.permute.xlu0 %2018
        %2021 = vset.pattern.permute.xlu0 1
        %2022 = vperm.xlu0 %2021, %v1812
        %v2023 = vpop.permute.xlu0 %2022
        %2025 = vset.pattern.permute.xlu0 1
        %2026 = vperm.xlu0 %2025, %v1813
        %v2027 = vpop.permute.xlu0 %2026
        %v2029 = vmul.f32 %v2009, %v2015
        %v2030 = vmul.f32 %v2010, %v2019
        %v2031 = vmul.f32 %v2011, %v2023
        %v2032 = vmul.f32 %v2012, %v2027
        %2033 = vset.pattern.permute.xlu0 2
        %2034 = vperm.xlu0 %2033, %v1810
        %v2035 = vpop.permute.xlu0 %2034
        %2037 = vset.pattern.permute.xlu0 2
        %2038 = vperm.xlu0 %2037, %v1811
        %v2039 = vpop.permute.xlu0 %2038
        %2041 = vset.pattern.permute.xlu0 2
        %2042 = vperm.xlu0 %2041, %v1812
        %v2043 = vpop.permute.xlu0 %2042
        %2045 = vset.pattern.permute.xlu0 2
        %2046 = vperm.xlu0 %2045, %v1813
        %v2047 = vpop.permute.xlu0 %2046
        %v2049 = vadd.f32 %v2029, %v2035
        %v2050 = vadd.f32 %v2030, %v2039
        %v2051 = vadd.f32 %v2031, %v2043
        %v2052 = vadd.f32 %v2032, %v2047
        %2053 = vrot.lane.b32.xlu0 %v2049, 1
        %v2054 = vpop.permute.xlu0 %2053
        %2055 = vrot.lane.b32.xlu0 %v2050, 1
        %v2056 = vpop.permute.xlu0 %2055
        %2057 = vrot.lane.b32.xlu0 %v2051, 1
        %v2058 = vpop.permute.xlu0 %2057
        %2059 = vrot.lane.b32.xlu0 %v2052, 1
        %v2060 = vpop.permute.xlu0 %2059
        %v2061 = vsel %vm849, %v2054, 0.0
        %v2062 = vsel %vm849, %v2056, 0.0
        %v2063 = vsel %vm849, %v2058, 0.0
        %v2064 = vsel %vm849, %v2060, 0.0
        %2065 = vset.pattern.permute.xlu0 6
        %2066 = vperm.xlu0 %2065, %v1810
        %v2067 = vpop.permute.xlu0 %2066
        %2069 = vset.pattern.permute.xlu0 6
        %2070 = vperm.xlu0 %2069, %v1811
        %v2071 = vpop.permute.xlu0 %2070
        %2073 = vset.pattern.permute.xlu0 6
        %2074 = vperm.xlu0 %2073, %v1812
        %v2075 = vpop.permute.xlu0 %2074
        %2077 = vset.pattern.permute.xlu0 6
        %2078 = vperm.xlu0 %2077, %v1813
        %v2079 = vpop.permute.xlu0 %2078
        %v2081 = vmul.f32 %v2067, %v2061
        %v2082 = vmul.f32 %v2071, %v2062
        %v2083 = vmul.f32 %v2075, %v2063
        %v2084 = vmul.f32 %v2079, %v2064
        %v2085 = vadd.f32 %v2081, 0.0
        %v2086 = vadd.f32 %v2082, 0.0
        %v2087 = vadd.f32 %v2083, 0.0
        %v2088 = vadd.f32 %v2084, 0.0
        %2089 = vset.pattern.permute.xlu0 7
        %2090 = vperm.xlu0 %2089, %v1810
        %v2091 = vpop.permute.xlu0 %2090
        %2093 = vset.pattern.permute.xlu0 7
        %2094 = vperm.xlu0 %2093, %v1811
        %v2095 = vpop.permute.xlu0 %2094
        %2097 = vset.pattern.permute.xlu0 7
        %2098 = vperm.xlu0 %2097, %v1812
        %v2099 = vpop.permute.xlu0 %2098
        %2101 = vset.pattern.permute.xlu0 7
        %2102 = vperm.xlu0 %2101, %v1813
        %v2103 = vpop.permute.xlu0 %2102
        %v2105 = vmul.f32 %v2091, %v2049
        %v2106 = vmul.f32 %v2095, %v2050
        %v2107 = vmul.f32 %v2099, %v2051
        %v2108 = vmul.f32 %v2103, %v2052
        %v2109 = vadd.f32 %v2085, %v2105
        %v2110 = vadd.f32 %v2086, %v2106
        %v2111 = vadd.f32 %v2087, %v2107
        %v2112 = vadd.f32 %v2088, %v2108
        %2113 = vrot.lane.b32.xlu0 %v2049, 127
        %v2114 = vpop.permute.xlu0 %2113
        %2115 = vrot.lane.b32.xlu0 %v2050, 127
        %v2116 = vpop.permute.xlu0 %2115
        %2117 = vrot.lane.b32.xlu0 %v2051, 127
        %v2118 = vpop.permute.xlu0 %2117
        %2119 = vrot.lane.b32.xlu0 %v2052, 127
        %v2120 = vpop.permute.xlu0 %2119
        %v2121 = vsel %vm915, %v2114, 0.0
        %v2122 = vsel %vm915, %v2116, 0.0
        %v2123 = vsel %vm915, %v2118, 0.0
        %v2124 = vsel %vm915, %v2120, 0.0
        %2125 = vset.pattern.permute.xlu0 8
        %2126 = vperm.xlu0 %2125, %v1810
        %v2127 = vpop.permute.xlu0 %2126
        %2129 = vset.pattern.permute.xlu0 8
        %2130 = vperm.xlu0 %2129, %v1811
        %v2131 = vpop.permute.xlu0 %2130
        %2133 = vset.pattern.permute.xlu0 8
        %2134 = vperm.xlu0 %2133, %v1812
        %v2135 = vpop.permute.xlu0 %2134
        %2137 = vset.pattern.permute.xlu0 8
        %2138 = vperm.xlu0 %2137, %v1813
        %v2139 = vpop.permute.xlu0 %2138
        %v2141 = vmul.f32 %v2127, %v2121
        %v2142 = vmul.f32 %v2131, %v2122
        %v2143 = vmul.f32 %v2135, %v2123
        %v2144 = vmul.f32 %v2139, %v2124
        %v2145 = vadd.f32 %v2109, %v2141
        %v2146 = vadd.f32 %v2110, %v2142
        %v2147 = vadd.f32 %v2111, %v2143
        %v2148 = vadd.f32 %v2112, %v2144
        %2149 = vset.pattern.permute.xlu0 5
        %2150 = vperm.xlu0 %2149, %v1810
        %v2151 = vpop.permute.xlu0 %2150
        %2153 = vset.pattern.permute.xlu0 5
        %2154 = vperm.xlu0 %2153, %v1811
        %v2155 = vpop.permute.xlu0 %2154
        %2157 = vset.pattern.permute.xlu0 5
        %2158 = vperm.xlu0 %2157, %v1812
        %v2159 = vpop.permute.xlu0 %2158
        %2161 = vset.pattern.permute.xlu0 5
        %2162 = vperm.xlu0 %2161, %v1813
        %v2163 = vpop.permute.xlu0 %2162
        %v2165 = vadd.f32 %v2145, %v2151
        %v2166 = vadd.f32 %v2146, %v2155
        %v2167 = vadd.f32 %v2147, %v2159
        %v2168 = vadd.f32 %v2148, %v2163
        %vm2169 = vcmp.ge.f32.partialorder %v2165, 0.0
        %vm2170 = vcmp.ge.f32.partialorder %v2166, 0.0
        %vm2171 = vcmp.ge.f32.partialorder %v2167, 0.0
        %vm2172 = vcmp.ge.f32.partialorder %v2168, 0.0
        %v2173 = vstv %s1825
        %v2174 = vmul.f32 %v2173, %v2165
        %v2175 = vmul.f32 %v2173, %v2166
        %v2176 = vmul.f32 %v2173, %v2167
        %v2177 = vmul.f32 %v2173, %v2168
        %v2178 = vsel %vm2169, %v2165, %v2174
        %v2179 = vsel %vm2170, %v2166, %v2175
        %v2180 = vsel %vm2171, %v2167, %v2176
        %v2181 = vsel %vm2172, %v2168, %v2177
        %v2182 = vmul.f32 %v2178, %v431
        %v2183 = vmul.f32 %v2179, %v431
        %v2184 = vmul.f32 %v2180, %v431
        %v2185 = vmul.f32 %v2181, %v431
        %2186 = vadd.xlane.f32.xlu0 %v2182
        %v2187 = vpop.xlane.xlu0 %2186
        %2188 = vadd.xlane.f32.xlu0 %v2183
        %v2189 = vpop.xlane.xlu0 %2188
        %2190 = vadd.xlane.f32.xlu0 %v2184
        %v2191 = vpop.xlane.xlu0 %2190
        %2192 = vadd.xlane.f32.xlu0 %v2185
        %v2193 = vpop.xlane.xlu0 %2192
        %v2194 = vadd.f32 %v2187, %v2189
        %v2195 = vadd.f32 %v2194, %v2191
        %v2196 = vadd.f32 %v2195, %v2193
        %v2197 = vrot.slane %v2196, 4
        %v2198 = vadd.f32 %v2196, %v2197
        %v2199 = vrot.slane %v2198, 2
        %v2200 = vadd.f32 %v2198, %v2199
        %v2201 = vrot.slane %v2200, 1
        %v2202 = vadd.f32 %v2200, %v2201
        %v2203 = vmul.f32 %v2182, %v2182
        %v2204 = vmul.f32 %v2183, %v2183
        %v2205 = vmul.f32 %v2184, %v2184
        %v2206 = vmul.f32 %v2185, %v2185
        %2207 = vadd.xlane.f32.xlu0 %v2203
        %v2208 = vpop.xlane.xlu0 %2207
        %2209 = vadd.xlane.f32.xlu0 %v2204
        %v2210 = vpop.xlane.xlu0 %2209
        %2211 = vadd.xlane.f32.xlu0 %v2205
        %v2212 = vpop.xlane.xlu0 %2211
        %2213 = vadd.xlane.f32.xlu0 %v2206
        %v2214 = vpop.xlane.xlu0 %2213
        %v2215 = vadd.f32 %v2208, %v2210
        %v2216 = vadd.f32 %v2215, %v2212
        %v2217 = vadd.f32 %v2216, %v2214
        %v2218 = vrot.slane %v2217, 4
        %v2219 = vadd.f32 %v2217, %v2218
        %v2220 = vrot.slane %v2219, 2
        %v2221 = vadd.f32 %v2219, %v2220
        %v2222 = vrot.slane %v2221, 1
        %v2223 = vadd.f32 %v2221, %v2222
        %v2224 = vmul.f32 %v2202, 0.001953125
        %v2225 = vmul.f32 %v2223, 0.001953125
        %v2226 = vmul.f32 %v2224, %v2224
        %v2227 = vsub.f32 %v2225, %v2226
        %v2228 = vmax.f32 %v2227, 0.0
        %v2229 = vadd.f32 %v2228, 1e-08
        %v2230 = vrsqrt.pop %v2229
        %v2231 = vsub.f32 %v2178, %v2224
        %v2232 = vsub.f32 %v2179, %v2224
        %v2233 = vsub.f32 %v2180, %v2224
        %v2234 = vsub.f32 %v2181, %v2224
        %v2235 = vmul.f32 %v2231, %v2230
        %v2236 = vmul.f32 %v2232, %v2230
        %v2237 = vmul.f32 %v2233, %v2230
        %v2238 = vmul.f32 %v2234, %v2230
        %2239 = vset.pattern.permute.xlu0 3
        %2240 = vperm.xlu0 %2239, %v1810
        %v2241 = vpop.permute.xlu0 %2240
        %2243 = vset.pattern.permute.xlu0 3
        %2244 = vperm.xlu0 %2243, %v1811
        %v2245 = vpop.permute.xlu0 %2244
        %2247 = vset.pattern.permute.xlu0 3
        %2248 = vperm.xlu0 %2247, %v1812
        %v2249 = vpop.permute.xlu0 %2248
        %2251 = vset.pattern.permute.xlu0 3
        %2252 = vperm.xlu0 %2251, %v1813
        %v2253 = vpop.permute.xlu0 %2252
        %v2255 = vmul.f32 %v2235, %v2241
        %v2256 = vmul.f32 %v2236, %v2245
        %v2257 = vmul.f32 %v2237, %v2249
        %v2258 = vmul.f32 %v2238, %v2253
        %2259 = vset.pattern.permute.xlu0 4
        %2260 = vperm.xlu0 %2259, %v1810
        %v2261 = vpop.permute.xlu0 %2260
        %2263 = vset.pattern.permute.xlu0 4
        %2264 = vperm.xlu0 %2263, %v1811
        %v2265 = vpop.permute.xlu0 %2264
        %2267 = vset.pattern.permute.xlu0 4
        %2268 = vperm.xlu0 %2267, %v1812
        %v2269 = vpop.permute.xlu0 %2268
        %2271 = vset.pattern.permute.xlu0 4
        %2272 = vperm.xlu0 %2271, %v1813
        %v2273 = vpop.permute.xlu0 %2272
        %v2275 = vadd.f32 %v2255, %v2261
        %v2276 = vadd.f32 %v2256, %v2265
        %v2277 = vadd.f32 %v2257, %v2269
        %v2278 = vadd.f32 %v2258, %v2273
        %2280 = vset.pattern.permute.xlu0 0
        %2281 = vperm.xlu0 %2280, %v1820
        %v2282 = vpop.permute.xlu0 %2281
        %2285 = vset.pattern.permute.xlu0 0
        %2286 = vperm.xlu0 %2285, %v1821
        %v2287 = vpop.permute.xlu0 %2286
        %2290 = vset.pattern.permute.xlu0 0
        %2291 = vperm.xlu0 %2290, %v1822
        %v2292 = vpop.permute.xlu0 %2291
        %2295 = vset.pattern.permute.xlu0 0
        %2296 = vperm.xlu0 %2295, %v1823
        %v2297 = vpop.permute.xlu0 %2296
        %v2300 = vsel %vm1094, %v1815, 0
        %v2303 = vsel %vm1094, %v1816, 0
        %v2306 = vsel %vm1094, %v1817, 0
        %v2309 = vsel %vm1094, %v1818, 0
        %2311 = vmatprep.subr.mxu0 0.0
        %2312 = vmatpush1.msra.mxu0 0.0
        %2313 = vmatprep.subr.mxu0 0.0
        %2314 = vmatpush1.msra.mxu0 0.0
        %2315 = vmatprep.subr.mxu0 0.0
        %2316 = vmatpush1.msra.mxu0 0.0
        %2317 = vmatprep.subr.mxu0 0.0
        %2318 = vmatpush1.msra.mxu0 0.0
        %2319 = vmatprep.subr.mxu0 0.0
        %2320 = vmatpush1.msra.mxu0 0.0
        %2321 = vmatprep.subr.mxu0 0.0
        %2322 = vmatpush1.msra.mxu0 0.0
        %2323 = vmatprep.subr.mxu0 0.0
        %2324 = vmatpush1.msra.mxu0 0.0
        %2325 = vmatprep.subr.mxu0 0.0
        %2326 = vmatpush1.msra.mxu0 0.0
        %2327 = vmatprep.subr.mxu0 0.0
        %2328 = vmatpush1.msra.mxu0 0.0
        %2329 = vmatprep.subr.mxu0 0.0
        %2330 = vmatpush1.msra.mxu0 0.0
        %2331 = vmatprep.subr.mxu0 0.0
        %2332 = vmatpush1.msra.mxu0 0.0
        %2333 = vmatprep.subr.mxu0 0.0
        %2334 = vmatpush1.msra.mxu0 0.0
        %2335 = vmatprep.subr.mxu0 0.0
        %2336 = vmatpush1.msra.mxu0 %v2278
        %2337 = vmatprep.subr.mxu0 0.0
        %2338 = vmatpush1.msra.mxu0 %v2277
        %2339 = vmatprep.subr.mxu0 0.0
        %2340 = vmatpush1.msra.mxu0 %v2276
        %2341 = vmatprep.subr.mxu0 0.0
        %2342 = vmatpush1.msra.mxu0 %v2275
        %2343 = vmatprep.subr.mxu0 0.0
        %2344 = vmatpush2.msra.mxu0 0.0
        %2345 = vmatprep.subr.mxu0 0.0
        %2346 = vmatpush2.msra.mxu0 0.0
        %2347 = vmatprep.subr.mxu0 0.0
        %2348 = vmatpush2.msra.mxu0 0.0
        %2349 = vmatprep.subr.mxu0 0.0
        %2350 = vmatpush2.msra.mxu0 0.0
        %2351 = vmatprep.subr.mxu0 0.0
        %2352 = vmatpush2.msra.mxu0 0.0
        %2353 = vmatprep.subr.mxu0 0.0
        %2354 = vmatpush2.msra.mxu0 0.0
        %2355 = vmatprep.subr.mxu0 0.0
        %2356 = vmatpush2.msra.mxu0 0.0
        %2357 = vmatprep.subr.mxu0 0.0
        %2358 = vmatpush2.msra.mxu0 0.0
        %2359 = vmatprep.subr.mxu0 0.0
        %2360 = vmatpush2.msra.mxu0 0.0
        %2361 = vmatprep.subr.mxu0 0.0
        %2362 = vmatpush2.msra.mxu0 0.0
        %2363 = vmatprep.subr.mxu0 0.0
        %2364 = vmatpush2.msra.mxu0 0.0
        %2365 = vmatprep.subr.mxu0 0.0
        %2366 = vmatpush2.msra.mxu0 0.0
        %2367 = vmatprep.subr.mxu0 0.0
        %2368 = vmatpush2.msra.mxu0 0.0
        %2369 = vmatprep.subr.mxu0 0.0
        %2370 = vmatpush2.msra.mxu0 0.0
        %2371 = vmatprep.subr.mxu0 0.0
        %2372 = vmatpush2.msra.mxu0 0.0
        %2373 = vmatprep.subr.mxu0 0.0
        %2374 = vmatpush2.msra.mxu0 0.0
        %2375 = vmatprep.mubr.f32.mxu0 0.0
        %2376 = vmatmul.mubr.f32.gmra.mxu0 %v2300
        %v2377 = vpop.f32.mrf.mxu0
        %v2378 = vadd.f32 %v2282, %v2377
        %v2379 = vpop.f32.mrf.mxu0
        %2380 = vmatprep.mubr.f32.mxu0 0.0
        %2381 = vmatmul.mubr.f32.gmra.mxu0 %v2303
        %v2382 = vpop.f32.mrf.mxu0
        %v2383 = vadd.f32 %v2287, %v2382
        %v2384 = vpop.f32.mrf.mxu0
        %2385 = vmatprep.mubr.f32.mxu0 0.0
        %2386 = vmatmul.mubr.f32.gmra.mxu0 %v2306
        %v2387 = vpop.f32.mrf.mxu0
        %v2388 = vadd.f32 %v2292, %v2387
        %v2389 = vpop.f32.mrf.mxu0
        %2390 = vmatprep.mubr.f32.mxu0 0.0
        %2391 = vmatmul.mubr.f32.gmra.mxu0 %v2309
        %v2392 = vpop.f32.mrf.mxu0
        %v2393 = vadd.f32 %v2297, %v2392
        %v2394 = vpop.f32.mrf.mxu0
        %2395 = vdwg.mxu0
        %v2396 = vadd.f32 %v1800, %v2378
        %v2397 = vadd.f32 %v1801, %v2383
        %v2398 = vadd.f32 %v1802, %v2388
        %v2399 = vadd.f32 %v1803, %v2393
        %s2400 = scalar_lea.vmem %s4, 96
        %v2401 = vld [vmem:[%s2400] sm:$0xff]
        %v2402 = vld [vmem:[%s2400 + $0x8] sm:$0xff]
        %v2403 = vld [vmem:[%s2400 + $0x10] sm:$0xff]
        %v2404 = vld [vmem:[%s2400 + $0x18] sm:$0xff]
        %s2405 = scalar_lea.vmem %s5, 96
        %v2406 = vld [vmem:[%s2405] sm:$0xff]
        %v2407 = vld [vmem:[%s2405 + $0x8] sm:$0xff]
        %v2408 = vld [vmem:[%s2405 + $0x10] sm:$0xff]
        %v2409 = vld [vmem:[%s2405 + $0x18] sm:$0xff]
        %s2410 = scalar_lea.vmem %s6, 96
        %v2411 = vld [vmem:[%s2410] sm:$0xff]
        %v2412 = vld [vmem:[%s2410 + $0x8] sm:$0xff]
        %v2413 = vld [vmem:[%s2410 + $0x10] sm:$0xff]
        %v2414 = vld [vmem:[%s2410 + $0x18] sm:$0xff]
        %s2415 = scalar_lea.vmem %s7, 96
        %v2416 = vld [vmem:[%s2415] sm:$0xff]
        %v2417 = vld [vmem:[%s2415 + $0x8] sm:$0xff]
        %v2418 = vld [vmem:[%s2415 + $0x10] sm:$0xff]
        %v2419 = vld [vmem:[%s2415 + $0x18] sm:$0xff]
        %s2420 = sld [smem:[#allocation3 + $0x180]]
        %s2421 = sld [smem:[#allocation3 + $0x181]]
        %2423 = vset.pattern.permute.xlu0 0
        %2424 = vperm.xlu0 %2423, %v2406
        %v2425 = vpop.permute.xlu0 %2424
        %2428 = vset.pattern.permute.xlu0 0
        %2429 = vperm.xlu0 %2428, %v2407
        %v2430 = vpop.permute.xlu0 %2429
        %2433 = vset.pattern.permute.xlu0 0
        %2434 = vperm.xlu0 %2433, %v2408
        %v2435 = vpop.permute.xlu0 %2434
        %2438 = vset.pattern.permute.xlu0 0
        %2439 = vperm.xlu0 %2438, %v2409
        %v2440 = vpop.permute.xlu0 %2439
        %v2443 = vsel %vm509, %v2401, 0
        %v2446 = vsel %vm509, %v2402, 0
        %v2449 = vsel %vm509, %v2403, 0
        %v2452 = vsel %vm509, %v2404, 0
        %2454 = vmatprep.subr.mxu0 0.0
        %2455 = vmatpush1.msra.mxu0 0.0
        %2456 = vmatprep.subr.mxu0 0.0
        %2457 = vmatpush1.msra.mxu0 0.0
        %2458 = vmatprep.subr.mxu0 0.0
        %2459 = vmatpush1.msra.mxu0 0.0
        %2460 = vmatprep.subr.mxu0 0.0
        %2461 = vmatpush1.msra.mxu0 0.0
        %2462 = vmatprep.subr.mxu0 0.0
        %2463 = vmatpush1.msra.mxu0 0.0
        %2464 = vmatprep.subr.mxu0 0.0
        %2465 = vmatpush1.msra.mxu0 0.0
        %2466 = vmatprep.subr.mxu0 0.0
        %2467 = vmatpush1.msra.mxu0 0.0
        %2468 = vmatprep.subr.mxu0 0.0
        %2469 = vmatpush1.msra.mxu0 0.0
        %2470 = vmatprep.subr.mxu0 0.0
        %2471 = vmatpush1.msra.mxu0 0.0
        %2472 = vmatprep.subr.mxu0 0.0
        %2473 = vmatpush1.msra.mxu0 0.0
        %2474 = vmatprep.subr.mxu0 0.0
        %2475 = vmatpush1.msra.mxu0 0.0
        %2476 = vmatprep.subr.mxu0 0.0
        %2477 = vmatpush1.msra.mxu0 0.0
        %2478 = vmatprep.subr.mxu0 0.0
        %2479 = vmatpush1.msra.mxu0 0.0
        %2480 = vmatprep.subr.mxu0 0.0
        %2481 = vmatpush1.msra.mxu0 0.0
        %2482 = vmatprep.subr.mxu0 0.0
        %2483 = vmatpush1.msra.mxu0 %v2397
        %2484 = vmatprep.subr.mxu0 0.0
        %2485 = vmatpush1.msra.mxu0 %v2396
        %2486 = vmatprep.subr.mxu0 0.0
        %2487 = vmatpush2.msra.mxu0 0.0
        %2488 = vmatprep.subr.mxu0 0.0
        %2489 = vmatpush2.msra.mxu0 0.0
        %2490 = vmatprep.subr.mxu0 0.0
        %2491 = vmatpush2.msra.mxu0 0.0
        %2492 = vmatprep.subr.mxu0 0.0
        %2493 = vmatpush2.msra.mxu0 0.0
        %2494 = vmatprep.subr.mxu0 0.0
        %2495 = vmatpush2.msra.mxu0 0.0
        %2496 = vmatprep.subr.mxu0 0.0
        %2497 = vmatpush2.msra.mxu0 0.0
        %2498 = vmatprep.subr.mxu0 0.0
        %2499 = vmatpush2.msra.mxu0 0.0
        %2500 = vmatprep.subr.mxu0 0.0
        %2501 = vmatpush2.msra.mxu0 0.0
        %2502 = vmatprep.subr.mxu0 0.0
        %2503 = vmatpush2.msra.mxu0 0.0
        %2504 = vmatprep.subr.mxu0 0.0
        %2505 = vmatpush2.msra.mxu0 0.0
        %2506 = vmatprep.subr.mxu0 0.0
        %2507 = vmatpush2.msra.mxu0 0.0
        %2508 = vmatprep.subr.mxu0 0.0
        %2509 = vmatpush2.msra.mxu0 0.0
        %2510 = vmatprep.subr.mxu0 0.0
        %2511 = vmatpush2.msra.mxu0 0.0
        %2512 = vmatprep.subr.mxu0 0.0
        %2513 = vmatpush2.msra.mxu0 0.0
        %2514 = vmatprep.subr.mxu0 0.0
        %2515 = vmatpush2.msra.mxu0 0.0
        %2516 = vmatprep.subr.mxu0 0.0
        %2517 = vmatpush2.msra.mxu0 0.0
        %2518 = vmatprep.mubr.f32.mxu0 0.0
        %2519 = vmatmul.mubr.f32.gmra.mxu0 %v2443
        %v2520 = vpop.f32.mrf.mxu0
        %v2521 = vadd.f32 %v2425, %v2520
        %v2522 = vpop.f32.mrf.mxu0
        %2523 = vmatprep.mubr.f32.mxu0 0.0
        %2524 = vmatmul.mubr.f32.gmra.mxu0 %v2446
        %v2525 = vpop.f32.mrf.mxu0
        %v2526 = vadd.f32 %v2430, %v2525
        %v2527 = vpop.f32.mrf.mxu0
        %2528 = vmatprep.mubr.f32.mxu0 0.0
        %2529 = vmatmul.mubr.f32.gmra.mxu0 %v2449
        %v2530 = vpop.f32.mrf.mxu0
        %v2531 = vadd.f32 %v2435, %v2530
        %v2532 = vpop.f32.mrf.mxu0
        %2533 = vmatprep.mubr.f32.mxu0 0.0
        %2534 = vmatmul.mubr.f32.gmra.mxu0 %v2452
        %v2535 = vpop.f32.mrf.mxu0
        %v2536 = vadd.f32 %v2440, %v2535
        %v2537 = vpop.f32.mrf.mxu0
        %2538 = vdwg.mxu0
        %vm2539 = vcmp.ge.f32.partialorder %v2521, 0.0
        %vm2540 = vcmp.ge.f32.partialorder %v2526, 0.0
        %vm2541 = vcmp.ge.f32.partialorder %v2531, 0.0
        %vm2542 = vcmp.ge.f32.partialorder %v2536, 0.0
        %v2543 = vstv %s2420
        %v2544 = vmul.f32 %v2543, %v2521
        %v2545 = vmul.f32 %v2543, %v2526
        %v2546 = vmul.f32 %v2543, %v2531
        %v2547 = vmul.f32 %v2543, %v2536
        %v2548 = vsel %vm2539, %v2521, %v2544
        %v2549 = vsel %vm2540, %v2526, %v2545
        %v2550 = vsel %vm2541, %v2531, %v2546
        %v2551 = vsel %vm2542, %v2536, %v2547
        %v2552 = vmul.f32 %v2548, %v431
        %v2553 = vmul.f32 %v2549, %v431
        %v2554 = vmul.f32 %v2550, %v431
        %v2555 = vmul.f32 %v2551, %v431
        %2556 = vadd.xlane.f32.xlu0 %v2552
        %v2557 = vpop.xlane.xlu0 %2556
        %2558 = vadd.xlane.f32.xlu0 %v2553
        %v2559 = vpop.xlane.xlu0 %2558
        %2560 = vadd.xlane.f32.xlu0 %v2554
        %v2561 = vpop.xlane.xlu0 %2560
        %2562 = vadd.xlane.f32.xlu0 %v2555
        %v2563 = vpop.xlane.xlu0 %2562
        %v2564 = vadd.f32 %v2557, %v2559
        %v2565 = vadd.f32 %v2564, %v2561
        %v2566 = vadd.f32 %v2565, %v2563
        %v2567 = vrot.slane %v2566, 4
        %v2568 = vadd.f32 %v2566, %v2567
        %v2569 = vrot.slane %v2568, 2
        %v2570 = vadd.f32 %v2568, %v2569
        %v2571 = vrot.slane %v2570, 1
        %v2572 = vadd.f32 %v2570, %v2571
        %v2573 = vmul.f32 %v2552, %v2552
        %v2574 = vmul.f32 %v2553, %v2553
        %v2575 = vmul.f32 %v2554, %v2554
        %v2576 = vmul.f32 %v2555, %v2555
        %2577 = vadd.xlane.f32.xlu0 %v2573
        %v2578 = vpop.xlane.xlu0 %2577
        %2579 = vadd.xlane.f32.xlu0 %v2574
        %v2580 = vpop.xlane.xlu0 %2579
        %2581 = vadd.xlane.f32.xlu0 %v2575
        %v2582 = vpop.xlane.xlu0 %2581
        %2583 = vadd.xlane.f32.xlu0 %v2576
        %v2584 = vpop.xlane.xlu0 %2583
        %v2585 = vadd.f32 %v2578, %v2580
        %v2586 = vadd.f32 %v2585, %v2582
        %v2587 = vadd.f32 %v2586, %v2584
        %v2588 = vrot.slane %v2587, 4
        %v2589 = vadd.f32 %v2587, %v2588
        %v2590 = vrot.slane %v2589, 2
        %v2591 = vadd.f32 %v2589, %v2590
        %v2592 = vrot.slane %v2591, 1
        %v2593 = vadd.f32 %v2591, %v2592
        %v2594 = vmul.f32 %v2572, 0.001953125
        %v2595 = vmul.f32 %v2593, 0.001953125
        %v2596 = vmul.f32 %v2594, %v2594
        %v2597 = vsub.f32 %v2595, %v2596
        %v2598 = vmax.f32 %v2597, 0.0
        %v2599 = vadd.f32 %v2598, 1e-08
        %v2600 = vrsqrt.pop %v2599
        %v2601 = vsub.f32 %v2548, %v2594
        %v2602 = vsub.f32 %v2549, %v2594
        %v2603 = vsub.f32 %v2550, %v2594
        %v2604 = vsub.f32 %v2551, %v2594
        %v2605 = vmul.f32 %v2601, %v2600
        %v2606 = vmul.f32 %v2602, %v2600
        %v2607 = vmul.f32 %v2603, %v2600
        %v2608 = vmul.f32 %v2604, %v2600
        %2609 = vset.pattern.permute.xlu0 1
        %2610 = vperm.xlu0 %2609, %v2406
        %v2611 = vpop.permute.xlu0 %2610
        %2613 = vset.pattern.permute.xlu0 1
        %2614 = vperm.xlu0 %2613, %v2407
        %v2615 = vpop.permute.xlu0 %2614
        %2617 = vset.pattern.permute.xlu0 1
        %2618 = vperm.xlu0 %2617, %v2408
        %v2619 = vpop.permute.xlu0 %2618
        %2621 = vset.pattern.permute.xlu0 1
        %2622 = vperm.xlu0 %2621, %v2409
        %v2623 = vpop.permute.xlu0 %2622
        %v2625 = vmul.f32 %v2605, %v2611
        %v2626 = vmul.f32 %v2606, %v2615
        %v2627 = vmul.f32 %v2607, %v2619
        %v2628 = vmul.f32 %v2608, %v2623
        %2629 = vset.pattern.permute.xlu0 2
        %2630 = vperm.xlu0 %2629, %v2406
        %v2631 = vpop.permute.xlu0 %2630
        %2633 = vset.pattern.permute.xlu0 2
        %2634 = vperm.xlu0 %2633, %v2407
        %v2635 = vpop.permute.xlu0 %2634
        %2637 = vset.pattern.permute.xlu0 2
        %2638 = vperm.xlu0 %2637, %v2408
        %v2639 = vpop.permute.xlu0 %2638
        %2641 = vset.pattern.permute.xlu0 2
        %2642 = vperm.xlu0 %2641, %v2409
        %v2643 = vpop.permute.xlu0 %2642
        %v2645 = vadd.f32 %v2625, %v2631
        %v2646 = vadd.f32 %v2626, %v2635
        %v2647 = vadd.f32 %v2627, %v2639
        %v2648 = vadd.f32 %v2628, %v2643
        %2649 = vrot.lane.b32.xlu0 %v2645, 2
        %v2650 = vpop.permute.xlu0 %2649
        %2651 = vrot.lane.b32.xlu0 %v2646, 2
        %v2652 = vpop.permute.xlu0 %2651
        %2653 = vrot.lane.b32.xlu0 %v2647, 2
        %v2654 = vpop.permute.xlu0 %2653
        %2655 = vrot.lane.b32.xlu0 %v2648, 2
        %v2656 = vpop.permute.xlu0 %2655
        %v2657 = vsel %vm1458, %v2650, 0.0
        %v2658 = vsel %vm1458, %v2652, 0.0
        %v2659 = vsel %vm1458, %v2654, 0.0
        %v2660 = vsel %vm1458, %v2656, 0.0
        %2661 = vset.pattern.permute.xlu0 6
        %2662 = vperm.xlu0 %2661, %v2406
        %v2663 = vpop.permute.xlu0 %2662
        %2665 = vset.pattern.permute.xlu0 6
        %2666 = vperm.xlu0 %2665, %v2407
        %v2667 = vpop.permute.xlu0 %2666
        %2669 = vset.pattern.permute.xlu0 6
        %2670 = vperm.xlu0 %2669, %v2408
        %v2671 = vpop.permute.xlu0 %2670
        %2673 = vset.pattern.permute.xlu0 6
        %2674 = vperm.xlu0 %2673, %v2409
        %v2675 = vpop.permute.xlu0 %2674
        %v2677 = vmul.f32 %v2663, %v2657
        %v2678 = vmul.f32 %v2667, %v2658
        %v2679 = vmul.f32 %v2671, %v2659
        %v2680 = vmul.f32 %v2675, %v2660
        %v2681 = vadd.f32 %v2677, 0.0
        %v2682 = vadd.f32 %v2678, 0.0
        %v2683 = vadd.f32 %v2679, 0.0
        %v2684 = vadd.f32 %v2680, 0.0
        %2685 = vset.pattern.permute.xlu0 7
        %2686 = vperm.xlu0 %2685, %v2406
        %v2687 = vpop.permute.xlu0 %2686
        %2689 = vset.pattern.permute.xlu0 7
        %2690 = vperm.xlu0 %2689, %v2407
        %v2691 = vpop.permute.xlu0 %2690
        %2693 = vset.pattern.permute.xlu0 7
        %2694 = vperm.xlu0 %2693, %v2408
        %v2695 = vpop.permute.xlu0 %2694
        %2697 = vset.pattern.permute.xlu0 7
        %2698 = vperm.xlu0 %2697, %v2409
        %v2699 = vpop.permute.xlu0 %2698
        %v2701 = vmul.f32 %v2687, %v2645
        %v2702 = vmul.f32 %v2691, %v2646
        %v2703 = vmul.f32 %v2695, %v2647
        %v2704 = vmul.f32 %v2699, %v2648
        %v2705 = vadd.f32 %v2681, %v2701
        %v2706 = vadd.f32 %v2682, %v2702
        %v2707 = vadd.f32 %v2683, %v2703
        %v2708 = vadd.f32 %v2684, %v2704
        %2709 = vrot.lane.b32.xlu0 %v2645, 126
        %v2710 = vpop.permute.xlu0 %2709
        %2711 = vrot.lane.b32.xlu0 %v2646, 126
        %v2712 = vpop.permute.xlu0 %2711
        %2713 = vrot.lane.b32.xlu0 %v2647, 126
        %v2714 = vpop.permute.xlu0 %2713
        %2715 = vrot.lane.b32.xlu0 %v2648, 126
        %v2716 = vpop.permute.xlu0 %2715
        %v2717 = vsel %vm1524, %v2710, 0.0
        %v2718 = vsel %vm1524, %v2712, 0.0
        %v2719 = vsel %vm1524, %v2714, 0.0
        %v2720 = vsel %vm1524, %v2716, 0.0
        %2721 = vset.pattern.permute.xlu0 8
        %2722 = vperm.xlu0 %2721, %v2406
        %v2723 = vpop.permute.xlu0 %2722
        %2725 = vset.pattern.permute.xlu0 8
        %2726 = vperm.xlu0 %2725, %v2407
        %v2727 = vpop.permute.xlu0 %2726
        %2729 = vset.pattern.permute.xlu0 8
        %2730 = vperm.xlu0 %2729, %v2408
        %v2731 = vpop.permute.xlu0 %2730
        %2733 = vset.pattern.permute.xlu0 8
        %2734 = vperm.xlu0 %2733, %v2409
        %v2735 = vpop.permute.xlu0 %2734
        %v2737 = vmul.f32 %v2723, %v2717
        %v2738 = vmul.f32 %v2727, %v2718
        %v2739 = vmul.f32 %v2731, %v2719
        %v2740 = vmul.f32 %v2735, %v2720
        %v2741 = vadd.f32 %v2705, %v2737
        %v2742 = vadd.f32 %v2706, %v2738
        %v2743 = vadd.f32 %v2707, %v2739
        %v2744 = vadd.f32 %v2708, %v2740
        %2745 = vset.pattern.permute.xlu0 5
        %2746 = vperm.xlu0 %2745, %v2406
        %v2747 = vpop.permute.xlu0 %2746
        %2749 = vset.pattern.permute.xlu0 5
        %2750 = vperm.xlu0 %2749, %v2407
        %v2751 = vpop.permute.xlu0 %2750
        %2753 = vset.pattern.permute.xlu0 5
        %2754 = vperm.xlu0 %2753, %v2408
        %v2755 = vpop.permute.xlu0 %2754
        %2757 = vset.pattern.permute.xlu0 5
        %2758 = vperm.xlu0 %2757, %v2409
        %v2759 = vpop.permute.xlu0 %2758
        %v2761 = vadd.f32 %v2741, %v2747
        %v2762 = vadd.f32 %v2742, %v2751
        %v2763 = vadd.f32 %v2743, %v2755
        %v2764 = vadd.f32 %v2744, %v2759
        %vm2765 = vcmp.ge.f32.partialorder %v2761, 0.0
        %vm2766 = vcmp.ge.f32.partialorder %v2762, 0.0
        %vm2767 = vcmp.ge.f32.partialorder %v2763, 0.0
        %vm2768 = vcmp.ge.f32.partialorder %v2764, 0.0
        %v2769 = vstv %s2421
        %v2770 = vmul.f32 %v2769, %v2761
        %v2771 = vmul.f32 %v2769, %v2762
        %v2772 = vmul.f32 %v2769, %v2763
        %v2773 = vmul.f32 %v2769, %v2764
        %v2774 = vsel %vm2765, %v2761, %v2770
        %v2775 = vsel %vm2766, %v2762, %v2771
        %v2776 = vsel %vm2767, %v2763, %v2772
        %v2777 = vsel %vm2768, %v2764, %v2773
        %v2778 = vmul.f32 %v2774, %v431
        %v2779 = vmul.f32 %v2775, %v431
        %v2780 = vmul.f32 %v2776, %v431
        %v2781 = vmul.f32 %v2777, %v431
        %2782 = vadd.xlane.f32.xlu0 %v2778
        %v2783 = vpop.xlane.xlu0 %2782
        %2784 = vadd.xlane.f32.xlu0 %v2779
        %v2785 = vpop.xlane.xlu0 %2784
        %2786 = vadd.xlane.f32.xlu0 %v2780
        %v2787 = vpop.xlane.xlu0 %2786
        %2788 = vadd.xlane.f32.xlu0 %v2781
        %v2789 = vpop.xlane.xlu0 %2788
        %v2790 = vadd.f32 %v2783, %v2785
        %v2791 = vadd.f32 %v2790, %v2787
        %v2792 = vadd.f32 %v2791, %v2789
        %v2793 = vrot.slane %v2792, 4
        %v2794 = vadd.f32 %v2792, %v2793
        %v2795 = vrot.slane %v2794, 2
        %v2796 = vadd.f32 %v2794, %v2795
        %v2797 = vrot.slane %v2796, 1
        %v2798 = vadd.f32 %v2796, %v2797
        %v2799 = vmul.f32 %v2778, %v2778
        %v2800 = vmul.f32 %v2779, %v2779
        %v2801 = vmul.f32 %v2780, %v2780
        %v2802 = vmul.f32 %v2781, %v2781
        %2803 = vadd.xlane.f32.xlu0 %v2799
        %v2804 = vpop.xlane.xlu0 %2803
        %2805 = vadd.xlane.f32.xlu0 %v2800
        %v2806 = vpop.xlane.xlu0 %2805
        %2807 = vadd.xlane.f32.xlu0 %v2801
        %v2808 = vpop.xlane.xlu0 %2807
        %2809 = vadd.xlane.f32.xlu0 %v2802
        %v2810 = vpop.xlane.xlu0 %2809
        %v2811 = vadd.f32 %v2804, %v2806
        %v2812 = vadd.f32 %v2811, %v2808
        %v2813 = vadd.f32 %v2812, %v2810
        %v2814 = vrot.slane %v2813, 4
        %v2815 = vadd.f32 %v2813, %v2814
        %v2816 = vrot.slane %v2815, 2
        %v2817 = vadd.f32 %v2815, %v2816
        %v2818 = vrot.slane %v2817, 1
        %v2819 = vadd.f32 %v2817, %v2818
        %v2820 = vmul.f32 %v2798, 0.001953125
        %v2821 = vmul.f32 %v2819, 0.001953125
        %v2822 = vmul.f32 %v2820, %v2820
        %v2823 = vsub.f32 %v2821, %v2822
        %v2824 = vmax.f32 %v2823, 0.0
        %v2825 = vadd.f32 %v2824, 1e-08
        %v2826 = vrsqrt.pop %v2825
        %v2827 = vsub.f32 %v2774, %v2820
        %v2828 = vsub.f32 %v2775, %v2820
        %v2829 = vsub.f32 %v2776, %v2820
        %v2830 = vsub.f32 %v2777, %v2820
        %v2831 = vmul.f32 %v2827, %v2826
        %v2832 = vmul.f32 %v2828, %v2826
        %v2833 = vmul.f32 %v2829, %v2826
        %v2834 = vmul.f32 %v2830, %v2826
        %2835 = vset.pattern.permute.xlu0 3
        %2836 = vperm.xlu0 %2835, %v2406
        %v2837 = vpop.permute.xlu0 %2836
        %2839 = vset.pattern.permute.xlu0 3
        %2840 = vperm.xlu0 %2839, %v2407
        %v2841 = vpop.permute.xlu0 %2840
        %2843 = vset.pattern.permute.xlu0 3
        %2844 = vperm.xlu0 %2843, %v2408
        %v2845 = vpop.permute.xlu0 %2844
        %2847 = vset.pattern.permute.xlu0 3
        %2848 = vperm.xlu0 %2847, %v2409
        %v2849 = vpop.permute.xlu0 %2848
        %v2851 = vmul.f32 %v2831, %v2837
        %v2852 = vmul.f32 %v2832, %v2841
        %v2853 = vmul.f32 %v2833, %v2845
        %v2854 = vmul.f32 %v2834, %v2849
        %2855 = vset.pattern.permute.xlu0 4
        %2856 = vperm.xlu0 %2855, %v2406
        %v2857 = vpop.permute.xlu0 %2856
        %2859 = vset.pattern.permute.xlu0 4
        %2860 = vperm.xlu0 %2859, %v2407
        %v2861 = vpop.permute.xlu0 %2860
        %2863 = vset.pattern.permute.xlu0 4
        %2864 = vperm.xlu0 %2863, %v2408
        %v2865 = vpop.permute.xlu0 %2864
        %2867 = vset.pattern.permute.xlu0 4
        %2868 = vperm.xlu0 %2867, %v2409
        %v2869 = vpop.permute.xlu0 %2868
        %v2871 = vadd.f32 %v2851, %v2857
        %v2872 = vadd.f32 %v2852, %v2861
        %v2873 = vadd.f32 %v2853, %v2865
        %v2874 = vadd.f32 %v2854, %v2869
        %2876 = vset.pattern.permute.xlu0 0
        %2877 = vperm.xlu0 %2876, %v2416
        %v2878 = vpop.permute.xlu0 %2877
        %2880 = vset.pattern.permute.xlu0 0
        %2881 = vperm.xlu0 %2880, %v2417
        %v2882 = vpop.permute.xlu0 %2881
        %2884 = vset.pattern.permute.xlu0 0
        %2885 = vperm.xlu0 %2884, %v2418
        %v2886 = vpop.permute.xlu0 %2885
        %2889 = vset.pattern.permute.xlu0 0
        %2890 = vperm.xlu0 %2889, %v2419
        %v2891 = vpop.permute.xlu0 %2890
        %v2894 = vsel %vm1094, %v2411, 0
        %v2897 = vsel %vm1094, %v2412, 0
        %v2900 = vsel %vm1094, %v2413, 0
        %v2903 = vsel %vm1094, %v2414, 0
        %2905 = vmatprep.subr.mxu0 0.0
        %2906 = vmatpush1.msra.mxu0 0.0
        %2907 = vmatprep.subr.mxu0 0.0
        %2908 = vmatpush1.msra.mxu0 0.0
        %2909 = vmatprep.subr.mxu0 0.0
        %2910 = vmatpush1.msra.mxu0 0.0
        %2911 = vmatprep.subr.mxu0 0.0
        %2912 = vmatpush1.msra.mxu0 0.0
        %2913 = vmatprep.subr.mxu0 0.0
        %2914 = vmatpush1.msra.mxu0 0.0
        %2915 = vmatprep.subr.mxu0 0.0
        %2916 = vmatpush1.msra.mxu0 0.0
        %2917 = vmatprep.subr.mxu0 0.0
        %2918 = vmatpush1.msra.mxu0 0.0
        %2919 = vmatprep.subr.mxu0 0.0
        %2920 = vmatpush1.msra.mxu0 0.0
        %2921 = vmatprep.subr.mxu0 0.0
        %2922 = vmatpush1.msra.mxu0 0.0
        %2923 = vmatprep.subr.mxu0 0.0
        %2924 = vmatpush1.msra.mxu0 0.0
        %2925 = vmatprep.subr.mxu0 0.0
        %2926 = vmatpush1.msra.mxu0 0.0
        %2927 = vmatprep.subr.mxu0 0.0
        %2928 = vmatpush1.msra.mxu0 0.0
        %2929 = vmatprep.subr.mxu0 0.0
        %2930 = vmatpush1.msra.mxu0 %v2874
        %2931 = vmatprep.subr.mxu0 0.0
        %2932 = vmatpush1.msra.mxu0 %v2873
        %2933 = vmatprep.subr.mxu0 0.0
        %2934 = vmatpush1.msra.mxu0 %v2872
        %2935 = vmatprep.subr.mxu0 0.0
        %2936 = vmatpush1.msra.mxu0 %v2871
        %2937 = vmatprep.subr.mxu0 0.0
        %2938 = vmatpush2.msra.mxu0 0.0
        %2939 = vmatprep.subr.mxu0 0.0
        %2940 = vmatpush2.msra.mxu0 0.0
        %2941 = vmatprep.subr.mxu0 0.0
        %2942 = vmatpush2.msra.mxu0 0.0
        %2943 = vmatprep.subr.mxu0 0.0
        %2944 = vmatpush2.msra.mxu0 0.0
        %2945 = vmatprep.subr.mxu0 0.0
        %2946 = vmatpush2.msra.mxu0 0.0
        %2947 = vmatprep.subr.mxu0 0.0
        %2948 = vmatpush2.msra.mxu0 0.0
        %2949 = vmatprep.subr.mxu0 0.0
        %2950 = vmatpush2.msra.mxu0 0.0
        %2951 = vmatprep.subr.mxu0 0.0
        %2952 = vmatpush2.msra.mxu0 0.0
        %2953 = vmatprep.subr.mxu0 0.0
        %2954 = vmatpush2.msra.mxu0 0.0
        %2955 = vmatprep.subr.mxu0 0.0
        %2956 = vmatpush2.msra.mxu0 0.0
        %2957 = vmatprep.subr.mxu0 0.0
        %2958 = vmatpush2.msra.mxu0 0.0
        %2959 = vmatprep.subr.mxu0 0.0
        %2960 = vmatpush2.msra.mxu0 0.0
        %2961 = vmatprep.subr.mxu0 0.0
        %2962 = vmatpush2.msra.mxu0 0.0
        %2963 = vmatprep.subr.mxu0 0.0
        %2964 = vmatpush2.msra.mxu0 0.0
        %2965 = vmatprep.subr.mxu0 0.0
        %2966 = vmatpush2.msra.mxu0 0.0
        %2967 = vmatprep.subr.mxu0 0.0
        %2968 = vmatpush2.msra.mxu0 0.0
        %2969 = vmatprep.mubr.f32.mxu0 0.0
        %2970 = vmatmul.mubr.f32.gmra.mxu0 %v2894
        %v2971 = vpop.f32.mrf.mxu0
        %v2972 = vpop.f32.mrf.mxu0
        %2973 = vmatprep.mubr.f32.mxu0 0.0
        %2974 = vmatmul.mubr.f32.gmra.mxu0 %v2897
        %v2975 = vpop.f32.mrf.mxu0
        %v2976 = vpop.f32.mrf.mxu0
        %2977 = vmatprep.mubr.f32.mxu0 0.0
        %2978 = vmatmul.mubr.f32.gmra.mxu0 %v2900
        %v2979 = vpop.f32.mrf.mxu0
        %v2980 = vadd.f32 %v2886, %v2979
        %v2981 = vpop.f32.mrf.mxu0
        %2982 = vmatprep.mubr.f32.mxu0 0.0
        %2983 = vmatmul.mubr.f32.gmra.mxu0 %v2903
        %v2984 = vpop.f32.mrf.mxu0
        %v2985 = vadd.f32 %v2891, %v2984
        %v2986 = vpop.f32.mrf.mxu0
        %2987 = vdwg.mxu0
        %v2988 = vadd.f32 %v2398, %v2980
        %v2989 = vadd.f32 %v2399, %v2985
        %s2990 = sld [smem:[#allocation2]]
        %vm2991 = vcmp.ge.f32.partialorder %v2988, 0.0
        %vm2992 = vcmp.ge.f32.partialorder %v2989, 0.0
        %v2993 = vstv %s2990
        %v2994 = vmul.f32 %v2993, %v2988
        %v2995 = vmul.f32 %v2993, %v2989
        %v2996 = vsel %vm2991, %v2988, %v2994
        %v2997 = vsel %vm2992, %v2989, %v2995
        %v2998 = vld [vmem:[%s8] sm:$0xff]
        %v2999 = vld [vmem:[%s9] sm:$0xff]
        %3001 = vset.pattern.permute.xlu0 0
        %3002 = vperm.xlu0 %3001, %v2999
        %v3003 = vpop.permute.xlu0 %3002
        %v3006 = vsel %vm509, %v2998, 0
        %3008 = vmatprep.subr.mxu0 0.0
        %3009 = vmatpush1.msra.mxu0 0.0
        %3010 = vmatprep.subr.mxu0 0.0
        %3011 = vmatpush1.msra.mxu0 0.0
        %3012 = vmatprep.subr.mxu0 0.0
        %3013 = vmatpush1.msra.mxu0 0.0
        %3014 = vmatprep.subr.mxu0 0.0
        %3015 = vmatpush1.msra.mxu0 0.0
        %3016 = vmatprep.subr.mxu0 0.0
        %3017 = vmatpush1.msra.mxu0 0.0
        %3018 = vmatprep.subr.mxu0 0.0
        %3019 = vmatpush1.msra.mxu0 0.0
        %3020 = vmatprep.subr.mxu0 0.0
        %3021 = vmatpush1.msra.mxu0 0.0
        %3022 = vmatprep.subr.mxu0 0.0
        %3023 = vmatpush1.msra.mxu0 0.0
        %3024 = vmatprep.subr.mxu0 0.0
        %3025 = vmatpush1.msra.mxu0 0.0
        %3026 = vmatprep.subr.mxu0 0.0
        %3027 = vmatpush1.msra.mxu0 0.0
        %3028 = vmatprep.subr.mxu0 0.0
        %3029 = vmatpush1.msra.mxu0 0.0
        %3030 = vmatprep.subr.mxu0 0.0
        %3031 = vmatpush1.msra.mxu0 0.0
        %3032 = vmatprep.subr.mxu0 0.0
        %3033 = vmatpush1.msra.mxu0 0.0
        %3034 = vmatprep.subr.mxu0 0.0
        %3035 = vmatpush1.msra.mxu0 0.0
        %3036 = vmatprep.subr.mxu0 0.0
        %3037 = vmatpush1.msra.mxu0 %v2997
        %3038 = vmatprep.subr.mxu0 0.0
        %3039 = vmatpush1.msra.mxu0 %v2996
        %3040 = vmatprep.subr.mxu0 0.0
        %3041 = vmatpush2.msra.mxu0 0.0
        %3042 = vmatprep.subr.mxu0 0.0
        %3043 = vmatpush2.msra.mxu0 0.0
        %3044 = vmatprep.subr.mxu0 0.0
        %3045 = vmatpush2.msra.mxu0 0.0
        %3046 = vmatprep.subr.mxu0 0.0
        %3047 = vmatpush2.msra.mxu0 0.0
        %3048 = vmatprep.subr.mxu0 0.0
        %3049 = vmatpush2.msra.mxu0 0.0
        %3050 = vmatprep.subr.mxu0 0.0
        %3051 = vmatpush2.msra.mxu0 0.0
        %3052 = vmatprep.subr.mxu0 0.0
        %3053 = vmatpush2.msra.mxu0 0.0
        %3054 = vmatprep.subr.mxu0 0.0
        %3055 = vmatpush2.msra.mxu0 0.0
        %3056 = vmatprep.subr.mxu0 0.0
        %3057 = vmatpush2.msra.mxu0 0.0
        %3058 = vmatprep.subr.mxu0 0.0
        %3059 = vmatpush2.msra.mxu0 0.0
        %3060 = vmatprep.subr.mxu0 0.0
        %3061 = vmatpush2.msra.mxu0 0.0
        %3062 = vmatprep.subr.mxu0 0.0
        %3063 = vmatpush2.msra.mxu0 0.0
        %3064 = vmatprep.subr.mxu0 0.0
        %3065 = vmatpush2.msra.mxu0 0.0
        %3066 = vmatprep.subr.mxu0 0.0
        %3067 = vmatpush2.msra.mxu0 0.0
        %3068 = vmatprep.subr.mxu0 0.0
        %3069 = vmatpush2.msra.mxu0 0.0
        %3070 = vmatprep.subr.mxu0 0.0
        %3071 = vmatpush2.msra.mxu0 0.0
        %3072 = vmatprep.mubr.f32.mxu0 0.0
        %3073 = vmatmul.mubr.f32.gmra.mxu0 %v3006
        %v3074 = vpop.f32.mrf.mxu0
        %v3075 = vadd.f32 %v3003, %v3074
        %v3076 = vpop.f32.mrf.mxu0
        %3077 = vdwg.mxu0
        %3078 = vst [vmem:[%s421] sm:$0xff] %v3075
        %s3079 = sand.u32 %s293, 1
        %s3080 = scalar_lea.sflag [#allocation4], %s3079
        %s3081 = sand.u32 %s293, 1
        %s3082 = smul.addr %s3081, 8
        %s3083 = scalar_lea.vmem [#allocation6], %s3082
        // Predicated region
        $region73: #{tpu_custom_call.1} parent=67 // pred_check
          %p3084 = pneg %p303
        $region74: #{tpu_custom_call.1} parent=67 // pred_check_branch
          %3086 = sbr.rel (%p3084) target = $region76
        $region75: #{tpu_custom_call.1} parent=67 // pred_region
          %s3088 = ssub.s32 128, 128
          %3089 = vsyncadd %s3080, %s3088
          %s3090 = smul.addr %s28, 128
          %s3091 = scalar_lea.hbm %s12, %s3090
          %s3093 = sshll.u32 %s3083, 4
          %s3094 = int_to_ptr.vmem [resolvable:$true] %s3093
          %3096 = dma.vmem_to_hbm [thread:$0]  %s3094, 128, %s3091, %s3080
        $region76: #{tpu_custom_call.1} parent=67 // pred_fallthru
          _
      $region68: #{tpu_custom_call.1} parent=5 // pred_fallthru
        _
      %p3097 = scmp.le.s32.totalorder 2, %s23
      // Predicated region
      $region77: #{tpu_custom_call.1} parent=5 // pred_check
        %p3098 = pneg %p3097
      $region78: #{tpu_custom_call.1} parent=5 // pred_check_branch
        %3100 = sbr.rel (%p3098) target = $region80
      $region79: #{tpu_custom_call.1} parent=5 // pred_region
        %s3101 = ssub.s32 %s23, 2
        // Predicated region
        $region81: #{tpu_custom_call.1} parent=79 // pred_check
          %p3102 = pneg %p309
        $region82: #{tpu_custom_call.1} parent=79 // pred_check_branch
          %3104 = sbr.rel (%p3102) target = $region84
        $region83: #{tpu_custom_call.1} parent=79 // pred_region
          %s3105 = sand.u32 %s294, 1
          %s3106 = scalar_lea.sflag [#allocation4], %s3105
          %s3107 = sand.u32 %s294, 1
          %s3108 = smul.addr %s3107, 8
          %s3109 = scalar_lea.vmem [#allocation6], %s3108
          %3110 = dma.done %s3106, 128
        $region84: #{tpu_custom_call.1} parent=79 // pred_fallthru
          _
      $region80: #{tpu_custom_call.1} parent=5 // pred_fallthru
        _
    $region6: #{tpu_custom_call.1} parent=1 // loop_footer
      %s27 = sadd.s32 1, %s23
    $region7: #{tpu_custom_call.1} parent=1 // loop_footer_branch
      %22 = sbr.rel target = $region3
    $region8: #{tpu_custom_call.1} parent=1 // loop_exit
      _
    %3111 = vsyncpa [#allocation4], 1
    %s3112 = scalar_lea.sflag [#allocation4], 1
    %3113 = vsyncpa %s3112, 1
    %3114 = vsyncpa [#allocation5], 1
    %s3115 = scalar_lea.sflag [#allocation5], 1
    %3116 = vsyncpa %s3115, 1

</llo_original>
